<compile_context>
chip_gen: v7x
topology: tpu7x:2x2x1
jax: 0.10.0
libtpu: 0.0.40
codegen_flags: <defaults>
</compile_context>

<pallas_src>
import functools

import jax
import jax.numpy as jnp
from jax.experimental import pallas as pl
from jax.experimental.pallas import tpu as pltpu

# --- model hyperparameters (defaults of the PyTorch module) -----------------
EMB_SIZE = 128
EMB_SIZE_X2 = 2 * EMB_SIZE      # 256
KEY_SIZE = 300
KEY_SIZE_PAD = 384              # next multiple of 128 -> lane-dense output
MEM_SIZE = 16
HOPS = 3
# meta_size is declared in __init__ but never used in forward.


def _has_bf16_vpu():
    """bf16 VALUs exist on v6e (Trillium) and v7x; not on v2-v5."""
    try:
        kind = jax.devices()[0].device_kind.lower()
    except Exception:
        return False
    return any(tag in kind for tag in ("v6", "v7", "trillium"))


def _pick_block_batch(n_pad, cap):
    """Largest multiple-of-16 divisor of n_pad that is <= cap."""
    best = 16
    b = 16
    limit = min(cap, n_pad)
    while b <= limit:
        if n_pad % b == 0:
            best = b
        b += 16
    return best


def _memn2n_kernel(stories_ref, u0_ref, AC_ref, H_ref, W_ref, out_ref, *,
                   mc_dtype):
    """MemN2N forward for one batch tile; weights are VMEM-resident."""
    rows = stories_ref.shape[0]                 # block_batch * MEM_SIZE (static)
    tb = rows // MEM_SIZE

    stories = stories_ref[...]                  # (rows, EMB)        bf16
    AC = AC_ref[...]                            # (EMB, 2*2E)        bf16
    H = H_ref[...]                              # (2E, 2E)           bf16
    W = W_ref[...]                              # (2E, KEY_PAD)      bf16

    # Embedding stage: single bf16 matmul on the MXU, f32 accumulation, then
    # split into the A-half (m) and C-half (c).  On bf16-VPU chips the halves
    # are kept in bf16 (halves the largest in-kernel intermediates); on v5e
    # they stay f32.
    mc = jnp.dot(stories, AC, preferred_element_type=jnp.float32)    # (rows, 512)
    m = mc[:, :EMB_SIZE_X2].astype(mc_dtype).reshape(tb, MEM_SIZE, EMB_SIZE_X2)
    c = mc[:, EMB_SIZE_X2:].astype(mc_dtype).reshape(tb, MEM_SIZE, EMB_SIZE_X2)

    # u_0 = queries @ B is folded out of the kernel (parameter-only).
    # Hoist the first-hop broadcast so every unrolled hop sees (tb, 2E).
    u = jnp.broadcast_to(u0_ref[...].astype(jnp.float32), (tb, EMB_SIZE_X2))

    # hop loop (static, unrolled — HOPS is a Python constant)
    for _ in range(HOPS):
        # Keep mem=16 on sublanes throughout: every softmax intermediate is a
        # keepdims (tb, 16, 1) / (tb, 1, 1) shape -> no XLU relayouts.
        u_b = u.astype(mc_dtype)[:, None, :]                          # (tb, 1, 2E)
        dotted = jnp.sum((m * u_b).astype(jnp.float32),
                         axis=2, keepdims=True)                       # (tb, 16, 1)
        # numerically-stable softmax over the memory axis (axis=1)
        dmax = jnp.max(dotted, axis=1, keepdims=True)                 # (tb, 1, 1)
        e = jnp.exp(dotted - dmax)                                    # (tb, 16, 1)
        inv = pl.reciprocal(jnp.sum(e, axis=1, keepdims=True),
                            approx=True)                              # (tb, 1, 1)
        probs = (e * inv).astype(mc_dtype)                            # (tb, 16, 1)
        # o_k = memory-weighted sum of c (accumulate in f32)
        o_k = jnp.sum((c * probs).astype(jnp.float32), axis=1)        # (tb, 2E)
        # u_k = u @ H + o_k   (bf16 inputs on the MXU, f32 accumulation)
        u = jnp.dot(u.astype(jnp.bfloat16), H,
                    preferred_element_type=jnp.float32) + o_k
        # nonlin is None in RequirementNet -> no activation.

    # req = u @ W  (lane-dense padded bf16 output; wrapper slices 384 -> 300)
    out_ref[...] = jnp.dot(u.astype(jnp.bfloat16), W,
                           preferred_element_type=jnp.float32
                           ).astype(out_ref.dtype)


def requirement_net_forward(dlg, params, *, block_batch=None):
    """RequirementNet.forward(dlg) -> req of shape (num_batch, key_size)."""
    n_batch = dlg.shape[0]

    # Pad the batch to a multiple of 16 so every block satisfies the packed
    # (16, 128) sublane/lane rule (bf16 output) and odd batches never fail.
    n_pad = -(-n_batch // 16) * 16
    if n_pad != n_batch:
        pad = jnp.zeros((n_pad - n_batch,) + dlg.shape[1:], dlg.dtype)
        dlg = jnp.concatenate([dlg, pad], axis=0)

    use_bf16_mc = _has_bf16_vpu()
    mc_dtype = jnp.bfloat16 if use_bf16_mc else jnp.float32
    cap = 256 if use_bf16_mc else 128           # MXU-M fill (v6e/v7x) vs v5e
    if block_batch is None:
        block_batch = _pick_block_batch(n_pad, cap)
    assert n_pad % block_batch == 0
    assert block_batch % 16 == 0 or block_batch == n_pad

    grid = (n_pad // block_batch,)
    rows_blk = block_batch * MEM_SIZE

    # ---- host/XLA-side prep (done outside the kernel, not in VMEM) ---------
    # u0 folded out; A|C concat; W padded to a lane multiple; bf16 downcasts.
    u0 = jnp.matmul(params['queries'], params['B']).astype(jnp.float32)      # (1, 256)
    AC = jnp.concatenate([params['A'], params['C']], axis=1).astype(jnp.bfloat16)
    H = params['H'].astype(jnp.bfloat16)
    W_pad = jnp.zeros((EMB_SIZE_X2, KEY_SIZE_PAD), jnp.bfloat16)
    W_pad = W_pad.at[:, :KEY_SIZE].set(params['W'].astype(jnp.bfloat16))
    stories2d = dlg.reshape(n_pad * MEM_SIZE, EMB_SIZE).astype(jnp.bfloat16)

    kernel = functools.partial(_memn2n_kernel, mc_dtype=mc_dtype)
    const_map = lambda i: (0, 0)          # weights: same block every grid step
    out_pad = pl.pallas_call(
        kernel,
        out_shape=jax.ShapeDtypeStruct((n_pad, KEY_SIZE_PAD), jnp.bfloat16),
        grid=grid,
        in_specs=[
            pl.BlockSpec((rows_blk, EMB_SIZE), lambda i: (i, 0)),            # stories
            pl.BlockSpec((1, EMB_SIZE_X2), const_map),                       # u0
            pl.BlockSpec((EMB_SIZE, 2 * EMB_SIZE_X2), const_map),            # A|C
            pl.BlockSpec((EMB_SIZE_X2, EMB_SIZE_X2), const_map),             # H
            pl.BlockSpec((EMB_SIZE_X2, KEY_SIZE_PAD), const_map),            # W (padded)
        ],
        out_specs=pl.BlockSpec((block_batch, KEY_SIZE_PAD), lambda i: (i, 0)),
        compiler_params=pltpu.CompilerParams(
            dimension_semantics=("parallel",)),
    )(stories2d, u0, AC, H, W_pad)

    return out_pad[:n_batch, :KEY_SIZE].astype(jnp.float32)


def _reference_forward(dlg, params):
    """Plain-JAX reference mirroring the PyTorch forward.

    Weights/stories are rounded through bf16 (same values the kernel sees) so
    the comparison isolates kernel math; matmuls run in f32.  The kernel may
    additionally round m/c/u/probs through bf16 on bf16-VPU chips and uses an
    approx reciprocal in the softmax; both stay within the test tolerances.
    """
    f32 = jnp.float32
    A = params['A'].astype(jnp.bfloat16).astype(f32)
    C = params['C'].astype(jnp.bfloat16).astype(f32)
    H = params['H'].astype(jnp.bfloat16).astype(f32)
    W = params['W'].astype(jnp.bfloat16).astype(f32)
    stories = dlg.astype(jnp.bfloat16).astype(f32)

    u = jnp.matmul(params['queries'], params['B'])
    m = jnp.matmul(stories.reshape(-1, EMB_SIZE), A).reshape(-1, MEM_SIZE, EMB_SIZE_X2)
    c = jnp.matmul(stories.reshape(-1, EMB_SIZE), C).reshape(-1, MEM_SIZE, EMB_SIZE_X2)
    for _ in range(HOPS):
        dotted = jnp.sum(m * u[:, None, :], axis=2)
        probs = jax.nn.softmax(dotted, axis=1)
        o_k = jnp.sum(c * probs[:, :, None], axis=1)
        u = jnp.matmul(u, H) + o_k
    return jnp.matmul(u, W)


def init_params(key):
    """Deterministic N(0, 0.01) init matching the module's __init__ shapes."""
    ks = jax.random.split(key, 6)
    std = 0.01
    return {
        'queries': std * jax.random.normal(ks[0], (1, EMB_SIZE), jnp.float32),
        'A': std * jax.random.normal(ks[1], (EMB_SIZE, EMB_SIZE_X2), jnp.float32),
        'B': std * jax.random.normal(ks[2], (EMB_SIZE, EMB_SIZE_X2), jnp.float32),
        'C': std * jax.random.normal(ks[3], (EMB_SIZE, EMB_SIZE_X2), jnp.float32),
        'H': std * jax.random.normal(ks[4], (EMB_SIZE_X2, EMB_SIZE_X2), jnp.float32),
        'W': std * jax.random.normal(ks[5], (EMB_SIZE_X2, KEY_SIZE), jnp.float32),
    }


if __name__ == "__main__":
    key = jax.random.PRNGKey(0)
    pkey, dkey = jax.random.split(key)

    params = init_params(pkey)

    # dlg: (num_batch, mem_size, emb_size) — small batch of dialogue episodes.
    num_batch = 2
    dlg = jax.random.normal(dkey, (num_batch, MEM_SIZE, EMB_SIZE), jnp.float32)

    req = requirement_net_forward(dlg, params)
    req = jax.block_until_ready(req)

    # sanity check against the plain-JAX reference of the PyTorch forward
    ref = _reference_forward(dlg, params)
    assert req.shape == (num_batch, KEY_SIZE)
    assert jnp.allclose(req, ref, atol=1e-3, rtol=2e-2), \
        float(jnp.max(jnp.abs(req - ref)))

    print("KERNEL_OK")
</pallas_src>

<mosaic_0001>
module attributes {stable_mosaic.version = 11 : i64} {
  func.func @_memn2n_kernel(%arg0: i32, %arg1: memref<256x128xbf16, #tpu.memory_space<vmem>>, %arg2: memref<1x256xf32, #tpu.memory_space<vmem>>, %arg3: memref<128x512xbf16, #tpu.memory_space<vmem>>, %arg4: memref<256x256xbf16, #tpu.memory_space<vmem>>, %arg5: memref<256x384xbf16, #tpu.memory_space<vmem>>, %arg6: memref<16x384xbf16, #tpu.memory_space<vmem>>) attributes {dimension_semantics = [#tpu.dimension_semantics<parallel>], iteration_bounds = array<i64: 1>, scalar_prefetch = 0 : i64, scratch_operands = 0 : i64, tpu.core_type = #tpu.core_type<tc>, window_params = [{transform_indices = @transform_0, window_bounds = array<i64: 256, 128>}, {pipeline_mode = #tpu.pipeline_mode<synchronous>, transform_indices = @transform_1, window_bounds = array<i64: 1, 256>}, {pipeline_mode = #tpu.pipeline_mode<synchronous>, transform_indices = @transform_2, window_bounds = array<i64: 128, 512>}, {pipeline_mode = #tpu.pipeline_mode<synchronous>, transform_indices = @transform_3, window_bounds = array<i64: 256, 256>}, {pipeline_mode = #tpu.pipeline_mode<synchronous>, transform_indices = @transform_4, window_bounds = array<i64: 256, 384>}, {transform_indices = @transform_5, window_bounds = array<i64: 16, 384>}]} {
    %c0 = arith.constant 0 : index
    %c0_0 = arith.constant 0 : index
    %0 = vector.load %arg1[%c0, %c0_0] : memref<256x128xbf16, #tpu.memory_space<vmem>>, vector<256x128xbf16>
    %c0_1 = arith.constant 0 : index
    %c0_2 = arith.constant 0 : index
    %1 = vector.load %arg3[%c0_1, %c0_2] : memref<128x512xbf16, #tpu.memory_space<vmem>>, vector<128x512xbf16>
    %c0_3 = arith.constant 0 : index
    %c0_4 = arith.constant 0 : index
    %2 = vector.load %arg4[%c0_3, %c0_4] : memref<256x256xbf16, #tpu.memory_space<vmem>>, vector<256x256xbf16>
    %c0_5 = arith.constant 0 : index
    %c0_6 = arith.constant 0 : index
    %3 = vector.load %arg5[%c0_5, %c0_6] : memref<256x384xbf16, #tpu.memory_space<vmem>>, vector<256x384xbf16>
    %cst = arith.constant dense<0.000000e+00> : vector<256x512xf32>
    %4 = tpu.matmul %0, %1, %cst {dimension_numbers = #tpu.dot_dimension_numbers<[1], [0], [0], [1], [0, 0, 1, 1], [], []>} : vector<256x128xbf16>, vector<128x512xbf16>, vector<256x512xf32> -> vector<256x512xf32>
    %5 = vector.extract_strided_slice %4 {offsets = [0, 0], sizes = [256, 256], strides = [1, 1]} : vector<256x512xf32> to vector<256x256xf32>
    %6 = vector.shape_cast %5 : vector<256x256xf32> to vector<16x16x256xf32>
    %7 = vector.extract_strided_slice %4 {offsets = [0, 256], sizes = [256, 256], strides = [1, 1]} : vector<256x512xf32> to vector<256x256xf32>
    %8 = vector.shape_cast %7 : vector<256x256xf32> to vector<16x16x256xf32>
    %c0_7 = arith.constant 0 : index
    %c0_8 = arith.constant 0 : index
    %9 = vector.load %arg2[%c0_7, %c0_8] : memref<1x256xf32, #tpu.memory_space<vmem>>, vector<1x256xf32>
    %10 = vector.shape_cast %9 : vector<1x256xf32> to vector<1x256xf32>
    %11 = vector.broadcast %10 : vector<1x256xf32> to vector<16x256xf32>
    %12 = vector.shape_cast %11 : vector<16x256xf32> to vector<16x1x256xf32>
    %13 = vector.broadcast %12 : vector<16x1x256xf32> to vector<16x16x256xf32>
    %14 = arith.mulf %6, %13 : vector<16x16x256xf32>
    %cst_9 = arith.constant dense<0.000000e+00> : vector<16x16xf32>
    %15 = vector.multi_reduction <add>, %14, %cst_9 [2] : vector<16x16x256xf32> to vector<16x16xf32>
    %16 = vector.shape_cast %15 : vector<16x16xf32> to vector<16x16x1xf32>
    %cst_10 = arith.constant dense<0xFF800000> : vector<16x1xf32>
    %17 = vector.multi_reduction <maximumf>, %16, %cst_10 [1] : vector<16x16x1xf32> to vector<16x1xf32>
    %18 = vector.shape_cast %17 : vector<16x1xf32> to vector<16x1x1xf32>
    %19 = vector.broadcast %18 : vector<16x1x1xf32> to vector<16x16x1xf32>
    %20 = arith.subf %16, %19 : vector<16x16x1xf32>
    %21 = math.exp %20 : vector<16x16x1xf32>
    %cst_11 = arith.constant dense<0.000000e+00> : vector<16x1xf32>
    %22 = vector.multi_reduction <add>, %21, %cst_11 [1] : vector<16x16x1xf32> to vector<16x1xf32>
    %23 = vector.shape_cast %22 : vector<16x1xf32> to vector<16x1x1xf32>
    %24 = tpu.reciprocal %23 {approx = true} : vector<16x1x1xf32> -> vector<16x1x1xf32>
    %25 = vector.broadcast %24 : vector<16x1x1xf32> to vector<16x16x1xf32>
    %26 = arith.mulf %21, %25 : vector<16x16x1xf32>
    %27 = vector.broadcast %26 : vector<16x16x1xf32> to vector<16x16x256xf32>
    %28 = arith.mulf %8, %27 : vector<16x16x256xf32>
    %cst_12 = arith.constant dense<0.000000e+00> : vector<16x256xf32>
    %29 = vector.multi_reduction <add>, %28, %cst_12 [1] : vector<16x16x256xf32> to vector<16x256xf32>
    %30 = arith.truncf %11 : vector<16x256xf32> to vector<16x256xbf16>
    %cst_13 = arith.constant dense<0.000000e+00> : vector<16x256xf32>
    %31 = tpu.matmul %30, %2, %cst_13 {dimension_numbers = #tpu.dot_dimension_numbers<[1], [0], [0], [1], [0, 0, 1, 1], [], []>} : vector<16x256xbf16>, vector<256x256xbf16>, vector<16x256xf32> -> vector<16x256xf32>
    %32 = arith.addf %31, %29 : vector<16x256xf32>
    %33 = vector.shape_cast %32 : vector<16x256xf32> to vector<16x1x256xf32>
    %34 = vector.broadcast %33 : vector<16x1x256xf32> to vector<16x16x256xf32>
    %35 = arith.mulf %6, %34 : vector<16x16x256xf32>
    %cst_14 = arith.constant dense<0.000000e+00> : vector<16x16xf32>
    %36 = vector.multi_reduction <add>, %35, %cst_14 [2] : vector<16x16x256xf32> to vector<16x16xf32>
    %37 = vector.shape_cast %36 : vector<16x16xf32> to vector<16x16x1xf32>
    %cst_15 = arith.constant dense<0xFF800000> : vector<16x1xf32>
    %38 = vector.multi_reduction <maximumf>, %37, %cst_15 [1] : vector<16x16x1xf32> to vector<16x1xf32>
    %39 = vector.shape_cast %38 : vector<16x1xf32> to vector<16x1x1xf32>
    %40 = vector.broadcast %39 : vector<16x1x1xf32> to vector<16x16x1xf32>
    %41 = arith.subf %37, %40 : vector<16x16x1xf32>
    %42 = math.exp %41 : vector<16x16x1xf32>
    %cst_16 = arith.constant dense<0.000000e+00> : vector<16x1xf32>
    %43 = vector.multi_reduction <add>, %42, %cst_16 [1] : vector<16x16x1xf32> to vector<16x1xf32>
    %44 = vector.shape_cast %43 : vector<16x1xf32> to vector<16x1x1xf32>
    %45 = tpu.reciprocal %44 {approx = true} : vector<16x1x1xf32> -> vector<16x1x1xf32>
    %46 = vector.broadcast %45 : vector<16x1x1xf32> to vector<16x16x1xf32>
    %47 = arith.mulf %42, %46 : vector<16x16x1xf32>
    %48 = vector.broadcast %47 : vector<16x16x1xf32> to vector<16x16x256xf32>
    %49 = arith.mulf %8, %48 : vector<16x16x256xf32>
    %cst_17 = arith.constant dense<0.000000e+00> : vector<16x256xf32>
    %50 = vector.multi_reduction <add>, %49, %cst_17 [1] : vector<16x16x256xf32> to vector<16x256xf32>
    %51 = arith.truncf %32 : vector<16x256xf32> to vector<16x256xbf16>
    %cst_18 = arith.constant dense<0.000000e+00> : vector<16x256xf32>
    %52 = tpu.matmul %51, %2, %cst_18 {dimension_numbers = #tpu.dot_dimension_numbers<[1], [0], [0], [1], [0, 0, 1, 1], [], []>} : vector<16x256xbf16>, vector<256x256xbf16>, vector<16x256xf32> -> vector<16x256xf32>
    %53 = arith.addf %52, %50 : vector<16x256xf32>
    %54 = vector.shape_cast %53 : vector<16x256xf32> to vector<16x1x256xf32>
    %55 = vector.broadcast %54 : vector<16x1x256xf32> to vector<16x16x256xf32>
    %56 = arith.mulf %6, %55 : vector<16x16x256xf32>
    %cst_19 = arith.constant dense<0.000000e+00> : vector<16x16xf32>
    %57 = vector.multi_reduction <add>, %56, %cst_19 [2] : vector<16x16x256xf32> to vector<16x16xf32>
    %58 = vector.shape_cast %57 : vector<16x16xf32> to vector<16x16x1xf32>
    %cst_20 = arith.constant dense<0xFF800000> : vector<16x1xf32>
    %59 = vector.multi_reduction <maximumf>, %58, %cst_20 [1] : vector<16x16x1xf32> to vector<16x1xf32>
    %60 = vector.shape_cast %59 : vector<16x1xf32> to vector<16x1x1xf32>
    %61 = vector.broadcast %60 : vector<16x1x1xf32> to vector<16x16x1xf32>
    %62 = arith.subf %58, %61 : vector<16x16x1xf32>
    %63 = math.exp %62 : vector<16x16x1xf32>
    %cst_21 = arith.constant dense<0.000000e+00> : vector<16x1xf32>
    %64 = vector.multi_reduction <add>, %63, %cst_21 [1] : vector<16x16x1xf32> to vector<16x1xf32>
    %65 = vector.shape_cast %64 : vector<16x1xf32> to vector<16x1x1xf32>
    %66 = tpu.reciprocal %65 {approx = true} : vector<16x1x1xf32> -> vector<16x1x1xf32>
    %67 = vector.broadcast %66 : vector<16x1x1xf32> to vector<16x16x1xf32>
    %68 = arith.mulf %63, %67 : vector<16x16x1xf32>
    %69 = vector.broadcast %68 : vector<16x16x1xf32> to vector<16x16x256xf32>
    %70 = arith.mulf %8, %69 : vector<16x16x256xf32>
    %cst_22 = arith.constant dense<0.000000e+00> : vector<16x256xf32>
    %71 = vector.multi_reduction <add>, %70, %cst_22 [1] : vector<16x16x256xf32> to vector<16x256xf32>
    %72 = arith.truncf %53 : vector<16x256xf32> to vector<16x256xbf16>
    %cst_23 = arith.constant dense<0.000000e+00> : vector<16x256xf32>
    %73 = tpu.matmul %72, %2, %cst_23 {dimension_numbers = #tpu.dot_dimension_numbers<[1], [0], [0], [1], [0, 0, 1, 1], [], []>} : vector<16x256xbf16>, vector<256x256xbf16>, vector<16x256xf32> -> vector<16x256xf32>
    %74 = arith.addf %73, %71 : vector<16x256xf32>
    %75 = arith.truncf %74 : vector<16x256xf32> to vector<16x256xbf16>
    %cst_24 = arith.constant dense<0.000000e+00> : vector<16x384xf32>
    %76 = tpu.matmul %75, %3, %cst_24 {dimension_numbers = #tpu.dot_dimension_numbers<[1], [0], [0], [1], [0, 0, 1, 1], [], []>} : vector<16x256xbf16>, vector<256x384xbf16>, vector<16x384xf32> -> vector<16x384xf32>
    %77 = arith.truncf %76 : vector<16x384xf32> to vector<16x384xbf16>
    %c0_25 = arith.constant 0 : index
    %c0_26 = arith.constant 0 : index
    %78 = vector.load %arg6[%c0_25, %c0_26] : memref<16x384xbf16, #tpu.memory_space<vmem>>, vector<16x384xbf16>
    tpu.vector_store %arg6[%c0_25, %c0_26], %77 {strides = array<i32>} : memref<16x384xbf16, #tpu.memory_space<vmem>>, vector<16x384xbf16>,
    return
  }
  func.func @transform_0(%arg0: i32) -> (i32, i32) {
    %c0_i32 = arith.constant 0 : i32
    %c0_i32_0 = arith.constant 0 : i32
    return %arg0, %c0_i32 : i32, i32
  }
  func.func @transform_1(%arg0: i32) -> (i32, i32) {
    %c0_i32 = arith.constant 0 : i32
    %c0_i32_0 = arith.constant 0 : i32
    %c0_i32_1 = arith.constant 0 : i32
    return %c0_i32, %c0_i32_0 : i32, i32
  }
  func.func @transform_2(%arg0: i32) -> (i32, i32) {
    %c0_i32 = arith.constant 0 : i32
    %c0_i32_0 = arith.constant 0 : i32
    %c0_i32_1 = arith.constant 0 : i32
    return %c0_i32, %c0_i32_0 : i32, i32
  }
  func.func @transform_3(%arg0: i32) -> (i32, i32) {
    %c0_i32 = arith.constant 0 : i32
    %c0_i32_0 = arith.constant 0 : i32
    %c0_i32_1 = arith.constant 0 : i32
    return %c0_i32, %c0_i32_0 : i32, i32
  }
  func.func @transform_4(%arg0: i32) -> (i32, i32) {
    %c0_i32 = arith.constant 0 : i32
    %c0_i32_0 = arith.constant 0 : i32
    %c0_i32_1 = arith.constant 0 : i32
    return %c0_i32, %c0_i32_0 : i32, i32
  }
  func.func @transform_5(%arg0: i32) -> (i32, i32) {
    %c0_i32 = arith.constant 0 : i32
    %c0_i32_0 = arith.constant 0 : i32
    return %arg0, %c0_i32 : i32, i32
  }
}

</mosaic_0001>

<llo_original>
// kernel: tpu_custom_call.1
$region0: #{tpu_custom_call.1}
  #allocation0 [shape = 'u32[]', space=smem, size = 0x4, offset = 0x4, fixed_abs, tag = 'smem constant byte address 0x4 - core index']
  #allocation1 [shape = 'u32[144,128]{1,0:T(1,128)}', space=vmem, size = 0x12000, scoped, tag = 'internal scratch']
  %s0 = inlined_call_operand.hbm [shape: bf16[256,128], index: 0, kind: input, shape index: {}]
  %s1 = inlined_call_operand.vmem [shape: f32[1,256], index: 1, kind: input, shape index: {}]
  %s2 = inlined_call_operand.hbm [shape: bf16[128,512], index: 2, kind: input, shape index: {}]
  %s3 = inlined_call_operand.hbm [shape: bf16[256,256], index: 3, kind: input, shape index: {}]
  %s4 = inlined_call_operand.hbm [shape: bf16[256,384], index: 4, kind: input, shape index: {}]
  %s5 = inlined_call_operand.hbm [shape: bf16[16,384], index: 5, kind: output, shape index: {}]
  %s6 = sld [smem:[#allocation0]]
  $region46: #{tpu_custom_call.1} parent=0
    _
  %s8 = ssub.s32 1, %s6
  %s9 = scalar_select 0, %s8, %s6
  $region1: #{tpu_custom_call.1} parent=0
    #allocation2 [shape = 'u8[65536]{0}', space=vmem, size = 0x10000, scoped, tag = 'input window, operand 0, single buffered']
    #allocation3 [shape = 's32[1]{0}', space=sflag, size = 0x4, scoped, tag = 'scoped memory for tpu_custom_call.1']
    #allocation4 [shape = 's32[1]{0}', space=sflag, size = 0x4, scoped, tag = 'scoped memory for tpu_custom_call.1']
    #allocation5 [shape = 'u8[131072]{0}', space=vmem, size = 0x20000, scoped, tag = 'input window, operand 2, single buffered']
    #allocation6 [shape = 's32[1]{0}', space=sflag, size = 0x4, scoped, tag = 'scoped memory for tpu_custom_call.1']
    #allocation7 [shape = 'u8[131072]{0}', space=vmem, size = 0x20000, scoped, tag = 'input window, operand 3, single buffered']
    #allocation8 [shape = 'u8[196608]{0}', space=vmem, size = 0x30000, scoped, tag = 'input window, operand 4, single buffered']
    #allocation9 [shape = 's32[1]{0}', space=sflag, size = 0x4, scoped, tag = 'scoped memory for tpu_custom_call.1']
    #allocation10 [shape = 'u8[12288]{0}', space=vmem, size = 0x3000, scoped, tag = 'output window, operand 0, single buffered']
    %10 = vsyncpa [#allocation3], 0
    %11 = vsyncpa [#allocation6], 0
    %12 = vsyncpa [#allocation9], 0
    %13 = vsyncpa [#allocation4], 0
    // Predicated region
    $region2: #{tpu_custom_call.1} parent=1 // pred_check
      _
    $region3: #{tpu_custom_call.1} parent=1 // pred_check_branch
      %15 = sbr.rel (0) target = $region5
    $region4: #{tpu_custom_call.1} parent=1 // pred_region
      %s17 = ssub.s32 2048, 2048
      %18 = vsyncadd [#allocation3], %s17
      %s19 = sshll.u32 [#allocation2], 4
      %s20 = int_to_ptr.vmem [resolvable:$true] %s19
      %25 = dma.hbm_to_vmem [thread:$0]  %s0, 2048, %s20, [#allocation3], 64, 64, 4
    $region5: #{tpu_custom_call.1} parent=1 // pred_fallthru
      _
    // Predicated region
    $region6: #{tpu_custom_call.1} parent=1 // pred_check
      _
    $region7: #{tpu_custom_call.1} parent=1 // pred_check_branch
      %27 = sbr.rel (0) target = $region9
    $region8: #{tpu_custom_call.1} parent=1 // pred_region
      _
    $region9: #{tpu_custom_call.1} parent=1 // pred_fallthru
      _
    // Predicated region
    $region10: #{tpu_custom_call.1} parent=1 // pred_check
      _
    $region11: #{tpu_custom_call.1} parent=1 // pred_check_branch
      %29 = sbr.rel (0) target = $region13
    $region12: #{tpu_custom_call.1} parent=1 // pred_region
      %s31 = ssub.s32 4096, 4096
      %32 = vsyncadd [#allocation6], %s31
      %s33 = sshll.u32 [#allocation5], 4
      %s34 = int_to_ptr.vmem [resolvable:$true] %s33
      %39 = dma.hbm_to_vmem [thread:$0]  %s2, 4096, %s34, [#allocation6], 256, 256, 16
    $region13: #{tpu_custom_call.1} parent=1 // pred_fallthru
      _
    // Predicated region
    $region14: #{tpu_custom_call.1} parent=1 // pred_check
      _
    $region15: #{tpu_custom_call.1} parent=1 // pred_check_branch
      %41 = sbr.rel (0) target = $region17
    $region16: #{tpu_custom_call.1} parent=1 // pred_region
      %s43 = ssub.s32 4096, 4096
      %44 = vsyncadd [#allocation6], %s43
      %s45 = sshll.u32 [#allocation7], 4
      %s46 = int_to_ptr.vmem [resolvable:$true] %s45
      %51 = dma.hbm_to_vmem [thread:$0]  %s3, 4096, %s46, [#allocation6], 128, 128, 8
    $region17: #{tpu_custom_call.1} parent=1 // pred_fallthru
      _
    // Predicated region
    $region18: #{tpu_custom_call.1} parent=1 // pred_check
      _
    $region19: #{tpu_custom_call.1} parent=1 // pred_check_branch
      %53 = sbr.rel (0) target = $region21
    $region20: #{tpu_custom_call.1} parent=1 // pred_region
      %s55 = ssub.s32 6144, 6144
      %56 = vsyncadd [#allocation9], %s55
      %s57 = sshll.u32 [#allocation8], 4
      %s58 = int_to_ptr.vmem [resolvable:$true] %s57
      %63 = dma.hbm_to_vmem [thread:$0]  %s4, 6144, %s58, [#allocation9], 192, 192, 12
    $region21: #{tpu_custom_call.1} parent=1 // pred_fallthru
      _
    // Predicated region
    $region22: #{tpu_custom_call.1} parent=1 // pred_check
      _
    $region23: #{tpu_custom_call.1} parent=1 // pred_check_branch
      %65 = sbr.rel (0) target = $region25
    $region24: #{tpu_custom_call.1} parent=1 // pred_region
      %66 = dma.done [#allocation3], 2048
    $region25: #{tpu_custom_call.1} parent=1 // pred_fallthru
      _
    // Predicated region
    $region26: #{tpu_custom_call.1} parent=1 // pred_check
      _
    $region27: #{tpu_custom_call.1} parent=1 // pred_check_branch
      %68 = sbr.rel (0) target = $region29
    $region28: #{tpu_custom_call.1} parent=1 // pred_region
      %69 = dma.done [#allocation6], 4096
    $region29: #{tpu_custom_call.1} parent=1 // pred_fallthru
      _
    // Predicated region
    $region30: #{tpu_custom_call.1} parent=1 // pred_check
      _
    $region31: #{tpu_custom_call.1} parent=1 // pred_check_branch
      %71 = sbr.rel (0) target = $region33
    $region32: #{tpu_custom_call.1} parent=1 // pred_region
      %72 = dma.done [#allocation6], 4096
    $region33: #{tpu_custom_call.1} parent=1 // pred_fallthru
      _
    // Predicated region
    $region34: #{tpu_custom_call.1} parent=1 // pred_check
      _
    $region35: #{tpu_custom_call.1} parent=1 // pred_check_branch
      %74 = sbr.rel (0) target = $region37
    $region36: #{tpu_custom_call.1} parent=1 // pred_region
      %75 = dma.done [#allocation9], 6144
    $region37: #{tpu_custom_call.1} parent=1 // pred_fallthru
      _
    %v77 = vld [vmem:[#allocation2] sm:$0xf]
    %v78 = vld [vmem:[#allocation2 + $0x4] sm:$0xf]
    %v79 = vld [vmem:[#allocation2 + $0x8] sm:$0xf]
    %v80 = vld [vmem:[#allocation2 + $0xc] sm:$0xf]
    %v81 = vld [vmem:[#allocation2 + $0x10] sm:$0xf]
    %v82 = vld [vmem:[#allocation2 + $0x14] sm:$0xf]
    %v83 = vld [vmem:[#allocation2 + $0x18] sm:$0xf]
    %v84 = vld [vmem:[#allocation2 + $0x1c] sm:$0xf]
    %v85 = vld [vmem:[#allocation2 + $0x20] sm:$0xf]
    %v86 = vld [vmem:[#allocation2 + $0x24] sm:$0xf]
    %v87 = vld [vmem:[#allocation2 + $0x28] sm:$0xf]
    %v88 = vld [vmem:[#allocation2 + $0x2c] sm:$0xf]
    %v89 = vld [vmem:[#allocation2 + $0x30] sm:$0xf]
    %v90 = vld [vmem:[#allocation2 + $0x34] sm:$0xf]
    %v91 = vld [vmem:[#allocation2 + $0x38] sm:$0xf]
    %v92 = vld [vmem:[#allocation2 + $0x3c] sm:$0xf]
    %v93 = vld [vmem:[#allocation2 + $0x40] sm:$0xf]
    %v94 = vld [vmem:[#allocation2 + $0x44] sm:$0xf]
    %v95 = vld [vmem:[#allocation2 + $0x48] sm:$0xf]
    %v96 = vld [vmem:[#allocation2 + $0x4c] sm:$0xf]
    %v97 = vld [vmem:[#allocation2 + $0x50] sm:$0xf]
    %v98 = vld [vmem:[#allocation2 + $0x54] sm:$0xf]
    %v99 = vld [vmem:[#allocation2 + $0x58] sm:$0xf]
    %v100 = vld [vmem:[#allocation2 + $0x5c] sm:$0xf]
    %v101 = vld [vmem:[#allocation2 + $0x60] sm:$0xf]
    %v102 = vld [vmem:[#allocation2 + $0x64] sm:$0xf]
    %v103 = vld [vmem:[#allocation2 + $0x68] sm:$0xf]
    %v104 = vld [vmem:[#allocation2 + $0x6c] sm:$0xf]
    %v105 = vld [vmem:[#allocation2 + $0x70] sm:$0xf]
    %v106 = vld [vmem:[#allocation2 + $0x74] sm:$0xf]
    %v107 = vld [vmem:[#allocation2 + $0x78] sm:$0xf]
    %v108 = vld [vmem:[#allocation2 + $0x7c] sm:$0xf]
    %v109 = vld [vmem:[#allocation5] sm:$0xff]
    %v110 = vld [vmem:[#allocation5 + $0x8] sm:$0xff]
    %v111 = vld [vmem:[#allocation5 + $0x10] sm:$0xff]
    %v112 = vld [vmem:[#allocation5 + $0x18] sm:$0xff]
    %v113 = vld [vmem:[#allocation5 + $0x20] sm:$0xff]
    %v114 = vld [vmem:[#allocation5 + $0x28] sm:$0xff]
    %v115 = vld [vmem:[#allocation5 + $0x30] sm:$0xff]
    %v116 = vld [vmem:[#allocation5 + $0x38] sm:$0xff]
    %v117 = vld [vmem:[#allocation5 + $0x40] sm:$0xff]
    %v118 = vld [vmem:[#allocation5 + $0x48] sm:$0xff]
    %v119 = vld [vmem:[#allocation5 + $0x50] sm:$0xff]
    %v120 = vld [vmem:[#allocation5 + $0x58] sm:$0xff]
    %v121 = vld [vmem:[#allocation5 + $0x60] sm:$0xff]
    %v122 = vld [vmem:[#allocation5 + $0x68] sm:$0xff]
    %v123 = vld [vmem:[#allocation5 + $0x70] sm:$0xff]
    %v124 = vld [vmem:[#allocation5 + $0x78] sm:$0xff]
    %v125 = vld [vmem:[#allocation5 + $0x80] sm:$0xff]
    %v126 = vld [vmem:[#allocation5 + $0x88] sm:$0xff]
    %v127 = vld [vmem:[#allocation5 + $0x90] sm:$0xff]
    %v128 = vld [vmem:[#allocation5 + $0x98] sm:$0xff]
    %v129 = vld [vmem:[#allocation5 + $0xa0] sm:$0xff]
    %v130 = vld [vmem:[#allocation5 + $0xa8] sm:$0xff]
    %v131 = vld [vmem:[#allocation5 + $0xb0] sm:$0xff]
    %v132 = vld [vmem:[#allocation5 + $0xb8] sm:$0xff]
    %v133 = vld [vmem:[#allocation5 + $0xc0] sm:$0xff]
    %v134 = vld [vmem:[#allocation5 + $0xc8] sm:$0xff]
    %v135 = vld [vmem:[#allocation5 + $0xd0] sm:$0xff]
    %v136 = vld [vmem:[#allocation5 + $0xd8] sm:$0xff]
    %v137 = vld [vmem:[#allocation5 + $0xe0] sm:$0xff]
    %v138 = vld [vmem:[#allocation5 + $0xe8] sm:$0xff]
    %v139 = vld [vmem:[#allocation5 + $0xf0] sm:$0xff]
    %v140 = vld [vmem:[#allocation5 + $0xf8] sm:$0xff]
    %v141 = vld [vmem:[#allocation7] sm:$0xff]
    %v142 = vld [vmem:[#allocation7 + $0x8] sm:$0xff]
    %v143 = vld [vmem:[#allocation7 + $0x10] sm:$0xff]
    %v144 = vld [vmem:[#allocation7 + $0x18] sm:$0xff]
    %v145 = vld [vmem:[#allocation7 + $0x20] sm:$0xff]
    %v146 = vld [vmem:[#allocation7 + $0x28] sm:$0xff]
    %v147 = vld [vmem:[#allocation7 + $0x30] sm:$0xff]
    %v148 = vld [vmem:[#allocation7 + $0x38] sm:$0xff]
    %v149 = vld [vmem:[#allocation7 + $0x40] sm:$0xff]
    %v150 = vld [vmem:[#allocation7 + $0x48] sm:$0xff]
    %v151 = vld [vmem:[#allocation7 + $0x50] sm:$0xff]
    %v152 = vld [vmem:[#allocation7 + $0x58] sm:$0xff]
    %v153 = vld [vmem:[#allocation7 + $0x60] sm:$0xff]
    %v154 = vld [vmem:[#allocation7 + $0x68] sm:$0xff]
    %v155 = vld [vmem:[#allocation7 + $0x70] sm:$0xff]
    %v156 = vld [vmem:[#allocation7 + $0x78] sm:$0xff]
    %v157 = vld [vmem:[#allocation7 + $0x80] sm:$0xff]
    %v158 = vld [vmem:[#allocation7 + $0x88] sm:$0xff]
    %v159 = vld [vmem:[#allocation7 + $0x90] sm:$0xff]
    %v160 = vld [vmem:[#allocation7 + $0x98] sm:$0xff]
    %v161 = vld [vmem:[#allocation7 + $0xa0] sm:$0xff]
    %v162 = vld [vmem:[#allocation7 + $0xa8] sm:$0xff]
    %v163 = vld [vmem:[#allocation7 + $0xb0] sm:$0xff]
    %v164 = vld [vmem:[#allocation7 + $0xb8] sm:$0xff]
    %v165 = vld [vmem:[#allocation7 + $0xc0] sm:$0xff]
    %v166 = vld [vmem:[#allocation7 + $0xc8] sm:$0xff]
    %v167 = vld [vmem:[#allocation7 + $0xd0] sm:$0xff]
    %v168 = vld [vmem:[#allocation7 + $0xd8] sm:$0xff]
    %v169 = vld [vmem:[#allocation7 + $0xe0] sm:$0xff]
    %v170 = vld [vmem:[#allocation7 + $0xe8] sm:$0xff]
    %v171 = vld [vmem:[#allocation7 + $0xf0] sm:$0xff]
    %v172 = vld [vmem:[#allocation7 + $0xf8] sm:$0xff]
    %v173 = vld [vmem:[#allocation8] sm:$0xff]
    %v174 = vld [vmem:[#allocation8 + $0x8] sm:$0xf]
    %v175 = vld [vmem:[#allocation8 + $0xc] sm:$0xff]
    %v176 = vld [vmem:[#allocation8 + $0x14] sm:$0xf]
    %v177 = vld [vmem:[#allocation8 + $0x18] sm:$0xff]
    %v178 = vld [vmem:[#allocation8 + $0x20] sm:$0xf]
    %v179 = vld [vmem:[#allocation8 + $0x24] sm:$0xff]
    %v180 = vld [vmem:[#allocation8 + $0x2c] sm:$0xf]
    %v181 = vld [vmem:[#allocation8 + $0x30] sm:$0xff]
    %v182 = vld [vmem:[#allocation8 + $0x38] sm:$0xf]
    %v183 = vld [vmem:[#allocation8 + $0x3c] sm:$0xff]
    %v184 = vld [vmem:[#allocation8 + $0x44] sm:$0xf]
    %v185 = vld [vmem:[#allocation8 + $0x48] sm:$0xff]
    %v186 = vld [vmem:[#allocation8 + $0x50] sm:$0xf]
    %v187 = vld [vmem:[#allocation8 + $0x54] sm:$0xff]
    %v188 = vld [vmem:[#allocation8 + $0x5c] sm:$0xf]
    %v189 = vld [vmem:[#allocation8 + $0x60] sm:$0xff]
    %v190 = vld [vmem:[#allocation8 + $0x68] sm:$0xf]
    %v191 = vld [vmem:[#allocation8 + $0x6c] sm:$0xff]
    %v192 = vld [vmem:[#allocation8 + $0x74] sm:$0xf]
    %v193 = vld [vmem:[#allocation8 + $0x78] sm:$0xff]
    %v194 = vld [vmem:[#allocation8 + $0x80] sm:$0xf]
    %v195 = vld [vmem:[#allocation8 + $0x84] sm:$0xff]
    %v196 = vld [vmem:[#allocation8 + $0x8c] sm:$0xf]
    %v197 = vld [vmem:[#allocation8 + $0x90] sm:$0xff]
    %v198 = vld [vmem:[#allocation8 + $0x98] sm:$0xf]
    %v199 = vld [vmem:[#allocation8 + $0x9c] sm:$0xff]
    %v200 = vld [vmem:[#allocation8 + $0xa4] sm:$0xf]
    %v201 = vld [vmem:[#allocation8 + $0xa8] sm:$0xff]
    %v202 = vld [vmem:[#allocation8 + $0xb0] sm:$0xf]
    %v203 = vld [vmem:[#allocation8 + $0xb4] sm:$0xff]
    %v204 = vld [vmem:[#allocation8 + $0xbc] sm:$0xf]
    %v205 = vld [vmem:[#allocation8 + $0xc0] sm:$0xff]
    %v206 = vld [vmem:[#allocation8 + $0xc8] sm:$0xf]
    %v207 = vld [vmem:[#allocation8 + $0xcc] sm:$0xff]
    %v208 = vld [vmem:[#allocation8 + $0xd4] sm:$0xf]
    %v209 = vld [vmem:[#allocation8 + $0xd8] sm:$0xff]
    %v210 = vld [vmem:[#allocation8 + $0xe0] sm:$0xf]
    %v211 = vld [vmem:[#allocation8 + $0xe4] sm:$0xff]
    %v212 = vld [vmem:[#allocation8 + $0xec] sm:$0xf]
    %v213 = vld [vmem:[#allocation8 + $0xf0] sm:$0xff]
    %v214 = vld [vmem:[#allocation8 + $0xf8] sm:$0xf]
    %v215 = vld [vmem:[#allocation8 + $0xfc] sm:$0xff]
    %v216 = vld [vmem:[#allocation8 + $0x104] sm:$0xf]
    %v217 = vld [vmem:[#allocation8 + $0x108] sm:$0xff]
    %v218 = vld [vmem:[#allocation8 + $0x110] sm:$0xf]
    %v219 = vld [vmem:[#allocation8 + $0x114] sm:$0xff]
    %v220 = vld [vmem:[#allocation8 + $0x11c] sm:$0xf]
    %v221 = vld [vmem:[#allocation8 + $0x120] sm:$0xff]
    %v222 = vld [vmem:[#allocation8 + $0x128] sm:$0xf]
    %v223 = vld [vmem:[#allocation8 + $0x12c] sm:$0xff]
    %v224 = vld [vmem:[#allocation8 + $0x134] sm:$0xf]
    %v225 = vld [vmem:[#allocation8 + $0x138] sm:$0xff]
    %v226 = vld [vmem:[#allocation8 + $0x140] sm:$0xf]
    %v227 = vld [vmem:[#allocation8 + $0x144] sm:$0xff]
    %v228 = vld [vmem:[#allocation8 + $0x14c] sm:$0xf]
    %v229 = vld [vmem:[#allocation8 + $0x150] sm:$0xff]
    %v230 = vld [vmem:[#allocation8 + $0x158] sm:$0xf]
    %v231 = vld [vmem:[#allocation8 + $0x15c] sm:$0xff]
    %v232 = vld [vmem:[#allocation8 + $0x164] sm:$0xf]
    %v233 = vld [vmem:[#allocation8 + $0x168] sm:$0xff]
    %v234 = vld [vmem:[#allocation8 + $0x170] sm:$0xf]
    %v235 = vld [vmem:[#allocation8 + $0x174] sm:$0xff]
    %v236 = vld [vmem:[#allocation8 + $0x17c] sm:$0xf]
    %v269 = vunpack.c.l.b16 %v77
    %v270 = vunpack.c.l.b16 %v78
    %v271 = vunpack.c.l.b16 %v79
    %v272 = vunpack.c.l.b16 %v80
    %v273 = vunpack.c.l.b16 %v81
    %v274 = vunpack.c.l.b16 %v82
    %v275 = vunpack.c.l.b16 %v83
    %v276 = vunpack.c.l.b16 %v84
    %v277 = vunpack.c.l.b16 %v85
    %v278 = vunpack.c.l.b16 %v86
    %v279 = vunpack.c.l.b16 %v87
    %v280 = vunpack.c.l.b16 %v88
    %v281 = vunpack.c.l.b16 %v89
    %v282 = vunpack.c.l.b16 %v90
    %v283 = vunpack.c.l.b16 %v91
    %v284 = vunpack.c.l.b16 %v92
    %v285 = vunpack.c.l.b16 %v93
    %v286 = vunpack.c.l.b16 %v94
    %v287 = vunpack.c.l.b16 %v95
    %v288 = vunpack.c.l.b16 %v96
    %v289 = vunpack.c.l.b16 %v97
    %v290 = vunpack.c.l.b16 %v98
    %v291 = vunpack.c.l.b16 %v99
    %v292 = vunpack.c.l.b16 %v100
    %v293 = vunpack.c.l.b16 %v101
    %v294 = vunpack.c.l.b16 %v102
    %v295 = vunpack.c.l.b16 %v103
    %v296 = vunpack.c.l.b16 %v104
    %v297 = vunpack.c.l.b16 %v105
    %v298 = vunpack.c.l.b16 %v106
    %v299 = vunpack.c.l.b16 %v107
    %v300 = vunpack.c.l.b16 %v108
    %v301 = vpack.c.b16 %v270, %v269
    %v302 = vpack.c.b16 %v272, %v271
    %v303 = vpack.c.b16 %v274, %v273
    %v304 = vpack.c.b16 %v276, %v275
    %v305 = vpack.c.b16 %v278, %v277
    %v306 = vpack.c.b16 %v280, %v279
    %v307 = vpack.c.b16 %v282, %v281
    %v308 = vpack.c.b16 %v284, %v283
    %v309 = vpack.c.b16 %v286, %v285
    %v310 = vpack.c.b16 %v288, %v287
    %v311 = vpack.c.b16 %v290, %v289
    %v312 = vpack.c.b16 %v292, %v291
    %v313 = vpack.c.b16 %v294, %v293
    %v314 = vpack.c.b16 %v296, %v295
    %v315 = vpack.c.b16 %v298, %v297
    %v316 = vpack.c.b16 %v300, %v299
    %v365 = vunpack.c.l.b16 %v109
    %v366 = vunpack.c.h.b16 %v109
    %v367 = vunpack.c.l.b16 %v110
    %v368 = vunpack.c.h.b16 %v110
    %v369 = vunpack.c.l.b16 %v111
    %v370 = vunpack.c.h.b16 %v111
    %v371 = vunpack.c.l.b16 %v112
    %v372 = vunpack.c.h.b16 %v112
    %v373 = vunpack.c.l.b16 %v113
    %v374 = vunpack.c.h.b16 %v113
    %v375 = vunpack.c.l.b16 %v114
    %v376 = vunpack.c.h.b16 %v114
    %v377 = vunpack.c.l.b16 %v115
    %v378 = vunpack.c.h.b16 %v115
    %v379 = vunpack.c.l.b16 %v116
    %v380 = vunpack.c.h.b16 %v116
    %v381 = vunpack.c.l.b16 %v117
    %v382 = vunpack.c.h.b16 %v117
    %v383 = vunpack.c.l.b16 %v118
    %v384 = vunpack.c.h.b16 %v118
    %v385 = vunpack.c.l.b16 %v119
    %v386 = vunpack.c.h.b16 %v119
    %v387 = vunpack.c.l.b16 %v120
    %v388 = vunpack.c.h.b16 %v120
    %v389 = vunpack.c.l.b16 %v121
    %v390 = vunpack.c.h.b16 %v121
    %v391 = vunpack.c.l.b16 %v122
    %v392 = vunpack.c.h.b16 %v122
    %v393 = vunpack.c.l.b16 %v123
    %v394 = vunpack.c.h.b16 %v123
    %v395 = vunpack.c.l.b16 %v124
    %v396 = vunpack.c.h.b16 %v124
    %v397 = vunpack.c.l.b16 %v125
    %v398 = vunpack.c.h.b16 %v125
    %v399 = vunpack.c.l.b16 %v126
    %v400 = vunpack.c.h.b16 %v126
    %v401 = vunpack.c.l.b16 %v127
    %v402 = vunpack.c.h.b16 %v127
    %v403 = vunpack.c.l.b16 %v128
    %v404 = vunpack.c.h.b16 %v128
    %v405 = vunpack.c.l.b16 %v129
    %v406 = vunpack.c.h.b16 %v129
    %v407 = vunpack.c.l.b16 %v130
    %v408 = vunpack.c.h.b16 %v130
    %v409 = vunpack.c.l.b16 %v131
    %v410 = vunpack.c.h.b16 %v131
    %v411 = vunpack.c.l.b16 %v132
    %v412 = vunpack.c.h.b16 %v132
    %v413 = vunpack.c.l.b16 %v133
    %v414 = vunpack.c.h.b16 %v133
    %v415 = vunpack.c.l.b16 %v134
    %v416 = vunpack.c.h.b16 %v134
    %v417 = vunpack.c.l.b16 %v135
    %v418 = vunpack.c.h.b16 %v135
    %v419 = vunpack.c.l.b16 %v136
    %v420 = vunpack.c.h.b16 %v136
    %v421 = vunpack.c.l.b16 %v137
    %v422 = vunpack.c.h.b16 %v137
    %v423 = vunpack.c.l.b16 %v138
    %v424 = vunpack.c.h.b16 %v138
    %v425 = vunpack.c.l.b16 %v139
    %v426 = vunpack.c.h.b16 %v139
    %v427 = vunpack.c.l.b16 %v140
    %v428 = vunpack.c.h.b16 %v140
    %v429 = vpack.c.b16 %v369, %v365
    %v430 = vpack.c.b16 %v370, %v366
    %v431 = vpack.c.b16 %v371, %v367
    %v432 = vpack.c.b16 %v372, %v368
    %v433 = vpack.c.b16 %v377, %v373
    %v434 = vpack.c.b16 %v378, %v374
    %v435 = vpack.c.b16 %v379, %v375
    %v436 = vpack.c.b16 %v380, %v376
    %v437 = vpack.c.b16 %v385, %v381
    %v438 = vpack.c.b16 %v386, %v382
    %v439 = vpack.c.b16 %v387, %v383
    %v440 = vpack.c.b16 %v388, %v384
    %v441 = vpack.c.b16 %v393, %v389
    %v442 = vpack.c.b16 %v394, %v390
    %v443 = vpack.c.b16 %v395, %v391
    %v444 = vpack.c.b16 %v396, %v392
    %v445 = vpack.c.b16 %v401, %v397
    %v446 = vpack.c.b16 %v402, %v398
    %v447 = vpack.c.b16 %v403, %v399
    %v448 = vpack.c.b16 %v404, %v400
    %v449 = vpack.c.b16 %v409, %v405
    %v450 = vpack.c.b16 %v410, %v406
    %v451 = vpack.c.b16 %v411, %v407
    %v452 = vpack.c.b16 %v412, %v408
    %v453 = vpack.c.b16 %v417, %v413
    %v454 = vpack.c.b16 %v418, %v414
    %v455 = vpack.c.b16 %v419, %v415
    %v456 = vpack.c.b16 %v420, %v416
    %v457 = vpack.c.b16 %v425, %v421
    %v458 = vpack.c.b16 %v426, %v422
    %v459 = vpack.c.b16 %v427, %v423
    %v460 = vpack.c.b16 %v428, %v424
    %493 = vmatprep.subr.bf16.mxu0 %v430
    %494 = vmatpush1.bf16.msra.mxu0 %v429
    %495 = vmatprep.subr.bf16.mxu0 %v434
    %496 = vmatpush1.bf16.msra.mxu0 %v433
    %497 = vmatprep.subr.bf16.mxu0 %v438
    %498 = vmatpush1.bf16.msra.mxu0 %v437
    %499 = vmatprep.subr.bf16.mxu0 %v442
    %500 = vmatpush1.bf16.msra.mxu0 %v441
    %501 = vmatprep.subr.bf16.mxu0 %v446
    %502 = vmatpush1.bf16.msra.mxu0 %v445
    %503 = vmatprep.subr.bf16.mxu0 %v450
    %504 = vmatpush1.bf16.msra.mxu0 %v449
    %505 = vmatprep.subr.bf16.mxu0 %v454
    %506 = vmatpush1.bf16.msra.mxu0 %v453
    %507 = vmatprep.subr.bf16.mxu0 %v458
    %508 = vmatpush1.bf16.msra.mxu0 %v457
    %509 = vmatprep.subr.bf16.mxu0 0
    %510 = vmatpush1.bf16.msra.mxu0 0
    %511 = vmatprep.subr.bf16.mxu0 0
    %512 = vmatpush1.bf16.msra.mxu0 0
    %513 = vmatprep.subr.bf16.mxu0 0
    %514 = vmatpush1.bf16.msra.mxu0 0
    %515 = vmatprep.subr.bf16.mxu0 0
    %516 = vmatpush1.bf16.msra.mxu0 0
    %517 = vmatprep.subr.bf16.mxu0 0
    %518 = vmatpush1.bf16.msra.mxu0 0
    %519 = vmatprep.subr.bf16.mxu0 0
    %520 = vmatpush1.bf16.msra.mxu0 0
    %521 = vmatprep.subr.bf16.mxu0 0
    %522 = vmatpush1.bf16.msra.mxu0 0
    %523 = vmatprep.subr.bf16.mxu0 0
    %524 = vmatpush1.bf16.msra.mxu0 0
    %525 = vmatprep.mubr.bf16.mxu0 0
    %526 = vmatmul.mubr.bf16.gmra.mrb[0].mxu0 %v301
    %v527 = vpop.f32.mrb[0].mxu0
    %v528 = vadd.f32 0.0, %v527
    %v529 = vpop.f32.mrb[0].mxu0
    %v530 = vadd.f32 0.0, %v529
    %v531 = vpop.f32.mrb[0].mxu0
    %v532 = vadd.f32 0.0, %v531
    %v533 = vpop.f32.mrb[0].mxu0
    %v534 = vadd.f32 0.0, %v533
    %535 = vmatprep.mubr.bf16.mxu0 0
    %536 = vmatmul.mubr.bf16.gmra.mrb[0].mxu0 %v302
    %v537 = vpop.f32.mrb[0].mxu0
    %v538 = vadd.f32 0.0, %v537
    %v539 = vpop.f32.mrb[0].mxu0
    %v540 = vadd.f32 0.0, %v539
    %v541 = vpop.f32.mrb[0].mxu0
    %v542 = vadd.f32 0.0, %v541
    %v543 = vpop.f32.mrb[0].mxu0
    %v544 = vadd.f32 0.0, %v543
    %545 = vmatprep.mubr.bf16.mxu0 0
    %546 = vmatmul.mubr.bf16.gmra.mrb[0].mxu0 %v303
    %v547 = vpop.f32.mrb[0].mxu0
    %v548 = vadd.f32 0.0, %v547
    %v549 = vpop.f32.mrb[0].mxu0
    %v550 = vadd.f32 0.0, %v549
    %v551 = vpop.f32.mrb[0].mxu0
    %v552 = vadd.f32 0.0, %v551
    %v553 = vpop.f32.mrb[0].mxu0
    %v554 = vadd.f32 0.0, %v553
    %555 = vmatprep.mubr.bf16.mxu0 0
    %556 = vmatmul.mubr.bf16.gmra.mrb[0].mxu0 %v304
    %v557 = vpop.f32.mrb[0].mxu0
    %v558 = vadd.f32 0.0, %v557
    %v559 = vpop.f32.mrb[0].mxu0
    %v560 = vadd.f32 0.0, %v559
    %v561 = vpop.f32.mrb[0].mxu0
    %v562 = vadd.f32 0.0, %v561
    %v563 = vpop.f32.mrb[0].mxu0
    %v564 = vadd.f32 0.0, %v563
    %565 = vmatprep.mubr.bf16.mxu0 0
    %566 = vmatmul.mubr.bf16.gmra.mrb[0].mxu0 %v305
    %v567 = vpop.f32.mrb[0].mxu0
    %v568 = vadd.f32 0.0, %v567
    %v569 = vpop.f32.mrb[0].mxu0
    %v570 = vadd.f32 0.0, %v569
    %v571 = vpop.f32.mrb[0].mxu0
    %v572 = vadd.f32 0.0, %v571
    %v573 = vpop.f32.mrb[0].mxu0
    %v574 = vadd.f32 0.0, %v573
    %575 = vmatprep.mubr.bf16.mxu0 0
    %576 = vmatmul.mubr.bf16.gmra.mrb[0].mxu0 %v306
    %v577 = vpop.f32.mrb[0].mxu0
    %v578 = vadd.f32 0.0, %v577
    %v579 = vpop.f32.mrb[0].mxu0
    %v580 = vadd.f32 0.0, %v579
    %v581 = vpop.f32.mrb[0].mxu0
    %v582 = vadd.f32 0.0, %v581
    %v583 = vpop.f32.mrb[0].mxu0
    %v584 = vadd.f32 0.0, %v583
    %585 = vmatprep.mubr.bf16.mxu0 0
    %586 = vmatmul.mubr.bf16.gmra.mrb[0].mxu0 %v307
    %v587 = vpop.f32.mrb[0].mxu0
    %v588 = vadd.f32 0.0, %v587
    %v589 = vpop.f32.mrb[0].mxu0
    %v590 = vadd.f32 0.0, %v589
    %v591 = vpop.f32.mrb[0].mxu0
    %v592 = vadd.f32 0.0, %v591
    %v593 = vpop.f32.mrb[0].mxu0
    %v594 = vadd.f32 0.0, %v593
    %595 = vmatprep.mubr.bf16.mxu0 0
    %596 = vmatmul.mubr.bf16.gmra.mrb[0].mxu0 %v308
    %v597 = vpop.f32.mrb[0].mxu0
    %v598 = vadd.f32 0.0, %v597
    %v599 = vpop.f32.mrb[0].mxu0
    %v600 = vadd.f32 0.0, %v599
    %v601 = vpop.f32.mrb[0].mxu0
    %v602 = vadd.f32 0.0, %v601
    %v603 = vpop.f32.mrb[0].mxu0
    %v604 = vadd.f32 0.0, %v603
    %605 = vmatprep.mubr.bf16.mxu0 0
    %606 = vmatmul.mubr.bf16.gmra.mrb[0].mxu0 %v309
    %v607 = vpop.f32.mrb[0].mxu0
    %v608 = vadd.f32 0.0, %v607
    %v609 = vpop.f32.mrb[0].mxu0
    %v610 = vadd.f32 0.0, %v609
    %v611 = vpop.f32.mrb[0].mxu0
    %v612 = vadd.f32 0.0, %v611
    %v613 = vpop.f32.mrb[0].mxu0
    %v614 = vadd.f32 0.0, %v613
    %615 = vmatprep.mubr.bf16.mxu0 0
    %616 = vmatmul.mubr.bf16.gmra.mrb[0].mxu0 %v310
    %v617 = vpop.f32.mrb[0].mxu0
    %v618 = vadd.f32 0.0, %v617
    %v619 = vpop.f32.mrb[0].mxu0
    %v620 = vadd.f32 0.0, %v619
    %v621 = vpop.f32.mrb[0].mxu0
    %v622 = vadd.f32 0.0, %v621
    %v623 = vpop.f32.mrb[0].mxu0
    %v624 = vadd.f32 0.0, %v623
    %625 = vmatprep.mubr.bf16.mxu0 0
    %626 = vmatmul.mubr.bf16.gmra.mrb[0].mxu0 %v311
    %v627 = vpop.f32.mrb[0].mxu0
    %v628 = vadd.f32 0.0, %v627
    %v629 = vpop.f32.mrb[0].mxu0
    %v630 = vadd.f32 0.0, %v629
    %v631 = vpop.f32.mrb[0].mxu0
    %v632 = vadd.f32 0.0, %v631
    %v633 = vpop.f32.mrb[0].mxu0
    %v634 = vadd.f32 0.0, %v633
    %635 = vmatprep.mubr.bf16.mxu0 0
    %636 = vmatmul.mubr.bf16.gmra.mrb[0].mxu0 %v312
    %v637 = vpop.f32.mrb[0].mxu0
    %v638 = vadd.f32 0.0, %v637
    %v639 = vpop.f32.mrb[0].mxu0
    %v640 = vadd.f32 0.0, %v639
    %v641 = vpop.f32.mrb[0].mxu0
    %v642 = vadd.f32 0.0, %v641
    %v643 = vpop.f32.mrb[0].mxu0
    %v644 = vadd.f32 0.0, %v643
    %645 = vmatprep.mubr.bf16.mxu0 0
    %646 = vmatmul.mubr.bf16.gmra.mrb[0].mxu0 %v313
    %v647 = vpop.f32.mrb[0].mxu0
    %v648 = vadd.f32 0.0, %v647
    %v649 = vpop.f32.mrb[0].mxu0
    %v650 = vadd.f32 0.0, %v649
    %v651 = vpop.f32.mrb[0].mxu0
    %v652 = vadd.f32 0.0, %v651
    %v653 = vpop.f32.mrb[0].mxu0
    %v654 = vadd.f32 0.0, %v653
    %655 = vmatprep.mubr.bf16.mxu0 0
    %656 = vmatmul.mubr.bf16.gmra.mrb[0].mxu0 %v314
    %v657 = vpop.f32.mrb[0].mxu0
    %v658 = vadd.f32 0.0, %v657
    %v659 = vpop.f32.mrb[0].mxu0
    %v660 = vadd.f32 0.0, %v659
    %v661 = vpop.f32.mrb[0].mxu0
    %v662 = vadd.f32 0.0, %v661
    %v663 = vpop.f32.mrb[0].mxu0
    %v664 = vadd.f32 0.0, %v663
    %665 = vmatprep.mubr.bf16.mxu0 0
    %666 = vmatmul.mubr.bf16.gmra.mrb[0].mxu0 %v315
    %v667 = vpop.f32.mrb[0].mxu0
    %v668 = vadd.f32 0.0, %v667
    %v669 = vpop.f32.mrb[0].mxu0
    %v670 = vadd.f32 0.0, %v669
    %v671 = vpop.f32.mrb[0].mxu0
    %v672 = vadd.f32 0.0, %v671
    %v673 = vpop.f32.mrb[0].mxu0
    %v674 = vadd.f32 0.0, %v673
    %675 = vmatprep.mubr.bf16.mxu0 0
    %676 = vmatmul.mubr.bf16.gmra.mrb[0].mxu0 %v316
    %v677 = vpop.f32.mrb[0].mxu0
    %v678 = vadd.f32 0.0, %v677
    %v679 = vpop.f32.mrb[0].mxu0
    %v680 = vadd.f32 0.0, %v679
    %v681 = vpop.f32.mrb[0].mxu0
    %v682 = vadd.f32 0.0, %v681
    %v683 = vpop.f32.mrb[0].mxu0
    %v684 = vadd.f32 0.0, %v683
    %685 = vdwg.mxu0
    %686 = vmatprep.subr.bf16.mxu0 %v432
    %687 = vmatpush1.bf16.msra.mxu0 %v431
    %688 = vmatprep.subr.bf16.mxu0 %v436
    %689 = vmatpush1.bf16.msra.mxu0 %v435
    %690 = vmatprep.subr.bf16.mxu0 %v440
    %691 = vmatpush1.bf16.msra.mxu0 %v439
    %692 = vmatprep.subr.bf16.mxu0 %v444
    %693 = vmatpush1.bf16.msra.mxu0 %v443
    %694 = vmatprep.subr.bf16.mxu0 %v448
    %695 = vmatpush1.bf16.msra.mxu0 %v447
    %696 = vmatprep.subr.bf16.mxu0 %v452
    %697 = vmatpush1.bf16.msra.mxu0 %v451
    %698 = vmatprep.subr.bf16.mxu0 %v456
    %699 = vmatpush1.bf16.msra.mxu0 %v455
    %700 = vmatprep.subr.bf16.mxu0 %v460
    %701 = vmatpush1.bf16.msra.mxu0 %v459
    %702 = vmatprep.subr.bf16.mxu0 0
    %703 = vmatpush1.bf16.msra.mxu0 0
    %704 = vmatprep.subr.bf16.mxu0 0
    %705 = vmatpush1.bf16.msra.mxu0 0
    %706 = vmatprep.subr.bf16.mxu0 0
    %707 = vmatpush1.bf16.msra.mxu0 0
    %708 = vmatprep.subr.bf16.mxu0 0
    %709 = vmatpush1.bf16.msra.mxu0 0
    %710 = vmatprep.subr.bf16.mxu0 0
    %711 = vmatpush1.bf16.msra.mxu0 0
    %712 = vmatprep.subr.bf16.mxu0 0
    %713 = vmatpush1.bf16.msra.mxu0 0
    %714 = vmatprep.subr.bf16.mxu0 0
    %715 = vmatpush1.bf16.msra.mxu0 0
    %716 = vmatprep.subr.bf16.mxu0 0
    %717 = vmatpush1.bf16.msra.mxu0 0
    %718 = vmatprep.mubr.bf16.mxu0 0
    %719 = vmatmul.mubr.bf16.gmra.mrb[0].mxu0 %v301
    %v720 = vpop.f32.mrb[0].mxu0
    %v721 = vadd.f32 0.0, %v720
    %v722 = vpop.f32.mrb[0].mxu0
    %v723 = vadd.f32 0.0, %v722
    %v724 = vpop.f32.mrb[0].mxu0
    %v725 = vadd.f32 0.0, %v724
    %v726 = vpop.f32.mrb[0].mxu0
    %v727 = vadd.f32 0.0, %v726
    %728 = vmatprep.mubr.bf16.mxu0 0
    %729 = vmatmul.mubr.bf16.gmra.mrb[0].mxu0 %v302
    %v730 = vpop.f32.mrb[0].mxu0
    %v731 = vadd.f32 0.0, %v730
    %v732 = vpop.f32.mrb[0].mxu0
    %v733 = vadd.f32 0.0, %v732
    %v734 = vpop.f32.mrb[0].mxu0
    %v735 = vadd.f32 0.0, %v734
    %v736 = vpop.f32.mrb[0].mxu0
    %v737 = vadd.f32 0.0, %v736
    %738 = vmatprep.mubr.bf16.mxu0 0
    %739 = vmatmul.mubr.bf16.gmra.mrb[0].mxu0 %v303
    %v740 = vpop.f32.mrb[0].mxu0
    %v741 = vadd.f32 0.0, %v740
    %v742 = vpop.f32.mrb[0].mxu0
    %v743 = vadd.f32 0.0, %v742
    %v744 = vpop.f32.mrb[0].mxu0
    %v745 = vadd.f32 0.0, %v744
    %v746 = vpop.f32.mrb[0].mxu0
    %v747 = vadd.f32 0.0, %v746
    %748 = vmatprep.mubr.bf16.mxu0 0
    %749 = vmatmul.mubr.bf16.gmra.mrb[0].mxu0 %v304
    %v750 = vpop.f32.mrb[0].mxu0
    %v751 = vadd.f32 0.0, %v750
    %v752 = vpop.f32.mrb[0].mxu0
    %v753 = vadd.f32 0.0, %v752
    %v754 = vpop.f32.mrb[0].mxu0
    %v755 = vadd.f32 0.0, %v754
    %v756 = vpop.f32.mrb[0].mxu0
    %v757 = vadd.f32 0.0, %v756
    %758 = vmatprep.mubr.bf16.mxu0 0
    %759 = vmatmul.mubr.bf16.gmra.mrb[0].mxu0 %v305
    %v760 = vpop.f32.mrb[0].mxu0
    %v761 = vadd.f32 0.0, %v760
    %v762 = vpop.f32.mrb[0].mxu0
    %v763 = vadd.f32 0.0, %v762
    %v764 = vpop.f32.mrb[0].mxu0
    %v765 = vadd.f32 0.0, %v764
    %v766 = vpop.f32.mrb[0].mxu0
    %v767 = vadd.f32 0.0, %v766
    %768 = vmatprep.mubr.bf16.mxu0 0
    %769 = vmatmul.mubr.bf16.gmra.mrb[0].mxu0 %v306
    %v770 = vpop.f32.mrb[0].mxu0
    %v771 = vadd.f32 0.0, %v770
    %v772 = vpop.f32.mrb[0].mxu0
    %v773 = vadd.f32 0.0, %v772
    %v774 = vpop.f32.mrb[0].mxu0
    %v775 = vadd.f32 0.0, %v774
    %v776 = vpop.f32.mrb[0].mxu0
    %v777 = vadd.f32 0.0, %v776
    %778 = vmatprep.mubr.bf16.mxu0 0
    %779 = vmatmul.mubr.bf16.gmra.mrb[0].mxu0 %v307
    %v780 = vpop.f32.mrb[0].mxu0
    %v781 = vadd.f32 0.0, %v780
    %v782 = vpop.f32.mrb[0].mxu0
    %v783 = vadd.f32 0.0, %v782
    %v784 = vpop.f32.mrb[0].mxu0
    %v785 = vadd.f32 0.0, %v784
    %v786 = vpop.f32.mrb[0].mxu0
    %v787 = vadd.f32 0.0, %v786
    %788 = vmatprep.mubr.bf16.mxu0 0
    %789 = vmatmul.mubr.bf16.gmra.mrb[0].mxu0 %v308
    %v790 = vpop.f32.mrb[0].mxu0
    %v791 = vadd.f32 0.0, %v790
    %v792 = vpop.f32.mrb[0].mxu0
    %v793 = vadd.f32 0.0, %v792
    %v794 = vpop.f32.mrb[0].mxu0
    %v795 = vadd.f32 0.0, %v794
    %v796 = vpop.f32.mrb[0].mxu0
    %v797 = vadd.f32 0.0, %v796
    %798 = vmatprep.mubr.bf16.mxu0 0
    %799 = vmatmul.mubr.bf16.gmra.mrb[0].mxu0 %v309
    %v800 = vpop.f32.mrb[0].mxu0
    %v801 = vadd.f32 0.0, %v800
    %v802 = vpop.f32.mrb[0].mxu0
    %v803 = vadd.f32 0.0, %v802
    %v804 = vpop.f32.mrb[0].mxu0
    %v805 = vadd.f32 0.0, %v804
    %v806 = vpop.f32.mrb[0].mxu0
    %v807 = vadd.f32 0.0, %v806
    %808 = vmatprep.mubr.bf16.mxu0 0
    %809 = vmatmul.mubr.bf16.gmra.mrb[0].mxu0 %v310
    %v810 = vpop.f32.mrb[0].mxu0
    %v811 = vadd.f32 0.0, %v810
    %v812 = vpop.f32.mrb[0].mxu0
    %v813 = vadd.f32 0.0, %v812
    %v814 = vpop.f32.mrb[0].mxu0
    %v815 = vadd.f32 0.0, %v814
    %v816 = vpop.f32.mrb[0].mxu0
    %v817 = vadd.f32 0.0, %v816
    %818 = vmatprep.mubr.bf16.mxu0 0
    %819 = vmatmul.mubr.bf16.gmra.mrb[0].mxu0 %v311
    %v820 = vpop.f32.mrb[0].mxu0
    %v821 = vadd.f32 0.0, %v820
    %v822 = vpop.f32.mrb[0].mxu0
    %v823 = vadd.f32 0.0, %v822
    %v824 = vpop.f32.mrb[0].mxu0
    %v825 = vadd.f32 0.0, %v824
    %v826 = vpop.f32.mrb[0].mxu0
    %v827 = vadd.f32 0.0, %v826
    %828 = vmatprep.mubr.bf16.mxu0 0
    %829 = vmatmul.mubr.bf16.gmra.mrb[0].mxu0 %v312
    %v830 = vpop.f32.mrb[0].mxu0
    %v831 = vadd.f32 0.0, %v830
    %v832 = vpop.f32.mrb[0].mxu0
    %v833 = vadd.f32 0.0, %v832
    %v834 = vpop.f32.mrb[0].mxu0
    %v835 = vadd.f32 0.0, %v834
    %v836 = vpop.f32.mrb[0].mxu0
    %v837 = vadd.f32 0.0, %v836
    %838 = vmatprep.mubr.bf16.mxu0 0
    %839 = vmatmul.mubr.bf16.gmra.mrb[0].mxu0 %v313
    %v840 = vpop.f32.mrb[0].mxu0
    %v841 = vadd.f32 0.0, %v840
    %v842 = vpop.f32.mrb[0].mxu0
    %v843 = vadd.f32 0.0, %v842
    %v844 = vpop.f32.mrb[0].mxu0
    %v845 = vadd.f32 0.0, %v844
    %v846 = vpop.f32.mrb[0].mxu0
    %v847 = vadd.f32 0.0, %v846
    %848 = vmatprep.mubr.bf16.mxu0 0
    %849 = vmatmul.mubr.bf16.gmra.mrb[0].mxu0 %v314
    %v850 = vpop.f32.mrb[0].mxu0
    %v851 = vadd.f32 0.0, %v850
    %v852 = vpop.f32.mrb[0].mxu0
    %v853 = vadd.f32 0.0, %v852
    %v854 = vpop.f32.mrb[0].mxu0
    %v855 = vadd.f32 0.0, %v854
    %v856 = vpop.f32.mrb[0].mxu0
    %v857 = vadd.f32 0.0, %v856
    %858 = vmatprep.mubr.bf16.mxu0 0
    %859 = vmatmul.mubr.bf16.gmra.mrb[0].mxu0 %v315
    %v860 = vpop.f32.mrb[0].mxu0
    %v861 = vadd.f32 0.0, %v860
    %v862 = vpop.f32.mrb[0].mxu0
    %v863 = vadd.f32 0.0, %v862
    %v864 = vpop.f32.mrb[0].mxu0
    %v865 = vadd.f32 0.0, %v864
    %v866 = vpop.f32.mrb[0].mxu0
    %v867 = vadd.f32 0.0, %v866
    %868 = vmatprep.mubr.bf16.mxu0 0
    %869 = vmatmul.mubr.bf16.gmra.mrb[0].mxu0 %v316
    %v870 = vpop.f32.mrb[0].mxu0
    %v871 = vadd.f32 0.0, %v870
    %v872 = vpop.f32.mrb[0].mxu0
    %v873 = vadd.f32 0.0, %v872
    %v874 = vpop.f32.mrb[0].mxu0
    %v875 = vadd.f32 0.0, %v874
    %v876 = vpop.f32.mrb[0].mxu0
    %v877 = vadd.f32 0.0, %v876
    %878 = vdwg.mxu0
    %v879 = vld [vmem:[%s1] sm:$0x3]
    %v881 = vlaneseq
    %v882 = vshrl.u32 %v881, 7
    %v883 = vsub.s32 0, %v882
    %v884 = vrot.slane %v879, %v883
    %v885 = vlaneseq
    %v886 = vshrl.u32 %v885, 7
    %v887 = vsub.s32 1, %v886
    %v888 = vrot.slane %v879, %v887
    %v891 = vcombine.low %v884, %v888
    %v892 = vcombine.high %v884, %v888
    %v894 = vunpack.c.l.s4 1966171168
    %v895 = vunpack.c.0.s8 %v894
    %v896 = vlaneseq
    %v897 = vshrl.u32 %v896, 7
    %v898 = vsub.s32 %v895, %v897
    %v899 = vrot.slane %v891, %v898
    %v901 = vunpack.c.l.s4 1966171168
    %v902 = vunpack.c.0.s8 %v901
    %v903 = vlaneseq
    %v904 = vshrl.u32 %v903, 7
    %v905 = vsub.s32 %v902, %v904
    %v906 = vrot.slane %v892, %v905
    %v907 = vcombine.high %v899, %v899
    %v908 = vcombine.high %v906, %v906
    %v910 = vunpack.c.l.s4 1966171168
    %v911 = vunpack.c.0.s8 %v910
    %v912 = vlaneseq
    %v913 = vshrl.u32 %v912, 7
    %v914 = vsub.s32 %v911, %v913
    %v915 = vrot.slane %v899, %v914
    %v917 = vunpack.c.l.s4 1966171168
    %v918 = vunpack.c.0.s8 %v917
    %v919 = vlaneseq
    %v920 = vshrl.u32 %v919, 7
    %v921 = vsub.s32 %v918, %v920
    %v922 = vrot.slane %v906, %v921
    %v924 = vunpack.c.l.s4 1966171168
    %v925 = vunpack.c.0.s8 %v924
    %v926 = vlaneseq
    %v927 = vshrl.u32 %v926, 7
    %v928 = vsub.s32 %v925, %v927
    %v929 = vrot.slane %v907, %v928
    %v931 = vunpack.c.l.s4 1966171168
    %v932 = vunpack.c.0.s8 %v931
    %v933 = vlaneseq
    %v934 = vshrl.u32 %v933, 7
    %v935 = vsub.s32 %v932, %v934
    %v936 = vrot.slane %v908, %v935
    %v937 = vcombine.high %v915, %v915
    %v938 = vcombine.high %v922, %v922
    %v939 = vcombine.high %v929, %v929
    %v940 = vcombine.high %v936, %v936
    %v941 = vlaneseq
    %v942 = vshrl.u32 %v941, 7
    %v943 = vsub.s32 0, %v942
    %v944 = vrot.slane %v915, %v943
    %v945 = vlaneseq
    %v946 = vshrl.u32 %v945, 7
    %v947 = vsub.s32 1, %v946
    %v948 = vrot.slane %v915, %v947
    %v949 = vlaneseq
    %v950 = vshrl.u32 %v949, 7
    %v951 = vsub.s32 0, %v950
    %v952 = vrot.slane %v929, %v951
    %v953 = vlaneseq
    %v954 = vshrl.u32 %v953, 7
    %v955 = vsub.s32 1, %v954
    %v956 = vrot.slane %v929, %v955
    %v957 = vlaneseq
    %v958 = vshrl.u32 %v957, 7
    %v959 = vsub.s32 0, %v958
    %v960 = vrot.slane %v937, %v959
    %v961 = vlaneseq
    %v962 = vshrl.u32 %v961, 7
    %v963 = vsub.s32 1, %v962
    %v964 = vrot.slane %v937, %v963
    %v965 = vlaneseq
    %v966 = vshrl.u32 %v965, 7
    %v967 = vsub.s32 0, %v966
    %v968 = vrot.slane %v939, %v967
    %v969 = vlaneseq
    %v970 = vshrl.u32 %v969, 7
    %v971 = vsub.s32 1, %v970
    %v972 = vrot.slane %v939, %v971
    %v973 = vlaneseq
    %v974 = vshrl.u32 %v973, 7
    %v975 = vsub.s32 0, %v974
    %v976 = vrot.slane %v922, %v975
    %v977 = vlaneseq
    %v978 = vshrl.u32 %v977, 7
    %v979 = vsub.s32 1, %v978
    %v980 = vrot.slane %v922, %v979
    %v981 = vlaneseq
    %v982 = vshrl.u32 %v981, 7
    %v983 = vsub.s32 0, %v982
    %v984 = vrot.slane %v936, %v983
    %v985 = vlaneseq
    %v986 = vshrl.u32 %v985, 7
    %v987 = vsub.s32 1, %v986
    %v988 = vrot.slane %v936, %v987
    %v989 = vlaneseq
    %v990 = vshrl.u32 %v989, 7
    %v991 = vsub.s32 0, %v990
    %v992 = vrot.slane %v938, %v991
    %v993 = vlaneseq
    %v994 = vshrl.u32 %v993, 7
    %v995 = vsub.s32 1, %v994
    %v996 = vrot.slane %v938, %v995
    %v997 = vlaneseq
    %v998 = vshrl.u32 %v997, 7
    %v999 = vsub.s32 0, %v998
    %v1000 = vrot.slane %v940, %v999
    %v1001 = vlaneseq
    %v1002 = vshrl.u32 %v1001, 7
    %v1003 = vsub.s32 1, %v1002
    %v1004 = vrot.slane %v940, %v1003
    %v1021 = vmul.f32 %v528, %v944
    %v1022 = vmul.f32 %v530, %v948
    %v1023 = vmul.f32 %v532, %v944
    %v1024 = vmul.f32 %v534, %v948
    %v1025 = vmul.f32 %v538, %v952
    %v1026 = vmul.f32 %v540, %v956
    %v1027 = vmul.f32 %v542, %v952
    %v1028 = vmul.f32 %v544, %v956
    %v1029 = vmul.f32 %v548, %v960
    %v1030 = vmul.f32 %v550, %v964
    %v1031 = vmul.f32 %v552, %v960
    %v1032 = vmul.f32 %v554, %v964
    %v1033 = vmul.f32 %v558, %v968
    %v1034 = vmul.f32 %v560, %v972
    %v1035 = vmul.f32 %v562, %v968
    %v1036 = vmul.f32 %v564, %v972
    %v1037 = vmul.f32 %v568, %v976
    %v1038 = vmul.f32 %v570, %v980
    %v1039 = vmul.f32 %v572, %v976
    %v1040 = vmul.f32 %v574, %v980
    %v1041 = vmul.f32 %v578, %v984
    %v1042 = vmul.f32 %v580, %v988
    %v1043 = vmul.f32 %v582, %v984
    %v1044 = vmul.f32 %v584, %v988
    %v1045 = vmul.f32 %v588, %v992
    %v1046 = vmul.f32 %v590, %v996
    %v1047 = vmul.f32 %v592, %v992
    %v1048 = vmul.f32 %v594, %v996
    %v1049 = vmul.f32 %v598, %v1000
    %v1050 = vmul.f32 %v600, %v1004
    %v1051 = vmul.f32 %v602, %v1000
    %v1052 = vmul.f32 %v604, %v1004
    %v1053 = vmul.f32 %v608, %v944
    %v1054 = vmul.f32 %v610, %v948
    %v1055 = vmul.f32 %v612, %v944
    %v1056 = vmul.f32 %v614, %v948
    %v1057 = vmul.f32 %v618, %v952
    %v1058 = vmul.f32 %v620, %v956
    %v1059 = vmul.f32 %v622, %v952
    %v1060 = vmul.f32 %v624, %v956
    %v1061 = vmul.f32 %v628, %v960
    %v1062 = vmul.f32 %v630, %v964
    %v1063 = vmul.f32 %v632, %v960
    %v1064 = vmul.f32 %v634, %v964
    %v1065 = vmul.f32 %v638, %v968
    %v1066 = vmul.f32 %v640, %v972
    %v1067 = vmul.f32 %v642, %v968
    %v1068 = vmul.f32 %v644, %v972
    %v1069 = vmul.f32 %v648, %v976
    %v1070 = vmul.f32 %v650, %v980
    %v1071 = vmul.f32 %v652, %v976
    %v1072 = vmul.f32 %v654, %v980
    %v1073 = vmul.f32 %v658, %v984
    %v1074 = vmul.f32 %v660, %v988
    %v1075 = vmul.f32 %v662, %v984
    %v1076 = vmul.f32 %v664, %v988
    %v1077 = vmul.f32 %v668, %v992
    %v1078 = vmul.f32 %v670, %v996
    %v1079 = vmul.f32 %v672, %v992
    %v1080 = vmul.f32 %v674, %v996
    %v1081 = vmul.f32 %v678, %v1000
    %v1082 = vmul.f32 %v680, %v1004
    %v1083 = vmul.f32 %v682, %v1000
    %v1084 = vmul.f32 %v684, %v1004
    %v1085 = vadd.f32 %v1021, %v1022
    %1086 = vadd.xlane.f32.xlu0 %v1085
    %v1087 = vpop.xlane.xlu0 %1086
    %v1088 = vadd.f32 %v1023, %v1024
    %1089 = vadd.xlane.f32.xlu0 %v1088
    %v1090 = vpop.xlane.xlu0 %1089
    %v1091 = vadd.f32 %v1025, %v1026
    %1092 = vadd.xlane.f32.xlu0 %v1091
    %v1093 = vpop.xlane.xlu0 %1092
    %v1094 = vadd.f32 %v1027, %v1028
    %1095 = vadd.xlane.f32.xlu0 %v1094
    %v1096 = vpop.xlane.xlu0 %1095
    %v1097 = vadd.f32 %v1029, %v1030
    %1098 = vadd.xlane.f32.xlu0 %v1097
    %v1099 = vpop.xlane.xlu0 %1098
    %v1100 = vadd.f32 %v1031, %v1032
    %1101 = vadd.xlane.f32.xlu0 %v1100
    %v1102 = vpop.xlane.xlu0 %1101
    %v1103 = vadd.f32 %v1033, %v1034
    %1104 = vadd.xlane.f32.xlu0 %v1103
    %v1105 = vpop.xlane.xlu0 %1104
    %v1106 = vadd.f32 %v1035, %v1036
    %1107 = vadd.xlane.f32.xlu0 %v1106
    %v1108 = vpop.xlane.xlu0 %1107
    %v1109 = vadd.f32 %v1037, %v1038
    %1110 = vadd.xlane.f32.xlu0 %v1109
    %v1111 = vpop.xlane.xlu0 %1110
    %v1112 = vadd.f32 %v1039, %v1040
    %1113 = vadd.xlane.f32.xlu0 %v1112
    %v1114 = vpop.xlane.xlu0 %1113
    %v1115 = vadd.f32 %v1041, %v1042
    %1116 = vadd.xlane.f32.xlu0 %v1115
    %v1117 = vpop.xlane.xlu0 %1116
    %v1118 = vadd.f32 %v1043, %v1044
    %1119 = vadd.xlane.f32.xlu0 %v1118
    %v1120 = vpop.xlane.xlu0 %1119
    %v1121 = vadd.f32 %v1045, %v1046
    %1122 = vadd.xlane.f32.xlu0 %v1121
    %v1123 = vpop.xlane.xlu0 %1122
    %v1124 = vadd.f32 %v1047, %v1048
    %1125 = vadd.xlane.f32.xlu0 %v1124
    %v1126 = vpop.xlane.xlu0 %1125
    %v1127 = vadd.f32 %v1049, %v1050
    %1128 = vadd.xlane.f32.xlu0 %v1127
    %v1129 = vpop.xlane.xlu0 %1128
    %v1130 = vadd.f32 %v1051, %v1052
    %1131 = vadd.xlane.f32.xlu0 %v1130
    %v1132 = vpop.xlane.xlu0 %1131
    %v1133 = vadd.f32 %v1053, %v1054
    %1134 = vadd.xlane.f32.xlu0 %v1133
    %v1135 = vpop.xlane.xlu0 %1134
    %v1136 = vadd.f32 %v1055, %v1056
    %1137 = vadd.xlane.f32.xlu0 %v1136
    %v1138 = vpop.xlane.xlu0 %1137
    %v1139 = vadd.f32 %v1057, %v1058
    %1140 = vadd.xlane.f32.xlu0 %v1139
    %v1141 = vpop.xlane.xlu0 %1140
    %v1142 = vadd.f32 %v1059, %v1060
    %1143 = vadd.xlane.f32.xlu0 %v1142
    %v1144 = vpop.xlane.xlu0 %1143
    %v1145 = vadd.f32 %v1061, %v1062
    %1146 = vadd.xlane.f32.xlu0 %v1145
    %v1147 = vpop.xlane.xlu0 %1146
    %v1148 = vadd.f32 %v1063, %v1064
    %1149 = vadd.xlane.f32.xlu0 %v1148
    %v1150 = vpop.xlane.xlu0 %1149
    %v1151 = vadd.f32 %v1065, %v1066
    %1152 = vadd.xlane.f32.xlu0 %v1151
    %v1153 = vpop.xlane.xlu0 %1152
    %v1154 = vadd.f32 %v1067, %v1068
    %1155 = vadd.xlane.f32.xlu0 %v1154
    %v1156 = vpop.xlane.xlu0 %1155
    %v1157 = vadd.f32 %v1069, %v1070
    %1158 = vadd.xlane.f32.xlu0 %v1157
    %v1159 = vpop.xlane.xlu0 %1158
    %v1160 = vadd.f32 %v1071, %v1072
    %1161 = vadd.xlane.f32.xlu0 %v1160
    %v1162 = vpop.xlane.xlu0 %1161
    %v1163 = vadd.f32 %v1073, %v1074
    %1164 = vadd.xlane.f32.xlu0 %v1163
    %v1165 = vpop.xlane.xlu0 %1164
    %v1166 = vadd.f32 %v1075, %v1076
    %1167 = vadd.xlane.f32.xlu0 %v1166
    %v1168 = vpop.xlane.xlu0 %1167
    %v1169 = vadd.f32 %v1077, %v1078
    %1170 = vadd.xlane.f32.xlu0 %v1169
    %v1171 = vpop.xlane.xlu0 %1170
    %v1172 = vadd.f32 %v1079, %v1080
    %1173 = vadd.xlane.f32.xlu0 %v1172
    %v1174 = vpop.xlane.xlu0 %1173
    %v1175 = vadd.f32 %v1081, %v1082
    %1176 = vadd.xlane.f32.xlu0 %v1175
    %v1177 = vpop.xlane.xlu0 %1176
    %v1178 = vadd.f32 %v1083, %v1084
    %1179 = vadd.xlane.f32.xlu0 %v1178
    %v1180 = vpop.xlane.xlu0 %1179
    %v1181 = vmax.f32 %v1087, %v1090
    %v1182 = vrot.slane %v1181, 4
    %v1183 = vmax.f32 %v1181, %v1182
    %v1184 = vrot.slane %v1183, 2
    %v1185 = vmax.f32 %v1183, %v1184
    %v1186 = vrot.slane %v1185, 1
    %v1187 = vmax.f32 %v1185, %v1186
    %v1188 = vmax.f32 %v1093, %v1096
    %v1189 = vrot.slane %v1188, 4
    %v1190 = vmax.f32 %v1188, %v1189
    %v1191 = vrot.slane %v1190, 2
    %v1192 = vmax.f32 %v1190, %v1191
    %v1193 = vrot.slane %v1192, 1
    %v1194 = vmax.f32 %v1192, %v1193
    %v1195 = vmax.f32 %v1099, %v1102
    %v1196 = vrot.slane %v1195, 4
    %v1197 = vmax.f32 %v1195, %v1196
    %v1198 = vrot.slane %v1197, 2
    %v1199 = vmax.f32 %v1197, %v1198
    %v1200 = vrot.slane %v1199, 1
    %v1201 = vmax.f32 %v1199, %v1200
    %v1202 = vmax.f32 %v1105, %v1108
    %v1203 = vrot.slane %v1202, 4
    %v1204 = vmax.f32 %v1202, %v1203
    %v1205 = vrot.slane %v1204, 2
    %v1206 = vmax.f32 %v1204, %v1205
    %v1207 = vrot.slane %v1206, 1
    %v1208 = vmax.f32 %v1206, %v1207
    %v1209 = vmax.f32 %v1111, %v1114
    %v1210 = vrot.slane %v1209, 4
    %v1211 = vmax.f32 %v1209, %v1210
    %v1212 = vrot.slane %v1211, 2
    %v1213 = vmax.f32 %v1211, %v1212
    %v1214 = vrot.slane %v1213, 1
    %v1215 = vmax.f32 %v1213, %v1214
    %v1216 = vmax.f32 %v1117, %v1120
    %v1217 = vrot.slane %v1216, 4
    %v1218 = vmax.f32 %v1216, %v1217
    %v1219 = vrot.slane %v1218, 2
    %v1220 = vmax.f32 %v1218, %v1219
    %v1221 = vrot.slane %v1220, 1
    %v1222 = vmax.f32 %v1220, %v1221
    %v1223 = vmax.f32 %v1123, %v1126
    %v1224 = vrot.slane %v1223, 4
    %v1225 = vmax.f32 %v1223, %v1224
    %v1226 = vrot.slane %v1225, 2
    %v1227 = vmax.f32 %v1225, %v1226
    %v1228 = vrot.slane %v1227, 1
    %v1229 = vmax.f32 %v1227, %v1228
    %v1230 = vmax.f32 %v1129, %v1132
    %v1231 = vrot.slane %v1230, 4
    %v1232 = vmax.f32 %v1230, %v1231
    %v1233 = vrot.slane %v1232, 2
    %v1234 = vmax.f32 %v1232, %v1233
    %v1235 = vrot.slane %v1234, 1
    %v1236 = vmax.f32 %v1234, %v1235
    %v1237 = vmax.f32 %v1135, %v1138
    %v1238 = vrot.slane %v1237, 4
    %v1239 = vmax.f32 %v1237, %v1238
    %v1240 = vrot.slane %v1239, 2
    %v1241 = vmax.f32 %v1239, %v1240
    %v1242 = vrot.slane %v1241, 1
    %v1243 = vmax.f32 %v1241, %v1242
    %v1244 = vmax.f32 %v1141, %v1144
    %v1245 = vrot.slane %v1244, 4
    %v1246 = vmax.f32 %v1244, %v1245
    %v1247 = vrot.slane %v1246, 2
    %v1248 = vmax.f32 %v1246, %v1247
    %v1249 = vrot.slane %v1248, 1
    %v1250 = vmax.f32 %v1248, %v1249
    %v1251 = vmax.f32 %v1147, %v1150
    %v1252 = vrot.slane %v1251, 4
    %v1253 = vmax.f32 %v1251, %v1252
    %v1254 = vrot.slane %v1253, 2
    %v1255 = vmax.f32 %v1253, %v1254
    %v1256 = vrot.slane %v1255, 1
    %v1257 = vmax.f32 %v1255, %v1256
    %v1258 = vmax.f32 %v1153, %v1156
    %v1259 = vrot.slane %v1258, 4
    %v1260 = vmax.f32 %v1258, %v1259
    %v1261 = vrot.slane %v1260, 2
    %v1262 = vmax.f32 %v1260, %v1261
    %v1263 = vrot.slane %v1262, 1
    %v1264 = vmax.f32 %v1262, %v1263
    %v1265 = vmax.f32 %v1159, %v1162
    %v1266 = vrot.slane %v1265, 4
    %v1267 = vmax.f32 %v1265, %v1266
    %v1268 = vrot.slane %v1267, 2
    %v1269 = vmax.f32 %v1267, %v1268
    %v1270 = vrot.slane %v1269, 1
    %v1271 = vmax.f32 %v1269, %v1270
    %v1272 = vmax.f32 %v1165, %v1168
    %v1273 = vrot.slane %v1272, 4
    %v1274 = vmax.f32 %v1272, %v1273
    %v1275 = vrot.slane %v1274, 2
    %v1276 = vmax.f32 %v1274, %v1275
    %v1277 = vrot.slane %v1276, 1
    %v1278 = vmax.f32 %v1276, %v1277
    %v1279 = vmax.f32 %v1171, %v1174
    %v1280 = vrot.slane %v1279, 4
    %v1281 = vmax.f32 %v1279, %v1280
    %v1282 = vrot.slane %v1281, 2
    %v1283 = vmax.f32 %v1281, %v1282
    %v1284 = vrot.slane %v1283, 1
    %v1285 = vmax.f32 %v1283, %v1284
    %v1286 = vmax.f32 %v1177, %v1180
    %v1287 = vrot.slane %v1286, 4
    %v1288 = vmax.f32 %v1286, %v1287
    %v1289 = vrot.slane %v1288, 2
    %v1290 = vmax.f32 %v1288, %v1289
    %v1291 = vrot.slane %v1290, 1
    %v1292 = vmax.f32 %v1290, %v1291
    %v1293 = vsub.f32 %v1087, %v1187
    %v1294 = vsub.f32 %v1090, %v1187
    %v1295 = vsub.f32 %v1093, %v1194
    %v1296 = vsub.f32 %v1096, %v1194
    %v1297 = vsub.f32 %v1099, %v1201
    %v1298 = vsub.f32 %v1102, %v1201
    %v1299 = vsub.f32 %v1105, %v1208
    %v1300 = vsub.f32 %v1108, %v1208
    %v1301 = vsub.f32 %v1111, %v1215
    %v1302 = vsub.f32 %v1114, %v1215
    %v1303 = vsub.f32 %v1117, %v1222
    %v1304 = vsub.f32 %v1120, %v1222
    %v1305 = vsub.f32 %v1123, %v1229
    %v1306 = vsub.f32 %v1126, %v1229
    %v1307 = vsub.f32 %v1129, %v1236
    %v1308 = vsub.f32 %v1132, %v1236
    %v1309 = vsub.f32 %v1135, %v1243
    %v1310 = vsub.f32 %v1138, %v1243
    %v1311 = vsub.f32 %v1141, %v1250
    %v1312 = vsub.f32 %v1144, %v1250
    %v1313 = vsub.f32 %v1147, %v1257
    %v1314 = vsub.f32 %v1150, %v1257
    %v1315 = vsub.f32 %v1153, %v1264
    %v1316 = vsub.f32 %v1156, %v1264
    %v1317 = vsub.f32 %v1159, %v1271
    %v1318 = vsub.f32 %v1162, %v1271
    %v1319 = vsub.f32 %v1165, %v1278
    %v1320 = vsub.f32 %v1168, %v1278
    %v1321 = vsub.f32 %v1171, %v1285
    %v1322 = vsub.f32 %v1174, %v1285
    %v1323 = vsub.f32 %v1177, %v1292
    %v1324 = vsub.f32 %v1180, %v1292
    %v1325 = vmul.f32 %v1293, 1.442695
    %v1326 = vpow.pop %v1325
    %v1327 = vmul.f32 %v1294, 1.442695
    %v1328 = vpow.pop %v1327
    %v1329 = vmul.f32 %v1295, 1.442695
    %v1330 = vpow.pop %v1329
    %v1331 = vmul.f32 %v1296, 1.442695
    %v1332 = vpow.pop %v1331
    %v1333 = vmul.f32 %v1297, 1.442695
    %v1334 = vpow.pop %v1333
    %v1335 = vmul.f32 %v1298, 1.442695
    %v1336 = vpow.pop %v1335
    %v1337 = vmul.f32 %v1299, 1.442695
    %v1338 = vpow.pop %v1337
    %v1339 = vmul.f32 %v1300, 1.442695
    %v1340 = vpow.pop %v1339
    %v1341 = vmul.f32 %v1301, 1.442695
    %v1342 = vpow.pop %v1341
    %v1343 = vmul.f32 %v1302, 1.442695
    %v1344 = vpow.pop %v1343
    %v1345 = vmul.f32 %v1303, 1.442695
    %v1346 = vpow.pop %v1345
    %v1347 = vmul.f32 %v1304, 1.442695
    %v1348 = vpow.pop %v1347
    %v1349 = vmul.f32 %v1305, 1.442695
    %v1350 = vpow.pop %v1349
    %v1351 = vmul.f32 %v1306, 1.442695
    %v1352 = vpow.pop %v1351
    %v1353 = vmul.f32 %v1307, 1.442695
    %v1354 = vpow.pop %v1353
    %v1355 = vmul.f32 %v1308, 1.442695
    %v1356 = vpow.pop %v1355
    %v1357 = vmul.f32 %v1309, 1.442695
    %v1358 = vpow.pop %v1357
    %v1359 = vmul.f32 %v1310, 1.442695
    %v1360 = vpow.pop %v1359
    %v1361 = vmul.f32 %v1311, 1.442695
    %v1362 = vpow.pop %v1361
    %v1363 = vmul.f32 %v1312, 1.442695
    %v1364 = vpow.pop %v1363
    %v1365 = vmul.f32 %v1313, 1.442695
    %v1366 = vpow.pop %v1365
    %v1367 = vmul.f32 %v1314, 1.442695
    %v1368 = vpow.pop %v1367
    %v1369 = vmul.f32 %v1315, 1.442695
    %v1370 = vpow.pop %v1369
    %v1371 = vmul.f32 %v1316, 1.442695
    %v1372 = vpow.pop %v1371
    %v1373 = vmul.f32 %v1317, 1.442695
    %v1374 = vpow.pop %v1373
    %v1375 = vmul.f32 %v1318, 1.442695
    %v1376 = vpow.pop %v1375
    %v1377 = vmul.f32 %v1319, 1.442695
    %v1378 = vpow.pop %v1377
    %v1379 = vmul.f32 %v1320, 1.442695
    %v1380 = vpow.pop %v1379
    %v1381 = vmul.f32 %v1321, 1.442695
    %v1382 = vpow.pop %v1381
    %v1383 = vmul.f32 %v1322, 1.442695
    %v1384 = vpow.pop %v1383
    %v1385 = vmul.f32 %v1323, 1.442695
    %v1386 = vpow.pop %v1385
    %v1387 = vmul.f32 %v1324, 1.442695
    %v1388 = vpow.pop %v1387
    %v1389 = vadd.f32 %v1326, %v1328
    %v1390 = vrot.slane %v1389, 4
    %v1391 = vadd.f32 %v1389, %v1390
    %v1392 = vrot.slane %v1391, 2
    %v1393 = vadd.f32 %v1391, %v1392
    %v1394 = vrot.slane %v1393, 1
    %v1395 = vadd.f32 %v1393, %v1394
    %v1396 = vadd.f32 %v1330, %v1332
    %v1397 = vrot.slane %v1396, 4
    %v1398 = vadd.f32 %v1396, %v1397
    %v1399 = vrot.slane %v1398, 2
    %v1400 = vadd.f32 %v1398, %v1399
    %v1401 = vrot.slane %v1400, 1
    %v1402 = vadd.f32 %v1400, %v1401
    %v1403 = vadd.f32 %v1334, %v1336
    %v1404 = vrot.slane %v1403, 4
    %v1405 = vadd.f32 %v1403, %v1404
    %v1406 = vrot.slane %v1405, 2
    %v1407 = vadd.f32 %v1405, %v1406
    %v1408 = vrot.slane %v1407, 1
    %v1409 = vadd.f32 %v1407, %v1408
    %v1410 = vadd.f32 %v1338, %v1340
    %v1411 = vrot.slane %v1410, 4
    %v1412 = vadd.f32 %v1410, %v1411
    %v1413 = vrot.slane %v1412, 2
    %v1414 = vadd.f32 %v1412, %v1413
    %v1415 = vrot.slane %v1414, 1
    %v1416 = vadd.f32 %v1414, %v1415
    %v1417 = vadd.f32 %v1342, %v1344
    %v1418 = vrot.slane %v1417, 4
    %v1419 = vadd.f32 %v1417, %v1418
    %v1420 = vrot.slane %v1419, 2
    %v1421 = vadd.f32 %v1419, %v1420
    %v1422 = vrot.slane %v1421, 1
    %v1423 = vadd.f32 %v1421, %v1422
    %v1424 = vadd.f32 %v1346, %v1348
    %v1425 = vrot.slane %v1424, 4
    %v1426 = vadd.f32 %v1424, %v1425
    %v1427 = vrot.slane %v1426, 2
    %v1428 = vadd.f32 %v1426, %v1427
    %v1429 = vrot.slane %v1428, 1
    %v1430 = vadd.f32 %v1428, %v1429
    %v1431 = vadd.f32 %v1350, %v1352
    %v1432 = vrot.slane %v1431, 4
    %v1433 = vadd.f32 %v1431, %v1432
    %v1434 = vrot.slane %v1433, 2
    %v1435 = vadd.f32 %v1433, %v1434
    %v1436 = vrot.slane %v1435, 1
    %v1437 = vadd.f32 %v1435, %v1436
    %v1438 = vadd.f32 %v1354, %v1356
    %v1439 = vrot.slane %v1438, 4
    %v1440 = vadd.f32 %v1438, %v1439
    %v1441 = vrot.slane %v1440, 2
    %v1442 = vadd.f32 %v1440, %v1441
    %v1443 = vrot.slane %v1442, 1
    %v1444 = vadd.f32 %v1442, %v1443
    %v1445 = vadd.f32 %v1358, %v1360
    %v1446 = vrot.slane %v1445, 4
    %v1447 = vadd.f32 %v1445, %v1446
    %v1448 = vrot.slane %v1447, 2
    %v1449 = vadd.f32 %v1447, %v1448
    %v1450 = vrot.slane %v1449, 1
    %v1451 = vadd.f32 %v1449, %v1450
    %v1452 = vadd.f32 %v1362, %v1364
    %v1453 = vrot.slane %v1452, 4
    %v1454 = vadd.f32 %v1452, %v1453
    %v1455 = vrot.slane %v1454, 2
    %v1456 = vadd.f32 %v1454, %v1455
    %v1457 = vrot.slane %v1456, 1
    %v1458 = vadd.f32 %v1456, %v1457
    %v1459 = vadd.f32 %v1366, %v1368
    %v1460 = vrot.slane %v1459, 4
    %v1461 = vadd.f32 %v1459, %v1460
    %v1462 = vrot.slane %v1461, 2
    %v1463 = vadd.f32 %v1461, %v1462
    %v1464 = vrot.slane %v1463, 1
    %v1465 = vadd.f32 %v1463, %v1464
    %v1466 = vadd.f32 %v1370, %v1372
    %v1467 = vrot.slane %v1466, 4
    %v1468 = vadd.f32 %v1466, %v1467
    %v1469 = vrot.slane %v1468, 2
    %v1470 = vadd.f32 %v1468, %v1469
    %v1471 = vrot.slane %v1470, 1
    %v1472 = vadd.f32 %v1470, %v1471
    %v1473 = vadd.f32 %v1374, %v1376
    %v1474 = vrot.slane %v1473, 4
    %v1475 = vadd.f32 %v1473, %v1474
    %v1476 = vrot.slane %v1475, 2
    %v1477 = vadd.f32 %v1475, %v1476
    %v1478 = vrot.slane %v1477, 1
    %v1479 = vadd.f32 %v1477, %v1478
    %v1480 = vadd.f32 %v1378, %v1380
    %v1481 = vrot.slane %v1480, 4
    %v1482 = vadd.f32 %v1480, %v1481
    %v1483 = vrot.slane %v1482, 2
    %v1484 = vadd.f32 %v1482, %v1483
    %v1485 = vrot.slane %v1484, 1
    %v1486 = vadd.f32 %v1484, %v1485
    %v1487 = vadd.f32 %v1382, %v1384
    %v1488 = vrot.slane %v1487, 4
    %v1489 = vadd.f32 %v1487, %v1488
    %v1490 = vrot.slane %v1489, 2
    %v1491 = vadd.f32 %v1489, %v1490
    %v1492 = vrot.slane %v1491, 1
    %v1493 = vadd.f32 %v1491, %v1492
    %v1494 = vadd.f32 %v1386, %v1388
    %v1495 = vrot.slane %v1494, 4
    %v1496 = vadd.f32 %v1494, %v1495
    %v1497 = vrot.slane %v1496, 2
    %v1498 = vadd.f32 %v1496, %v1497
    %v1499 = vrot.slane %v1498, 1
    %v1500 = vadd.f32 %v1498, %v1499
    %v1501 = vrcp.pop %v1395
    %v1502 = vrcp.pop %v1402
    %v1503 = vrcp.pop %v1409
    %v1504 = vrcp.pop %v1416
    %v1505 = vrcp.pop %v1423
    %v1506 = vrcp.pop %v1430
    %v1507 = vrcp.pop %v1437
    %v1508 = vrcp.pop %v1444
    %v1509 = vrcp.pop %v1451
    %v1510 = vrcp.pop %v1458
    %v1511 = vrcp.pop %v1465
    %v1512 = vrcp.pop %v1472
    %v1513 = vrcp.pop %v1479
    %v1514 = vrcp.pop %v1486
    %v1515 = vrcp.pop %v1493
    %v1516 = vrcp.pop %v1500
    %v1517 = vmul.f32 %v1326, %v1501
    %v1518 = vmul.f32 %v1328, %v1501
    %v1519 = vmul.f32 %v1330, %v1502
    %v1520 = vmul.f32 %v1332, %v1502
    %v1521 = vmul.f32 %v1334, %v1503
    %v1522 = vmul.f32 %v1336, %v1503
    %v1523 = vmul.f32 %v1338, %v1504
    %v1524 = vmul.f32 %v1340, %v1504
    %v1525 = vmul.f32 %v1342, %v1505
    %v1526 = vmul.f32 %v1344, %v1505
    %v1527 = vmul.f32 %v1346, %v1506
    %v1528 = vmul.f32 %v1348, %v1506
    %v1529 = vmul.f32 %v1350, %v1507
    %v1530 = vmul.f32 %v1352, %v1507
    %v1531 = vmul.f32 %v1354, %v1508
    %v1532 = vmul.f32 %v1356, %v1508
    %v1533 = vmul.f32 %v1358, %v1509
    %v1534 = vmul.f32 %v1360, %v1509
    %v1535 = vmul.f32 %v1362, %v1510
    %v1536 = vmul.f32 %v1364, %v1510
    %v1537 = vmul.f32 %v1366, %v1511
    %v1538 = vmul.f32 %v1368, %v1511
    %v1539 = vmul.f32 %v1370, %v1512
    %v1540 = vmul.f32 %v1372, %v1512
    %v1541 = vmul.f32 %v1374, %v1513
    %v1542 = vmul.f32 %v1376, %v1513
    %v1543 = vmul.f32 %v1378, %v1514
    %v1544 = vmul.f32 %v1380, %v1514
    %v1545 = vmul.f32 %v1382, %v1515
    %v1546 = vmul.f32 %v1384, %v1515
    %v1547 = vmul.f32 %v1386, %v1516
    %v1548 = vmul.f32 %v1388, %v1516
    %v1549 = vmul.f32 %v721, %v1517
    %v1550 = vmul.f32 %v723, %v1517
    %v1551 = vmul.f32 %v725, %v1518
    %v1552 = vmul.f32 %v727, %v1518
    %v1553 = vmul.f32 %v731, %v1519
    %v1554 = vmul.f32 %v733, %v1519
    %v1555 = vmul.f32 %v735, %v1520
    %v1556 = vmul.f32 %v737, %v1520
    %v1557 = vmul.f32 %v741, %v1521
    %v1558 = vmul.f32 %v743, %v1521
    %v1559 = vmul.f32 %v745, %v1522
    %v1560 = vmul.f32 %v747, %v1522
    %v1561 = vmul.f32 %v751, %v1523
    %v1562 = vmul.f32 %v753, %v1523
    %v1563 = vmul.f32 %v755, %v1524
    %v1564 = vmul.f32 %v757, %v1524
    %v1565 = vmul.f32 %v761, %v1525
    %v1566 = vmul.f32 %v763, %v1525
    %v1567 = vmul.f32 %v765, %v1526
    %v1568 = vmul.f32 %v767, %v1526
    %v1569 = vmul.f32 %v771, %v1527
    %v1570 = vmul.f32 %v773, %v1527
    %v1571 = vmul.f32 %v775, %v1528
    %v1572 = vmul.f32 %v777, %v1528
    %v1573 = vmul.f32 %v781, %v1529
    %v1574 = vmul.f32 %v783, %v1529
    %v1575 = vmul.f32 %v785, %v1530
    %v1576 = vmul.f32 %v787, %v1530
    %v1577 = vmul.f32 %v791, %v1531
    %v1578 = vmul.f32 %v793, %v1531
    %v1579 = vmul.f32 %v795, %v1532
    %v1580 = vmul.f32 %v797, %v1532
    %v1581 = vmul.f32 %v801, %v1533
    %v1582 = vmul.f32 %v803, %v1533
    %v1583 = vmul.f32 %v805, %v1534
    %v1584 = vmul.f32 %v807, %v1534
    %v1585 = vmul.f32 %v811, %v1535
    %v1586 = vmul.f32 %v813, %v1535
    %v1587 = vmul.f32 %v815, %v1536
    %v1588 = vmul.f32 %v817, %v1536
    %v1589 = vmul.f32 %v821, %v1537
    %v1590 = vmul.f32 %v823, %v1537
    %v1591 = vmul.f32 %v825, %v1538
    %v1592 = vmul.f32 %v827, %v1538
    %v1593 = vmul.f32 %v831, %v1539
    %v1594 = vmul.f32 %v833, %v1539
    %v1595 = vmul.f32 %v835, %v1540
    %v1596 = vmul.f32 %v837, %v1540
    %v1597 = vmul.f32 %v841, %v1541
    %v1598 = vmul.f32 %v843, %v1541
    %v1599 = vmul.f32 %v845, %v1542
    %v1600 = vmul.f32 %v847, %v1542
    %v1601 = vmul.f32 %v851, %v1543
    %v1602 = vmul.f32 %v853, %v1543
    %v1603 = vmul.f32 %v855, %v1544
    %v1604 = vmul.f32 %v857, %v1544
    %v1605 = vmul.f32 %v861, %v1545
    %v1606 = vmul.f32 %v863, %v1545
    %v1607 = vmul.f32 %v865, %v1546
    %v1608 = vmul.f32 %v867, %v1546
    %v1609 = vmul.f32 %v871, %v1547
    %v1610 = vmul.f32 %v873, %v1547
    %v1611 = vmul.f32 %v875, %v1548
    %v1612 = vmul.f32 %v877, %v1548
    %v1613 = vadd.f32 %v1549, %v1551
    %v1614 = vrot.slane %v1613, 4
    %v1615 = vadd.f32 %v1613, %v1614
    %v1616 = vrot.slane %v1615, 2
    %v1617 = vadd.f32 %v1615, %v1616
    %v1618 = vrot.slane %v1617, 1
    %v1619 = vadd.f32 %v1617, %v1618
    %v1620 = vadd.f32 %v1550, %v1552
    %v1621 = vrot.slane %v1620, 4
    %v1622 = vadd.f32 %v1620, %v1621
    %v1623 = vrot.slane %v1622, 2
    %v1624 = vadd.f32 %v1622, %v1623
    %v1625 = vrot.slane %v1624, 1
    %v1626 = vadd.f32 %v1624, %v1625
    %v1627 = vadd.f32 %v1553, %v1555
    %v1628 = vrot.slane %v1627, 4
    %v1629 = vadd.f32 %v1627, %v1628
    %v1630 = vrot.slane %v1629, 2
    %v1631 = vadd.f32 %v1629, %v1630
    %v1632 = vrot.slane %v1631, 1
    %v1633 = vadd.f32 %v1631, %v1632
    %v1634 = vadd.f32 %v1554, %v1556
    %v1635 = vrot.slane %v1634, 4
    %v1636 = vadd.f32 %v1634, %v1635
    %v1637 = vrot.slane %v1636, 2
    %v1638 = vadd.f32 %v1636, %v1637
    %v1639 = vrot.slane %v1638, 1
    %v1640 = vadd.f32 %v1638, %v1639
    %v1641 = vadd.f32 %v1557, %v1559
    %v1642 = vrot.slane %v1641, 4
    %v1643 = vadd.f32 %v1641, %v1642
    %v1644 = vrot.slane %v1643, 2
    %v1645 = vadd.f32 %v1643, %v1644
    %v1646 = vrot.slane %v1645, 1
    %v1647 = vadd.f32 %v1645, %v1646
    %v1648 = vadd.f32 %v1558, %v1560
    %v1649 = vrot.slane %v1648, 4
    %v1650 = vadd.f32 %v1648, %v1649
    %v1651 = vrot.slane %v1650, 2
    %v1652 = vadd.f32 %v1650, %v1651
    %v1653 = vrot.slane %v1652, 1
    %v1654 = vadd.f32 %v1652, %v1653
    %v1655 = vadd.f32 %v1561, %v1563
    %v1656 = vrot.slane %v1655, 4
    %v1657 = vadd.f32 %v1655, %v1656
    %v1658 = vrot.slane %v1657, 2
    %v1659 = vadd.f32 %v1657, %v1658
    %v1660 = vrot.slane %v1659, 1
    %v1661 = vadd.f32 %v1659, %v1660
    %v1662 = vadd.f32 %v1562, %v1564
    %v1663 = vrot.slane %v1662, 4
    %v1664 = vadd.f32 %v1662, %v1663
    %v1665 = vrot.slane %v1664, 2
    %v1666 = vadd.f32 %v1664, %v1665
    %v1667 = vrot.slane %v1666, 1
    %v1668 = vadd.f32 %v1666, %v1667
    %v1669 = vadd.f32 %v1565, %v1567
    %v1670 = vrot.slane %v1669, 4
    %v1671 = vadd.f32 %v1669, %v1670
    %v1672 = vrot.slane %v1671, 2
    %v1673 = vadd.f32 %v1671, %v1672
    %v1674 = vrot.slane %v1673, 1
    %v1675 = vadd.f32 %v1673, %v1674
    %v1676 = vadd.f32 %v1566, %v1568
    %v1677 = vrot.slane %v1676, 4
    %v1678 = vadd.f32 %v1676, %v1677
    %v1679 = vrot.slane %v1678, 2
    %v1680 = vadd.f32 %v1678, %v1679
    %v1681 = vrot.slane %v1680, 1
    %v1682 = vadd.f32 %v1680, %v1681
    %v1683 = vadd.f32 %v1569, %v1571
    %v1684 = vrot.slane %v1683, 4
    %v1685 = vadd.f32 %v1683, %v1684
    %v1686 = vrot.slane %v1685, 2
    %v1687 = vadd.f32 %v1685, %v1686
    %v1688 = vrot.slane %v1687, 1
    %v1689 = vadd.f32 %v1687, %v1688
    %v1690 = vadd.f32 %v1570, %v1572
    %v1691 = vrot.slane %v1690, 4
    %v1692 = vadd.f32 %v1690, %v1691
    %v1693 = vrot.slane %v1692, 2
    %v1694 = vadd.f32 %v1692, %v1693
    %v1695 = vrot.slane %v1694, 1
    %v1696 = vadd.f32 %v1694, %v1695
    %v1697 = vadd.f32 %v1573, %v1575
    %v1698 = vrot.slane %v1697, 4
    %v1699 = vadd.f32 %v1697, %v1698
    %v1700 = vrot.slane %v1699, 2
    %v1701 = vadd.f32 %v1699, %v1700
    %v1702 = vrot.slane %v1701, 1
    %v1703 = vadd.f32 %v1701, %v1702
    %v1704 = vadd.f32 %v1574, %v1576
    %v1705 = vrot.slane %v1704, 4
    %v1706 = vadd.f32 %v1704, %v1705
    %v1707 = vrot.slane %v1706, 2
    %v1708 = vadd.f32 %v1706, %v1707
    %v1709 = vrot.slane %v1708, 1
    %v1710 = vadd.f32 %v1708, %v1709
    %v1711 = vadd.f32 %v1577, %v1579
    %v1712 = vrot.slane %v1711, 4
    %v1713 = vadd.f32 %v1711, %v1712
    %v1714 = vrot.slane %v1713, 2
    %v1715 = vadd.f32 %v1713, %v1714
    %v1716 = vrot.slane %v1715, 1
    %v1717 = vadd.f32 %v1715, %v1716
    %v1718 = vadd.f32 %v1578, %v1580
    %v1719 = vrot.slane %v1718, 4
    %v1720 = vadd.f32 %v1718, %v1719
    %v1721 = vrot.slane %v1720, 2
    %v1722 = vadd.f32 %v1720, %v1721
    %v1723 = vrot.slane %v1722, 1
    %v1724 = vadd.f32 %v1722, %v1723
    %v1725 = vadd.f32 %v1581, %v1583
    %v1726 = vrot.slane %v1725, 4
    %v1727 = vadd.f32 %v1725, %v1726
    %v1728 = vrot.slane %v1727, 2
    %v1729 = vadd.f32 %v1727, %v1728
    %v1730 = vrot.slane %v1729, 1
    %v1731 = vadd.f32 %v1729, %v1730
    %v1732 = vadd.f32 %v1582, %v1584
    %v1733 = vrot.slane %v1732, 4
    %v1734 = vadd.f32 %v1732, %v1733
    %v1735 = vrot.slane %v1734, 2
    %v1736 = vadd.f32 %v1734, %v1735
    %v1737 = vrot.slane %v1736, 1
    %v1738 = vadd.f32 %v1736, %v1737
    %v1739 = vadd.f32 %v1585, %v1587
    %v1740 = vrot.slane %v1739, 4
    %v1741 = vadd.f32 %v1739, %v1740
    %v1742 = vrot.slane %v1741, 2
    %v1743 = vadd.f32 %v1741, %v1742
    %v1744 = vrot.slane %v1743, 1
    %v1745 = vadd.f32 %v1743, %v1744
    %v1746 = vadd.f32 %v1586, %v1588
    %v1747 = vrot.slane %v1746, 4
    %v1748 = vadd.f32 %v1746, %v1747
    %v1749 = vrot.slane %v1748, 2
    %v1750 = vadd.f32 %v1748, %v1749
    %v1751 = vrot.slane %v1750, 1
    %v1752 = vadd.f32 %v1750, %v1751
    %v1753 = vadd.f32 %v1589, %v1591
    %v1754 = vrot.slane %v1753, 4
    %v1755 = vadd.f32 %v1753, %v1754
    %v1756 = vrot.slane %v1755, 2
    %v1757 = vadd.f32 %v1755, %v1756
    %v1758 = vrot.slane %v1757, 1
    %v1759 = vadd.f32 %v1757, %v1758
    %v1760 = vadd.f32 %v1590, %v1592
    %v1761 = vrot.slane %v1760, 4
    %v1762 = vadd.f32 %v1760, %v1761
    %v1763 = vrot.slane %v1762, 2
    %v1764 = vadd.f32 %v1762, %v1763
    %v1765 = vrot.slane %v1764, 1
    %v1766 = vadd.f32 %v1764, %v1765
    %v1767 = vadd.f32 %v1593, %v1595
    %v1768 = vrot.slane %v1767, 4
    %v1769 = vadd.f32 %v1767, %v1768
    %v1770 = vrot.slane %v1769, 2
    %v1771 = vadd.f32 %v1769, %v1770
    %v1772 = vrot.slane %v1771, 1
    %v1773 = vadd.f32 %v1771, %v1772
    %v1774 = vadd.f32 %v1594, %v1596
    %v1775 = vrot.slane %v1774, 4
    %v1776 = vadd.f32 %v1774, %v1775
    %v1777 = vrot.slane %v1776, 2
    %v1778 = vadd.f32 %v1776, %v1777
    %v1779 = vrot.slane %v1778, 1
    %v1780 = vadd.f32 %v1778, %v1779
    %v1781 = vadd.f32 %v1597, %v1599
    %v1782 = vrot.slane %v1781, 4
    %v1783 = vadd.f32 %v1781, %v1782
    %v1784 = vrot.slane %v1783, 2
    %v1785 = vadd.f32 %v1783, %v1784
    %v1786 = vrot.slane %v1785, 1
    %v1787 = vadd.f32 %v1785, %v1786
    %v1788 = vadd.f32 %v1598, %v1600
    %v1789 = vrot.slane %v1788, 4
    %v1790 = vadd.f32 %v1788, %v1789
    %v1791 = vrot.slane %v1790, 2
    %v1792 = vadd.f32 %v1790, %v1791
    %v1793 = vrot.slane %v1792, 1
    %v1794 = vadd.f32 %v1792, %v1793
    %v1795 = vadd.f32 %v1601, %v1603
    %v1796 = vrot.slane %v1795, 4
    %v1797 = vadd.f32 %v1795, %v1796
    %v1798 = vrot.slane %v1797, 2
    %v1799 = vadd.f32 %v1797, %v1798
    %v1800 = vrot.slane %v1799, 1
    %v1801 = vadd.f32 %v1799, %v1800
    %v1802 = vadd.f32 %v1602, %v1604
    %v1803 = vrot.slane %v1802, 4
    %v1804 = vadd.f32 %v1802, %v1803
    %v1805 = vrot.slane %v1804, 2
    %v1806 = vadd.f32 %v1804, %v1805
    %v1807 = vrot.slane %v1806, 1
    %v1808 = vadd.f32 %v1806, %v1807
    %v1809 = vadd.f32 %v1605, %v1607
    %v1810 = vrot.slane %v1809, 4
    %v1811 = vadd.f32 %v1809, %v1810
    %v1812 = vrot.slane %v1811, 2
    %v1813 = vadd.f32 %v1811, %v1812
    %v1814 = vrot.slane %v1813, 1
    %v1815 = vadd.f32 %v1813, %v1814
    %v1816 = vadd.f32 %v1606, %v1608
    %v1817 = vrot.slane %v1816, 4
    %v1818 = vadd.f32 %v1816, %v1817
    %v1819 = vrot.slane %v1818, 2
    %v1820 = vadd.f32 %v1818, %v1819
    %v1821 = vrot.slane %v1820, 1
    %v1822 = vadd.f32 %v1820, %v1821
    %v1823 = vadd.f32 %v1609, %v1611
    %v1824 = vrot.slane %v1823, 4
    %v1825 = vadd.f32 %v1823, %v1824
    %v1826 = vrot.slane %v1825, 2
    %v1827 = vadd.f32 %v1825, %v1826
    %v1828 = vrot.slane %v1827, 1
    %v1829 = vadd.f32 %v1827, %v1828
    %v1830 = vadd.f32 %v1610, %v1612
    %v1831 = vrot.slane %v1830, 4
    %v1832 = vadd.f32 %v1830, %v1831
    %v1833 = vrot.slane %v1832, 2
    %v1834 = vadd.f32 %v1832, %v1833
    %v1835 = vrot.slane %v1834, 1
    %v1836 = vadd.f32 %v1834, %v1835
    %v1837 = vpack.c.bf16 %v884, %v884
    %v1838 = vpack.c.bf16 %v888, %v888
    %v1871 = vunpack.c.l.b16 %v141
    %v1872 = vunpack.c.h.b16 %v141
    %v1873 = vunpack.c.l.b16 %v142
    %v1874 = vunpack.c.h.b16 %v142
    %v1875 = vunpack.c.l.b16 %v143
    %v1876 = vunpack.c.h.b16 %v143
    %v1877 = vunpack.c.l.b16 %v144
    %v1878 = vunpack.c.h.b16 %v144
    %v1879 = vunpack.c.l.b16 %v145
    %v1880 = vunpack.c.h.b16 %v145
    %v1881 = vunpack.c.l.b16 %v146
    %v1882 = vunpack.c.h.b16 %v146
    %v1883 = vunpack.c.l.b16 %v147
    %v1884 = vunpack.c.h.b16 %v147
    %v1885 = vunpack.c.l.b16 %v148
    %v1886 = vunpack.c.h.b16 %v148
    %v1887 = vunpack.c.l.b16 %v149
    %v1888 = vunpack.c.h.b16 %v149
    %v1889 = vunpack.c.l.b16 %v150
    %v1890 = vunpack.c.h.b16 %v150
    %v1891 = vunpack.c.l.b16 %v151
    %v1892 = vunpack.c.h.b16 %v151
    %v1893 = vunpack.c.l.b16 %v152
    %v1894 = vunpack.c.h.b16 %v152
    %v1895 = vunpack.c.l.b16 %v153
    %v1896 = vunpack.c.h.b16 %v153
    %v1897 = vunpack.c.l.b16 %v154
    %v1898 = vunpack.c.h.b16 %v154
    %v1899 = vunpack.c.l.b16 %v155
    %v1900 = vunpack.c.h.b16 %v155
    %v1901 = vunpack.c.l.b16 %v156
    %v1902 = vunpack.c.h.b16 %v156
    %v1903 = vunpack.c.l.b16 %v157
    %v1904 = vunpack.c.h.b16 %v157
    %v1905 = vunpack.c.l.b16 %v158
    %v1906 = vunpack.c.h.b16 %v158
    %v1907 = vunpack.c.l.b16 %v159
    %v1908 = vunpack.c.h.b16 %v159
    %v1909 = vunpack.c.l.b16 %v160
    %v1910 = vunpack.c.h.b16 %v160
    %v1911 = vunpack.c.l.b16 %v161
    %v1912 = vunpack.c.h.b16 %v161
    %v1913 = vunpack.c.l.b16 %v162
    %v1914 = vunpack.c.h.b16 %v162
    %v1915 = vunpack.c.l.b16 %v163
    %v1916 = vunpack.c.h.b16 %v163
    %v1917 = vunpack.c.l.b16 %v164
    %v1918 = vunpack.c.h.b16 %v164
    %v1919 = vunpack.c.l.b16 %v165
    %v1920 = vunpack.c.h.b16 %v165
    %v1921 = vunpack.c.l.b16 %v166
    %v1922 = vunpack.c.h.b16 %v166
    %v1923 = vunpack.c.l.b16 %v167
    %v1924 = vunpack.c.h.b16 %v167
    %v1925 = vunpack.c.l.b16 %v168
    %v1926 = vunpack.c.h.b16 %v168
    %v1927 = vunpack.c.l.b16 %v169
    %v1928 = vunpack.c.h.b16 %v169
    %v1929 = vunpack.c.l.b16 %v170
    %v1930 = vunpack.c.h.b16 %v170
    %v1931 = vunpack.c.l.b16 %v171
    %v1932 = vunpack.c.h.b16 %v171
    %v1933 = vunpack.c.l.b16 %v172
    %v1934 = vunpack.c.h.b16 %v172
    %v1935 = vpack.c.b16 %v1873, %v1871
    %v1936 = vpack.c.b16 %v1874, %v1872
    %v1937 = vpack.c.b16 %v1877, %v1875
    %v1938 = vpack.c.b16 %v1878, %v1876
    %v1939 = vpack.c.b16 %v1881, %v1879
    %v1940 = vpack.c.b16 %v1882, %v1880
    %v1941 = vpack.c.b16 %v1885, %v1883
    %v1942 = vpack.c.b16 %v1886, %v1884
    %v1943 = vpack.c.b16 %v1889, %v1887
    %v1944 = vpack.c.b16 %v1890, %v1888
    %v1945 = vpack.c.b16 %v1893, %v1891
    %v1946 = vpack.c.b16 %v1894, %v1892
    %v1947 = vpack.c.b16 %v1897, %v1895
    %v1948 = vpack.c.b16 %v1898, %v1896
    %v1949 = vpack.c.b16 %v1901, %v1899
    %v1950 = vpack.c.b16 %v1902, %v1900
    %v1951 = vpack.c.b16 %v1905, %v1903
    %v1952 = vpack.c.b16 %v1906, %v1904
    %v1953 = vpack.c.b16 %v1909, %v1907
    %v1954 = vpack.c.b16 %v1910, %v1908
    %v1955 = vpack.c.b16 %v1913, %v1911
    %v1956 = vpack.c.b16 %v1914, %v1912
    %v1957 = vpack.c.b16 %v1917, %v1915
    %v1958 = vpack.c.b16 %v1918, %v1916
    %v1959 = vpack.c.b16 %v1921, %v1919
    %v1960 = vpack.c.b16 %v1922, %v1920
    %v1961 = vpack.c.b16 %v1925, %v1923
    %v1962 = vpack.c.b16 %v1926, %v1924
    %v1963 = vpack.c.b16 %v1929, %v1927
    %v1964 = vpack.c.b16 %v1930, %v1928
    %v1965 = vpack.c.b16 %v1933, %v1931
    %v1966 = vpack.c.b16 %v1934, %v1932
    %vm2031 = vcmask 1041409
    %v2032 = vsel %vm2031, %v1633, %v1619
    %vm2033 = vcmask 1042434
    %v2034 = vsel %vm2033, %v1647, %v2032
    %vm2035 = vcmask 1043459
    %v2036 = vsel %vm2035, %v1661, %v2034
    %vm2037 = vcmask 1044484
    %v2038 = vsel %vm2037, %v1675, %v2036
    %vm2039 = vcmask 1045509
    %v2040 = vsel %vm2039, %v1689, %v2038
    %vm2041 = vcmask 1046534
    %v2042 = vsel %vm2041, %v1703, %v2040
    %vm2043 = vcmask 1047559
    %v2044 = vsel %vm2043, %v1717, %v2042
    %v2045 = vsel %vm2031, %v1640, %v1626
    %v2046 = vsel %vm2033, %v1654, %v2045
    %v2047 = vsel %vm2035, %v1668, %v2046
    %v2048 = vsel %vm2037, %v1682, %v2047
    %v2049 = vsel %vm2039, %v1696, %v2048
    %v2050 = vsel %vm2041, %v1710, %v2049
    %v2051 = vsel %vm2043, %v1724, %v2050
    %v2052 = vsel %vm2031, %v1745, %v1731
    %v2053 = vsel %vm2033, %v1759, %v2052
    %v2054 = vsel %vm2035, %v1773, %v2053
    %v2055 = vsel %vm2037, %v1787, %v2054
    %v2056 = vsel %vm2039, %v1801, %v2055
    %v2057 = vsel %vm2041, %v1815, %v2056
    %v2058 = vsel %vm2043, %v1829, %v2057
    %v2059 = vsel %vm2031, %v1752, %v1738
    %v2060 = vsel %vm2033, %v1766, %v2059
    %v2061 = vsel %vm2035, %v1780, %v2060
    %v2062 = vsel %vm2037, %v1794, %v2061
    %v2063 = vsel %vm2039, %v1808, %v2062
    %v2064 = vsel %vm2041, %v1822, %v2063
    %v2065 = vsel %vm2043, %v1836, %v2064
    %2070 = vmatprep.subr.bf16.mxu0 %v1936
    %2071 = vmatpush1.bf16.msra.mxu0 %v1935
    %2072 = vmatprep.subr.bf16.mxu0 %v1938
    %2073 = vmatpush1.bf16.msra.mxu0 %v1937
    %2074 = vmatprep.subr.bf16.mxu0 %v1940
    %2075 = vmatpush1.bf16.msra.mxu0 %v1939
    %2076 = vmatprep.subr.bf16.mxu0 %v1942
    %2077 = vmatpush1.bf16.msra.mxu0 %v1941
    %2078 = vmatprep.subr.bf16.mxu0 %v1944
    %2079 = vmatpush1.bf16.msra.mxu0 %v1943
    %2080 = vmatprep.subr.bf16.mxu0 %v1946
    %2081 = vmatpush1.bf16.msra.mxu0 %v1945
    %2082 = vmatprep.subr.bf16.mxu0 %v1948
    %2083 = vmatpush1.bf16.msra.mxu0 %v1947
    %2084 = vmatprep.subr.bf16.mxu0 %v1950
    %2085 = vmatpush1.bf16.msra.mxu0 %v1949
    %2086 = vmatprep.subr.bf16.mxu0 %v1952
    %2087 = vmatpush1.bf16.msra.mxu0 %v1951
    %2088 = vmatprep.subr.bf16.mxu0 %v1954
    %2089 = vmatpush1.bf16.msra.mxu0 %v1953
    %2090 = vmatprep.subr.bf16.mxu0 %v1956
    %2091 = vmatpush1.bf16.msra.mxu0 %v1955
    %2092 = vmatprep.subr.bf16.mxu0 %v1958
    %2093 = vmatpush1.bf16.msra.mxu0 %v1957
    %2094 = vmatprep.subr.bf16.mxu0 %v1960
    %2095 = vmatpush1.bf16.msra.mxu0 %v1959
    %2096 = vmatprep.subr.bf16.mxu0 %v1962
    %2097 = vmatpush1.bf16.msra.mxu0 %v1961
    %2098 = vmatprep.subr.bf16.mxu0 %v1964
    %2099 = vmatpush1.bf16.msra.mxu0 %v1963
    %2100 = vmatprep.subr.bf16.mxu0 %v1966
    %2101 = vmatpush1.bf16.msra.mxu0 %v1965
    %2102 = vmatprep.mubr.bf16.mxu0 %v1838
    %2103 = vmatmul.mubr.bf16.gmra.mrb[0].mxu0 %v1837
    %v2104 = vpop.f32.mrb[0].mxu0
    %v2105 = vadd.f32 %v2044, %v2104
    %v2106 = vpop.f32.mrb[0].mxu0
    %v2107 = vadd.f32 %v2051, %v2106
    %v2108 = vpop.f32.mrb[0].mxu0
    %v2109 = vadd.f32 %v2058, %v2108
    %v2110 = vpop.f32.mrb[0].mxu0
    %v2111 = vadd.f32 %v2065, %v2110
    %2112 = vdwg.mxu0
    %v2117 = vcombine.low %v2105, %v2107
    %v2118 = vcombine.high %v2105, %v2107
    %v2120 = vunpack.c.l.s4 1966171168
    %v2121 = vunpack.c.0.s8 %v2120
    %v2122 = vlaneseq
    %v2123 = vshrl.u32 %v2122, 7
    %v2124 = vsub.s32 %v2121, %v2123
    %v2125 = vrot.slane %v2117, %v2124
    %v2127 = vunpack.c.l.s4 1966171168
    %v2128 = vunpack.c.0.s8 %v2127
    %v2129 = vlaneseq
    %v2130 = vshrl.u32 %v2129, 7
    %v2131 = vsub.s32 %v2128, %v2130
    %v2132 = vrot.slane %v2118, %v2131
    %v2133 = vcombine.high %v2125, %v2125
    %v2134 = vcombine.high %v2132, %v2132
    %v2136 = vunpack.c.l.s4 1966171168
    %v2137 = vunpack.c.0.s8 %v2136
    %v2138 = vlaneseq
    %v2139 = vshrl.u32 %v2138, 7
    %v2140 = vsub.s32 %v2137, %v2139
    %v2141 = vrot.slane %v2125, %v2140
    %v2143 = vunpack.c.l.s4 1966171168
    %v2144 = vunpack.c.0.s8 %v2143
    %v2145 = vlaneseq
    %v2146 = vshrl.u32 %v2145, 7
    %v2147 = vsub.s32 %v2144, %v2146
    %v2148 = vrot.slane %v2132, %v2147
    %v2150 = vunpack.c.l.s4 1966171168
    %v2151 = vunpack.c.0.s8 %v2150
    %v2152 = vlaneseq
    %v2153 = vshrl.u32 %v2152, 7
    %v2154 = vsub.s32 %v2151, %v2153
    %v2155 = vrot.slane %v2133, %v2154
    %v2157 = vunpack.c.l.s4 1966171168
    %v2158 = vunpack.c.0.s8 %v2157
    %v2159 = vlaneseq
    %v2160 = vshrl.u32 %v2159, 7
    %v2161 = vsub.s32 %v2158, %v2160
    %v2162 = vrot.slane %v2134, %v2161
    %v2163 = vcombine.high %v2141, %v2141
    %v2164 = vcombine.high %v2148, %v2148
    %v2165 = vcombine.high %v2155, %v2155
    %v2166 = vcombine.high %v2162, %v2162
    %v2167 = vcombine.low %v2109, %v2111
    %v2168 = vcombine.high %v2109, %v2111
    %v2170 = vunpack.c.l.s4 1966171168
    %v2171 = vunpack.c.0.s8 %v2170
    %v2172 = vlaneseq
    %v2173 = vshrl.u32 %v2172, 7
    %v2174 = vsub.s32 %v2171, %v2173
    %v2175 = vrot.slane %v2167, %v2174
    %v2177 = vunpack.c.l.s4 1966171168
    %v2178 = vunpack.c.0.s8 %v2177
    %v2179 = vlaneseq
    %v2180 = vshrl.u32 %v2179, 7
    %v2181 = vsub.s32 %v2178, %v2180
    %v2182 = vrot.slane %v2168, %v2181
    %v2183 = vcombine.high %v2175, %v2175
    %v2184 = vcombine.high %v2182, %v2182
    %v2186 = vunpack.c.l.s4 1966171168
    %v2187 = vunpack.c.0.s8 %v2186
    %v2188 = vlaneseq
    %v2189 = vshrl.u32 %v2188, 7
    %v2190 = vsub.s32 %v2187, %v2189
    %v2191 = vrot.slane %v2175, %v2190
    %v2193 = vunpack.c.l.s4 1966171168
    %v2194 = vunpack.c.0.s8 %v2193
    %v2195 = vlaneseq
    %v2196 = vshrl.u32 %v2195, 7
    %v2197 = vsub.s32 %v2194, %v2196
    %v2198 = vrot.slane %v2182, %v2197
    %v2200 = vunpack.c.l.s4 1966171168
    %v2201 = vunpack.c.0.s8 %v2200
    %v2202 = vlaneseq
    %v2203 = vshrl.u32 %v2202, 7
    %v2204 = vsub.s32 %v2201, %v2203
    %v2205 = vrot.slane %v2183, %v2204
    %v2207 = vunpack.c.l.s4 1966171168
    %v2208 = vunpack.c.0.s8 %v2207
    %v2209 = vlaneseq
    %v2210 = vshrl.u32 %v2209, 7
    %v2211 = vsub.s32 %v2208, %v2210
    %v2212 = vrot.slane %v2184, %v2211
    %v2213 = vcombine.high %v2191, %v2191
    %v2214 = vcombine.high %v2198, %v2198
    %v2215 = vcombine.high %v2205, %v2205
    %v2216 = vcombine.high %v2212, %v2212
    %v2217 = vlaneseq
    %v2218 = vshrl.u32 %v2217, 7
    %v2219 = vsub.s32 0, %v2218
    %v2220 = vrot.slane %v2141, %v2219
    %v2221 = vlaneseq
    %v2222 = vshrl.u32 %v2221, 7
    %v2223 = vsub.s32 1, %v2222
    %v2224 = vrot.slane %v2141, %v2223
    %v2225 = vlaneseq
    %v2226 = vshrl.u32 %v2225, 7
    %v2227 = vsub.s32 0, %v2226
    %v2228 = vrot.slane %v2155, %v2227
    %v2229 = vlaneseq
    %v2230 = vshrl.u32 %v2229, 7
    %v2231 = vsub.s32 1, %v2230
    %v2232 = vrot.slane %v2155, %v2231
    %v2233 = vlaneseq
    %v2234 = vshrl.u32 %v2233, 7
    %v2235 = vsub.s32 0, %v2234
    %v2236 = vrot.slane %v2163, %v2235
    %v2237 = vlaneseq
    %v2238 = vshrl.u32 %v2237, 7
    %v2239 = vsub.s32 1, %v2238
    %v2240 = vrot.slane %v2163, %v2239
    %v2241 = vlaneseq
    %v2242 = vshrl.u32 %v2241, 7
    %v2243 = vsub.s32 0, %v2242
    %v2244 = vrot.slane %v2165, %v2243
    %v2245 = vlaneseq
    %v2246 = vshrl.u32 %v2245, 7
    %v2247 = vsub.s32 1, %v2246
    %v2248 = vrot.slane %v2165, %v2247
    %v2249 = vlaneseq
    %v2250 = vshrl.u32 %v2249, 7
    %v2251 = vsub.s32 0, %v2250
    %v2252 = vrot.slane %v2148, %v2251
    %v2253 = vlaneseq
    %v2254 = vshrl.u32 %v2253, 7
    %v2255 = vsub.s32 1, %v2254
    %v2256 = vrot.slane %v2148, %v2255
    %v2257 = vlaneseq
    %v2258 = vshrl.u32 %v2257, 7
    %v2259 = vsub.s32 0, %v2258
    %v2260 = vrot.slane %v2162, %v2259
    %v2261 = vlaneseq
    %v2262 = vshrl.u32 %v2261, 7
    %v2263 = vsub.s32 1, %v2262
    %v2264 = vrot.slane %v2162, %v2263
    %v2265 = vlaneseq
    %v2266 = vshrl.u32 %v2265, 7
    %v2267 = vsub.s32 0, %v2266
    %v2268 = vrot.slane %v2164, %v2267
    %v2269 = vlaneseq
    %v2270 = vshrl.u32 %v2269, 7
    %v2271 = vsub.s32 1, %v2270
    %v2272 = vrot.slane %v2164, %v2271
    %v2273 = vlaneseq
    %v2274 = vshrl.u32 %v2273, 7
    %v2275 = vsub.s32 0, %v2274
    %v2276 = vrot.slane %v2166, %v2275
    %v2277 = vlaneseq
    %v2278 = vshrl.u32 %v2277, 7
    %v2279 = vsub.s32 1, %v2278
    %v2280 = vrot.slane %v2166, %v2279
    %v2281 = vlaneseq
    %v2282 = vshrl.u32 %v2281, 7
    %v2283 = vsub.s32 0, %v2282
    %v2284 = vrot.slane %v2191, %v2283
    %v2285 = vlaneseq
    %v2286 = vshrl.u32 %v2285, 7
    %v2287 = vsub.s32 1, %v2286
    %v2288 = vrot.slane %v2191, %v2287
    %v2289 = vlaneseq
    %v2290 = vshrl.u32 %v2289, 7
    %v2291 = vsub.s32 0, %v2290
    %v2292 = vrot.slane %v2205, %v2291
    %v2293 = vlaneseq
    %v2294 = vshrl.u32 %v2293, 7
    %v2295 = vsub.s32 1, %v2294
    %v2296 = vrot.slane %v2205, %v2295
    %v2297 = vlaneseq
    %v2298 = vshrl.u32 %v2297, 7
    %v2299 = vsub.s32 0, %v2298
    %v2300 = vrot.slane %v2213, %v2299
    %v2301 = vlaneseq
    %v2302 = vshrl.u32 %v2301, 7
    %v2303 = vsub.s32 1, %v2302
    %v2304 = vrot.slane %v2213, %v2303
    %v2305 = vlaneseq
    %v2306 = vshrl.u32 %v2305, 7
    %v2307 = vsub.s32 0, %v2306
    %v2308 = vrot.slane %v2215, %v2307
    %v2309 = vlaneseq
    %v2310 = vshrl.u32 %v2309, 7
    %v2311 = vsub.s32 1, %v2310
    %v2312 = vrot.slane %v2215, %v2311
    %v2313 = vlaneseq
    %v2314 = vshrl.u32 %v2313, 7
    %v2315 = vsub.s32 0, %v2314
    %v2316 = vrot.slane %v2198, %v2315
    %v2317 = vlaneseq
    %v2318 = vshrl.u32 %v2317, 7
    %v2319 = vsub.s32 1, %v2318
    %v2320 = vrot.slane %v2198, %v2319
    %v2321 = vlaneseq
    %v2322 = vshrl.u32 %v2321, 7
    %v2323 = vsub.s32 0, %v2322
    %v2324 = vrot.slane %v2212, %v2323
    %v2325 = vlaneseq
    %v2326 = vshrl.u32 %v2325, 7
    %v2327 = vsub.s32 1, %v2326
    %v2328 = vrot.slane %v2212, %v2327
    %v2329 = vlaneseq
    %v2330 = vshrl.u32 %v2329, 7
    %v2331 = vsub.s32 0, %v2330
    %v2332 = vrot.slane %v2214, %v2331
    %v2333 = vlaneseq
    %v2334 = vshrl.u32 %v2333, 7
    %v2335 = vsub.s32 1, %v2334
    %v2336 = vrot.slane %v2214, %v2335
    %v2337 = vlaneseq
    %v2338 = vshrl.u32 %v2337, 7
    %v2339 = vsub.s32 0, %v2338
    %v2340 = vrot.slane %v2216, %v2339
    %v2341 = vlaneseq
    %v2342 = vshrl.u32 %v2341, 7
    %v2343 = vsub.s32 1, %v2342
    %v2344 = vrot.slane %v2216, %v2343
    %v2377 = vmul.f32 %v528, %v2220
    %v2378 = vmul.f32 %v530, %v2224
    %v2379 = vmul.f32 %v532, %v2220
    %v2380 = vmul.f32 %v534, %v2224
    %v2381 = vmul.f32 %v538, %v2228
    %v2382 = vmul.f32 %v540, %v2232
    %v2383 = vmul.f32 %v542, %v2228
    %v2384 = vmul.f32 %v544, %v2232
    %v2385 = vmul.f32 %v548, %v2236
    %v2386 = vmul.f32 %v550, %v2240
    %v2387 = vmul.f32 %v552, %v2236
    %v2388 = vmul.f32 %v554, %v2240
    %v2389 = vmul.f32 %v558, %v2244
    %v2390 = vmul.f32 %v560, %v2248
    %v2391 = vmul.f32 %v562, %v2244
    %v2392 = vmul.f32 %v564, %v2248
    %v2393 = vmul.f32 %v568, %v2252
    %v2394 = vmul.f32 %v570, %v2256
    %v2395 = vmul.f32 %v572, %v2252
    %v2396 = vmul.f32 %v574, %v2256
    %v2397 = vmul.f32 %v578, %v2260
    %v2398 = vmul.f32 %v580, %v2264
    %v2399 = vmul.f32 %v582, %v2260
    %v2400 = vmul.f32 %v584, %v2264
    %v2401 = vmul.f32 %v588, %v2268
    %v2402 = vmul.f32 %v590, %v2272
    %v2403 = vmul.f32 %v592, %v2268
    %v2404 = vmul.f32 %v594, %v2272
    %v2405 = vmul.f32 %v598, %v2276
    %v2406 = vmul.f32 %v600, %v2280
    %v2407 = vmul.f32 %v602, %v2276
    %v2408 = vmul.f32 %v604, %v2280
    %v2409 = vmul.f32 %v608, %v2284
    %v2410 = vmul.f32 %v610, %v2288
    %v2411 = vmul.f32 %v612, %v2284
    %v2412 = vmul.f32 %v614, %v2288
    %v2413 = vmul.f32 %v618, %v2292
    %v2414 = vmul.f32 %v620, %v2296
    %v2415 = vmul.f32 %v622, %v2292
    %v2416 = vmul.f32 %v624, %v2296
    %v2417 = vmul.f32 %v628, %v2300
    %v2418 = vmul.f32 %v630, %v2304
    %v2419 = vmul.f32 %v632, %v2300
    %v2420 = vmul.f32 %v634, %v2304
    %v2421 = vmul.f32 %v638, %v2308
    %v2422 = vmul.f32 %v640, %v2312
    %v2423 = vmul.f32 %v642, %v2308
    %v2424 = vmul.f32 %v644, %v2312
    %v2425 = vmul.f32 %v648, %v2316
    %v2426 = vmul.f32 %v650, %v2320
    %v2427 = vmul.f32 %v652, %v2316
    %v2428 = vmul.f32 %v654, %v2320
    %v2429 = vmul.f32 %v658, %v2324
    %v2430 = vmul.f32 %v660, %v2328
    %v2431 = vmul.f32 %v662, %v2324
    %v2432 = vmul.f32 %v664, %v2328
    %v2433 = vmul.f32 %v668, %v2332
    %v2434 = vmul.f32 %v670, %v2336
    %v2435 = vmul.f32 %v672, %v2332
    %v2436 = vmul.f32 %v674, %v2336
    %v2437 = vmul.f32 %v678, %v2340
    %v2438 = vmul.f32 %v680, %v2344
    %v2439 = vmul.f32 %v682, %v2340
    %v2440 = vmul.f32 %v684, %v2344
    %v2441 = vadd.f32 %v2377, %v2378
    %2442 = vadd.xlane.f32.xlu0 %v2441
    %v2443 = vpop.xlane.xlu0 %2442
    %v2444 = vadd.f32 %v2379, %v2380
    %2445 = vadd.xlane.f32.xlu0 %v2444
    %v2446 = vpop.xlane.xlu0 %2445
    %v2447 = vadd.f32 %v2381, %v2382
    %2448 = vadd.xlane.f32.xlu0 %v2447
    %v2449 = vpop.xlane.xlu0 %2448
    %v2450 = vadd.f32 %v2383, %v2384
    %2451 = vadd.xlane.f32.xlu0 %v2450
    %v2452 = vpop.xlane.xlu0 %2451
    %v2453 = vadd.f32 %v2385, %v2386
    %2454 = vadd.xlane.f32.xlu0 %v2453
    %v2455 = vpop.xlane.xlu0 %2454
    %v2456 = vadd.f32 %v2387, %v2388
    %2457 = vadd.xlane.f32.xlu0 %v2456
    %v2458 = vpop.xlane.xlu0 %2457
    %v2459 = vadd.f32 %v2389, %v2390
    %2460 = vadd.xlane.f32.xlu0 %v2459
    %v2461 = vpop.xlane.xlu0 %2460
    %v2462 = vadd.f32 %v2391, %v2392
    %2463 = vadd.xlane.f32.xlu0 %v2462
    %v2464 = vpop.xlane.xlu0 %2463
    %v2465 = vadd.f32 %v2393, %v2394
    %2466 = vadd.xlane.f32.xlu0 %v2465
    %v2467 = vpop.xlane.xlu0 %2466
    %v2468 = vadd.f32 %v2395, %v2396
    %2469 = vadd.xlane.f32.xlu0 %v2468
    %v2470 = vpop.xlane.xlu0 %2469
    %v2471 = vadd.f32 %v2397, %v2398
    %2472 = vadd.xlane.f32.xlu0 %v2471
    %v2473 = vpop.xlane.xlu0 %2472
    %v2474 = vadd.f32 %v2399, %v2400
    %2475 = vadd.xlane.f32.xlu0 %v2474
    %v2476 = vpop.xlane.xlu0 %2475
    %v2477 = vadd.f32 %v2401, %v2402
    %2478 = vadd.xlane.f32.xlu0 %v2477
    %v2479 = vpop.xlane.xlu0 %2478
    %v2480 = vadd.f32 %v2403, %v2404
    %2481 = vadd.xlane.f32.xlu0 %v2480
    %v2482 = vpop.xlane.xlu0 %2481
    %v2483 = vadd.f32 %v2405, %v2406
    %2484 = vadd.xlane.f32.xlu0 %v2483
    %v2485 = vpop.xlane.xlu0 %2484
    %v2486 = vadd.f32 %v2407, %v2408
    %2487 = vadd.xlane.f32.xlu0 %v2486
    %v2488 = vpop.xlane.xlu0 %2487
    %v2489 = vadd.f32 %v2409, %v2410
    %2490 = vadd.xlane.f32.xlu0 %v2489
    %v2491 = vpop.xlane.xlu0 %2490
    %v2492 = vadd.f32 %v2411, %v2412
    %2493 = vadd.xlane.f32.xlu0 %v2492
    %v2494 = vpop.xlane.xlu0 %2493
    %v2495 = vadd.f32 %v2413, %v2414
    %2496 = vadd.xlane.f32.xlu0 %v2495
    %v2497 = vpop.xlane.xlu0 %2496
    %v2498 = vadd.f32 %v2415, %v2416
    %2499 = vadd.xlane.f32.xlu0 %v2498
    %v2500 = vpop.xlane.xlu0 %2499
    %v2501 = vadd.f32 %v2417, %v2418
    %2502 = vadd.xlane.f32.xlu0 %v2501
    %v2503 = vpop.xlane.xlu0 %2502
    %v2504 = vadd.f32 %v2419, %v2420
    %2505 = vadd.xlane.f32.xlu0 %v2504
    %v2506 = vpop.xlane.xlu0 %2505
    %v2507 = vadd.f32 %v2421, %v2422
    %2508 = vadd.xlane.f32.xlu0 %v2507
    %v2509 = vpop.xlane.xlu0 %2508
    %v2510 = vadd.f32 %v2423, %v2424
    %2511 = vadd.xlane.f32.xlu0 %v2510
    %v2512 = vpop.xlane.xlu0 %2511
    %v2513 = vadd.f32 %v2425, %v2426
    %2514 = vadd.xlane.f32.xlu0 %v2513
    %v2515 = vpop.xlane.xlu0 %2514
    %v2516 = vadd.f32 %v2427, %v2428
    %2517 = vadd.xlane.f32.xlu0 %v2516
    %v2518 = vpop.xlane.xlu0 %2517
    %v2519 = vadd.f32 %v2429, %v2430
    %2520 = vadd.xlane.f32.xlu0 %v2519
    %v2521 = vpop.xlane.xlu0 %2520
    %v2522 = vadd.f32 %v2431, %v2432
    %2523 = vadd.xlane.f32.xlu0 %v2522
    %v2524 = vpop.xlane.xlu0 %2523
    %v2525 = vadd.f32 %v2433, %v2434
    %2526 = vadd.xlane.f32.xlu0 %v2525
    %v2527 = vpop.xlane.xlu0 %2526
    %v2528 = vadd.f32 %v2435, %v2436
    %2529 = vadd.xlane.f32.xlu0 %v2528
    %v2530 = vpop.xlane.xlu0 %2529
    %v2531 = vadd.f32 %v2437, %v2438
    %2532 = vadd.xlane.f32.xlu0 %v2531
    %v2533 = vpop.xlane.xlu0 %2532
    %v2534 = vadd.f32 %v2439, %v2440
    %2535 = vadd.xlane.f32.xlu0 %v2534
    %v2536 = vpop.xlane.xlu0 %2535
    %v2537 = vmax.f32 %v2443, %v2446
    %v2538 = vrot.slane %v2537, 4
    %v2539 = vmax.f32 %v2537, %v2538
    %v2540 = vrot.slane %v2539, 2
    %v2541 = vmax.f32 %v2539, %v2540
    %v2542 = vrot.slane %v2541, 1
    %v2543 = vmax.f32 %v2541, %v2542
    %v2544 = vmax.f32 %v2449, %v2452
    %v2545 = vrot.slane %v2544, 4
    %v2546 = vmax.f32 %v2544, %v2545
    %v2547 = vrot.slane %v2546, 2
    %v2548 = vmax.f32 %v2546, %v2547
    %v2549 = vrot.slane %v2548, 1
    %v2550 = vmax.f32 %v2548, %v2549
    %v2551 = vmax.f32 %v2455, %v2458
    %v2552 = vrot.slane %v2551, 4
    %v2553 = vmax.f32 %v2551, %v2552
    %v2554 = vrot.slane %v2553, 2
    %v2555 = vmax.f32 %v2553, %v2554
    %v2556 = vrot.slane %v2555, 1
    %v2557 = vmax.f32 %v2555, %v2556
    %v2558 = vmax.f32 %v2461, %v2464
    %v2559 = vrot.slane %v2558, 4
    %v2560 = vmax.f32 %v2558, %v2559
    %v2561 = vrot.slane %v2560, 2
    %v2562 = vmax.f32 %v2560, %v2561
    %v2563 = vrot.slane %v2562, 1
    %v2564 = vmax.f32 %v2562, %v2563
    %v2565 = vmax.f32 %v2467, %v2470
    %v2566 = vrot.slane %v2565, 4
    %v2567 = vmax.f32 %v2565, %v2566
    %v2568 = vrot.slane %v2567, 2
    %v2569 = vmax.f32 %v2567, %v2568
    %v2570 = vrot.slane %v2569, 1
    %v2571 = vmax.f32 %v2569, %v2570
    %v2572 = vmax.f32 %v2473, %v2476
    %v2573 = vrot.slane %v2572, 4
    %v2574 = vmax.f32 %v2572, %v2573
    %v2575 = vrot.slane %v2574, 2
    %v2576 = vmax.f32 %v2574, %v2575
    %v2577 = vrot.slane %v2576, 1
    %v2578 = vmax.f32 %v2576, %v2577
    %v2579 = vmax.f32 %v2479, %v2482
    %v2580 = vrot.slane %v2579, 4
    %v2581 = vmax.f32 %v2579, %v2580
    %v2582 = vrot.slane %v2581, 2
    %v2583 = vmax.f32 %v2581, %v2582
    %v2584 = vrot.slane %v2583, 1
    %v2585 = vmax.f32 %v2583, %v2584
    %v2586 = vmax.f32 %v2485, %v2488
    %v2587 = vrot.slane %v2586, 4
    %v2588 = vmax.f32 %v2586, %v2587
    %v2589 = vrot.slane %v2588, 2
    %v2590 = vmax.f32 %v2588, %v2589
    %v2591 = vrot.slane %v2590, 1
    %v2592 = vmax.f32 %v2590, %v2591
    %v2593 = vmax.f32 %v2491, %v2494
    %v2594 = vrot.slane %v2593, 4
    %v2595 = vmax.f32 %v2593, %v2594
    %v2596 = vrot.slane %v2595, 2
    %v2597 = vmax.f32 %v2595, %v2596
    %v2598 = vrot.slane %v2597, 1
    %v2599 = vmax.f32 %v2597, %v2598
    %v2600 = vmax.f32 %v2497, %v2500
    %v2601 = vrot.slane %v2600, 4
    %v2602 = vmax.f32 %v2600, %v2601
    %v2603 = vrot.slane %v2602, 2
    %v2604 = vmax.f32 %v2602, %v2603
    %v2605 = vrot.slane %v2604, 1
    %v2606 = vmax.f32 %v2604, %v2605
    %v2607 = vmax.f32 %v2503, %v2506
    %v2608 = vrot.slane %v2607, 4
    %v2609 = vmax.f32 %v2607, %v2608
    %v2610 = vrot.slane %v2609, 2
    %v2611 = vmax.f32 %v2609, %v2610
    %v2612 = vrot.slane %v2611, 1
    %v2613 = vmax.f32 %v2611, %v2612
    %v2614 = vmax.f32 %v2509, %v2512
    %v2615 = vrot.slane %v2614, 4
    %v2616 = vmax.f32 %v2614, %v2615
    %v2617 = vrot.slane %v2616, 2
    %v2618 = vmax.f32 %v2616, %v2617
    %v2619 = vrot.slane %v2618, 1
    %v2620 = vmax.f32 %v2618, %v2619
    %v2621 = vmax.f32 %v2515, %v2518
    %v2622 = vrot.slane %v2621, 4
    %v2623 = vmax.f32 %v2621, %v2622
    %v2624 = vrot.slane %v2623, 2
    %v2625 = vmax.f32 %v2623, %v2624
    %v2626 = vrot.slane %v2625, 1
    %v2627 = vmax.f32 %v2625, %v2626
    %v2628 = vmax.f32 %v2521, %v2524
    %v2629 = vrot.slane %v2628, 4
    %v2630 = vmax.f32 %v2628, %v2629
    %v2631 = vrot.slane %v2630, 2
    %v2632 = vmax.f32 %v2630, %v2631
    %v2633 = vrot.slane %v2632, 1
    %v2634 = vmax.f32 %v2632, %v2633
    %v2635 = vmax.f32 %v2527, %v2530
    %v2636 = vrot.slane %v2635, 4
    %v2637 = vmax.f32 %v2635, %v2636
    %v2638 = vrot.slane %v2637, 2
    %v2639 = vmax.f32 %v2637, %v2638
    %v2640 = vrot.slane %v2639, 1
    %v2641 = vmax.f32 %v2639, %v2640
    %v2642 = vmax.f32 %v2533, %v2536
    %v2643 = vrot.slane %v2642, 4
    %v2644 = vmax.f32 %v2642, %v2643
    %v2645 = vrot.slane %v2644, 2
    %v2646 = vmax.f32 %v2644, %v2645
    %v2647 = vrot.slane %v2646, 1
    %v2648 = vmax.f32 %v2646, %v2647
    %v2649 = vsub.f32 %v2443, %v2543
    %v2650 = vsub.f32 %v2446, %v2543
    %v2651 = vsub.f32 %v2449, %v2550
    %v2652 = vsub.f32 %v2452, %v2550
    %v2653 = vsub.f32 %v2455, %v2557
    %v2654 = vsub.f32 %v2458, %v2557
    %v2655 = vsub.f32 %v2461, %v2564
    %v2656 = vsub.f32 %v2464, %v2564
    %v2657 = vsub.f32 %v2467, %v2571
    %v2658 = vsub.f32 %v2470, %v2571
    %v2659 = vsub.f32 %v2473, %v2578
    %v2660 = vsub.f32 %v2476, %v2578
    %v2661 = vsub.f32 %v2479, %v2585
    %v2662 = vsub.f32 %v2482, %v2585
    %v2663 = vsub.f32 %v2485, %v2592
    %v2664 = vsub.f32 %v2488, %v2592
    %v2665 = vsub.f32 %v2491, %v2599
    %v2666 = vsub.f32 %v2494, %v2599
    %v2667 = vsub.f32 %v2497, %v2606
    %v2668 = vsub.f32 %v2500, %v2606
    %v2669 = vsub.f32 %v2503, %v2613
    %v2670 = vsub.f32 %v2506, %v2613
    %v2671 = vsub.f32 %v2509, %v2620
    %v2672 = vsub.f32 %v2512, %v2620
    %v2673 = vsub.f32 %v2515, %v2627
    %v2674 = vsub.f32 %v2518, %v2627
    %v2675 = vsub.f32 %v2521, %v2634
    %v2676 = vsub.f32 %v2524, %v2634
    %v2677 = vsub.f32 %v2527, %v2641
    %v2678 = vsub.f32 %v2530, %v2641
    %v2679 = vsub.f32 %v2533, %v2648
    %v2680 = vsub.f32 %v2536, %v2648
    %v2681 = vmul.f32 %v2649, 1.442695
    %v2682 = vpow.pop %v2681
    %v2683 = vmul.f32 %v2650, 1.442695
    %v2684 = vpow.pop %v2683
    %v2685 = vmul.f32 %v2651, 1.442695
    %v2686 = vpow.pop %v2685
    %v2687 = vmul.f32 %v2652, 1.442695
    %v2688 = vpow.pop %v2687
    %v2689 = vmul.f32 %v2653, 1.442695
    %v2690 = vpow.pop %v2689
    %v2691 = vmul.f32 %v2654, 1.442695
    %v2692 = vpow.pop %v2691
    %v2693 = vmul.f32 %v2655, 1.442695
    %v2694 = vpow.pop %v2693
    %v2695 = vmul.f32 %v2656, 1.442695
    %v2696 = vpow.pop %v2695
    %v2697 = vmul.f32 %v2657, 1.442695
    %v2698 = vpow.pop %v2697
    %v2699 = vmul.f32 %v2658, 1.442695
    %v2700 = vpow.pop %v2699
    %v2701 = vmul.f32 %v2659, 1.442695
    %v2702 = vpow.pop %v2701
    %v2703 = vmul.f32 %v2660, 1.442695
    %v2704 = vpow.pop %v2703
    %v2705 = vmul.f32 %v2661, 1.442695
    %v2706 = vpow.pop %v2705
    %v2707 = vmul.f32 %v2662, 1.442695
    %v2708 = vpow.pop %v2707
    %v2709 = vmul.f32 %v2663, 1.442695
    %v2710 = vpow.pop %v2709
    %v2711 = vmul.f32 %v2664, 1.442695
    %v2712 = vpow.pop %v2711
    %v2713 = vmul.f32 %v2665, 1.442695
    %v2714 = vpow.pop %v2713
    %v2715 = vmul.f32 %v2666, 1.442695
    %v2716 = vpow.pop %v2715
    %v2717 = vmul.f32 %v2667, 1.442695
    %v2718 = vpow.pop %v2717
    %v2719 = vmul.f32 %v2668, 1.442695
    %v2720 = vpow.pop %v2719
    %v2721 = vmul.f32 %v2669, 1.442695
    %v2722 = vpow.pop %v2721
    %v2723 = vmul.f32 %v2670, 1.442695
    %v2724 = vpow.pop %v2723
    %v2725 = vmul.f32 %v2671, 1.442695
    %v2726 = vpow.pop %v2725
    %v2727 = vmul.f32 %v2672, 1.442695
    %v2728 = vpow.pop %v2727
    %v2729 = vmul.f32 %v2673, 1.442695
    %v2730 = vpow.pop %v2729
    %v2731 = vmul.f32 %v2674, 1.442695
    %v2732 = vpow.pop %v2731
    %v2733 = vmul.f32 %v2675, 1.442695
    %v2734 = vpow.pop %v2733
    %v2735 = vmul.f32 %v2676, 1.442695
    %v2736 = vpow.pop %v2735
    %v2737 = vmul.f32 %v2677, 1.442695
    %v2738 = vpow.pop %v2737
    %v2739 = vmul.f32 %v2678, 1.442695
    %v2740 = vpow.pop %v2739
    %v2741 = vmul.f32 %v2679, 1.442695
    %v2742 = vpow.pop %v2741
    %v2743 = vmul.f32 %v2680, 1.442695
    %v2744 = vpow.pop %v2743
    %v2745 = vadd.f32 %v2682, %v2684
    %v2746 = vrot.slane %v2745, 4
    %v2747 = vadd.f32 %v2745, %v2746
    %v2748 = vrot.slane %v2747, 2
    %v2749 = vadd.f32 %v2747, %v2748
    %v2750 = vrot.slane %v2749, 1
    %v2751 = vadd.f32 %v2749, %v2750
    %v2752 = vadd.f32 %v2686, %v2688
    %v2753 = vrot.slane %v2752, 4
    %v2754 = vadd.f32 %v2752, %v2753
    %v2755 = vrot.slane %v2754, 2
    %v2756 = vadd.f32 %v2754, %v2755
    %v2757 = vrot.slane %v2756, 1
    %v2758 = vadd.f32 %v2756, %v2757
    %v2759 = vadd.f32 %v2690, %v2692
    %v2760 = vrot.slane %v2759, 4
    %v2761 = vadd.f32 %v2759, %v2760
    %v2762 = vrot.slane %v2761, 2
    %v2763 = vadd.f32 %v2761, %v2762
    %v2764 = vrot.slane %v2763, 1
    %v2765 = vadd.f32 %v2763, %v2764
    %v2766 = vadd.f32 %v2694, %v2696
    %v2767 = vrot.slane %v2766, 4
    %v2768 = vadd.f32 %v2766, %v2767
    %v2769 = vrot.slane %v2768, 2
    %v2770 = vadd.f32 %v2768, %v2769
    %v2771 = vrot.slane %v2770, 1
    %v2772 = vadd.f32 %v2770, %v2771
    %v2773 = vadd.f32 %v2698, %v2700
    %v2774 = vrot.slane %v2773, 4
    %v2775 = vadd.f32 %v2773, %v2774
    %v2776 = vrot.slane %v2775, 2
    %v2777 = vadd.f32 %v2775, %v2776
    %v2778 = vrot.slane %v2777, 1
    %v2779 = vadd.f32 %v2777, %v2778
    %v2780 = vadd.f32 %v2702, %v2704
    %v2781 = vrot.slane %v2780, 4
    %v2782 = vadd.f32 %v2780, %v2781
    %v2783 = vrot.slane %v2782, 2
    %v2784 = vadd.f32 %v2782, %v2783
    %v2785 = vrot.slane %v2784, 1
    %v2786 = vadd.f32 %v2784, %v2785
    %v2787 = vadd.f32 %v2706, %v2708
    %v2788 = vrot.slane %v2787, 4
    %v2789 = vadd.f32 %v2787, %v2788
    %v2790 = vrot.slane %v2789, 2
    %v2791 = vadd.f32 %v2789, %v2790
    %v2792 = vrot.slane %v2791, 1
    %v2793 = vadd.f32 %v2791, %v2792
    %v2794 = vadd.f32 %v2710, %v2712
    %v2795 = vrot.slane %v2794, 4
    %v2796 = vadd.f32 %v2794, %v2795
    %v2797 = vrot.slane %v2796, 2
    %v2798 = vadd.f32 %v2796, %v2797
    %v2799 = vrot.slane %v2798, 1
    %v2800 = vadd.f32 %v2798, %v2799
    %v2801 = vadd.f32 %v2714, %v2716
    %v2802 = vrot.slane %v2801, 4
    %v2803 = vadd.f32 %v2801, %v2802
    %v2804 = vrot.slane %v2803, 2
    %v2805 = vadd.f32 %v2803, %v2804
    %v2806 = vrot.slane %v2805, 1
    %v2807 = vadd.f32 %v2805, %v2806
    %v2808 = vadd.f32 %v2718, %v2720
    %v2809 = vrot.slane %v2808, 4
    %v2810 = vadd.f32 %v2808, %v2809
    %v2811 = vrot.slane %v2810, 2
    %v2812 = vadd.f32 %v2810, %v2811
    %v2813 = vrot.slane %v2812, 1
    %v2814 = vadd.f32 %v2812, %v2813
    %v2815 = vadd.f32 %v2722, %v2724
    %v2816 = vrot.slane %v2815, 4
    %v2817 = vadd.f32 %v2815, %v2816
    %v2818 = vrot.slane %v2817, 2
    %v2819 = vadd.f32 %v2817, %v2818
    %v2820 = vrot.slane %v2819, 1
    %v2821 = vadd.f32 %v2819, %v2820
    %v2822 = vadd.f32 %v2726, %v2728
    %v2823 = vrot.slane %v2822, 4
    %v2824 = vadd.f32 %v2822, %v2823
    %v2825 = vrot.slane %v2824, 2
    %v2826 = vadd.f32 %v2824, %v2825
    %v2827 = vrot.slane %v2826, 1
    %v2828 = vadd.f32 %v2826, %v2827
    %v2829 = vadd.f32 %v2730, %v2732
    %v2830 = vrot.slane %v2829, 4
    %v2831 = vadd.f32 %v2829, %v2830
    %v2832 = vrot.slane %v2831, 2
    %v2833 = vadd.f32 %v2831, %v2832
    %v2834 = vrot.slane %v2833, 1
    %v2835 = vadd.f32 %v2833, %v2834
    %v2836 = vadd.f32 %v2734, %v2736
    %v2837 = vrot.slane %v2836, 4
    %v2838 = vadd.f32 %v2836, %v2837
    %v2839 = vrot.slane %v2838, 2
    %v2840 = vadd.f32 %v2838, %v2839
    %v2841 = vrot.slane %v2840, 1
    %v2842 = vadd.f32 %v2840, %v2841
    %v2843 = vadd.f32 %v2738, %v2740
    %v2844 = vrot.slane %v2843, 4
    %v2845 = vadd.f32 %v2843, %v2844
    %v2846 = vrot.slane %v2845, 2
    %v2847 = vadd.f32 %v2845, %v2846
    %v2848 = vrot.slane %v2847, 1
    %v2849 = vadd.f32 %v2847, %v2848
    %v2850 = vadd.f32 %v2742, %v2744
    %v2851 = vrot.slane %v2850, 4
    %v2852 = vadd.f32 %v2850, %v2851
    %v2853 = vrot.slane %v2852, 2
    %v2854 = vadd.f32 %v2852, %v2853
    %v2855 = vrot.slane %v2854, 1
    %v2856 = vadd.f32 %v2854, %v2855
    %v2857 = vrcp.pop %v2751
    %v2858 = vrcp.pop %v2758
    %v2859 = vrcp.pop %v2765
    %v2860 = vrcp.pop %v2772
    %v2861 = vrcp.pop %v2779
    %v2862 = vrcp.pop %v2786
    %v2863 = vrcp.pop %v2793
    %v2864 = vrcp.pop %v2800
    %v2865 = vrcp.pop %v2807
    %v2866 = vrcp.pop %v2814
    %v2867 = vrcp.pop %v2821
    %v2868 = vrcp.pop %v2828
    %v2869 = vrcp.pop %v2835
    %v2870 = vrcp.pop %v2842
    %v2871 = vrcp.pop %v2849
    %v2872 = vrcp.pop %v2856
    %v2873 = vmul.f32 %v2682, %v2857
    %v2874 = vmul.f32 %v2684, %v2857
    %v2875 = vmul.f32 %v2686, %v2858
    %v2876 = vmul.f32 %v2688, %v2858
    %v2877 = vmul.f32 %v2690, %v2859
    %v2878 = vmul.f32 %v2692, %v2859
    %v2879 = vmul.f32 %v2694, %v2860
    %v2880 = vmul.f32 %v2696, %v2860
    %v2881 = vmul.f32 %v2698, %v2861
    %v2882 = vmul.f32 %v2700, %v2861
    %v2883 = vmul.f32 %v2702, %v2862
    %v2884 = vmul.f32 %v2704, %v2862
    %v2885 = vmul.f32 %v2706, %v2863
    %v2886 = vmul.f32 %v2708, %v2863
    %v2887 = vmul.f32 %v2710, %v2864
    %v2888 = vmul.f32 %v2712, %v2864
    %v2889 = vmul.f32 %v2714, %v2865
    %v2890 = vmul.f32 %v2716, %v2865
    %v2891 = vmul.f32 %v2718, %v2866
    %v2892 = vmul.f32 %v2720, %v2866
    %v2893 = vmul.f32 %v2722, %v2867
    %v2894 = vmul.f32 %v2724, %v2867
    %v2895 = vmul.f32 %v2726, %v2868
    %v2896 = vmul.f32 %v2728, %v2868
    %v2897 = vmul.f32 %v2730, %v2869
    %v2898 = vmul.f32 %v2732, %v2869
    %v2899 = vmul.f32 %v2734, %v2870
    %v2900 = vmul.f32 %v2736, %v2870
    %v2901 = vmul.f32 %v2738, %v2871
    %v2902 = vmul.f32 %v2740, %v2871
    %v2903 = vmul.f32 %v2742, %v2872
    %v2904 = vmul.f32 %v2744, %v2872
    %v2905 = vmul.f32 %v721, %v2873
    %v2906 = vmul.f32 %v723, %v2873
    %v2907 = vmul.f32 %v725, %v2874
    %v2908 = vmul.f32 %v727, %v2874
    %v2909 = vmul.f32 %v731, %v2875
    %v2910 = vmul.f32 %v733, %v2875
    %v2911 = vmul.f32 %v735, %v2876
    %v2912 = vmul.f32 %v737, %v2876
    %v2913 = vmul.f32 %v741, %v2877
    %v2914 = vmul.f32 %v743, %v2877
    %v2915 = vmul.f32 %v745, %v2878
    %v2916 = vmul.f32 %v747, %v2878
    %v2917 = vmul.f32 %v751, %v2879
    %v2918 = vmul.f32 %v753, %v2879
    %v2919 = vmul.f32 %v755, %v2880
    %v2920 = vmul.f32 %v757, %v2880
    %v2921 = vmul.f32 %v761, %v2881
    %v2922 = vmul.f32 %v763, %v2881
    %v2923 = vmul.f32 %v765, %v2882
    %v2924 = vmul.f32 %v767, %v2882
    %v2925 = vmul.f32 %v771, %v2883
    %v2926 = vmul.f32 %v773, %v2883
    %v2927 = vmul.f32 %v775, %v2884
    %v2928 = vmul.f32 %v777, %v2884
    %v2929 = vmul.f32 %v781, %v2885
    %v2930 = vmul.f32 %v783, %v2885
    %v2931 = vmul.f32 %v785, %v2886
    %v2932 = vmul.f32 %v787, %v2886
    %v2933 = vmul.f32 %v791, %v2887
    %v2934 = vmul.f32 %v793, %v2887
    %v2935 = vmul.f32 %v795, %v2888
    %v2936 = vmul.f32 %v797, %v2888
    %v2937 = vmul.f32 %v801, %v2889
    %v2938 = vmul.f32 %v803, %v2889
    %v2939 = vmul.f32 %v805, %v2890
    %v2940 = vmul.f32 %v807, %v2890
    %v2941 = vmul.f32 %v811, %v2891
    %v2942 = vmul.f32 %v813, %v2891
    %v2943 = vmul.f32 %v815, %v2892
    %v2944 = vmul.f32 %v817, %v2892
    %v2945 = vmul.f32 %v821, %v2893
    %v2946 = vmul.f32 %v823, %v2893
    %v2947 = vmul.f32 %v825, %v2894
    %v2948 = vmul.f32 %v827, %v2894
    %v2949 = vmul.f32 %v831, %v2895
    %v2950 = vmul.f32 %v833, %v2895
    %v2951 = vmul.f32 %v835, %v2896
    %v2952 = vmul.f32 %v837, %v2896
    %v2953 = vmul.f32 %v841, %v2897
    %v2954 = vmul.f32 %v843, %v2897
    %v2955 = vmul.f32 %v845, %v2898
    %v2956 = vmul.f32 %v847, %v2898
    %v2957 = vmul.f32 %v851, %v2899
    %v2958 = vmul.f32 %v853, %v2899
    %v2959 = vmul.f32 %v855, %v2900
    %v2960 = vmul.f32 %v857, %v2900
    %v2961 = vmul.f32 %v861, %v2901
    %v2962 = vmul.f32 %v863, %v2901
    %v2963 = vmul.f32 %v865, %v2902
    %v2964 = vmul.f32 %v867, %v2902
    %v2965 = vmul.f32 %v871, %v2903
    %v2966 = vmul.f32 %v873, %v2903
    %v2967 = vmul.f32 %v875, %v2904
    %v2968 = vmul.f32 %v877, %v2904
    %v2969 = vadd.f32 %v2905, %v2907
    %v2970 = vrot.slane %v2969, 4
    %v2971 = vadd.f32 %v2969, %v2970
    %v2972 = vrot.slane %v2971, 2
    %v2973 = vadd.f32 %v2971, %v2972
    %v2974 = vrot.slane %v2973, 1
    %v2975 = vadd.f32 %v2973, %v2974
    %v2976 = vadd.f32 %v2906, %v2908
    %v2977 = vrot.slane %v2976, 4
    %v2978 = vadd.f32 %v2976, %v2977
    %v2979 = vrot.slane %v2978, 2
    %v2980 = vadd.f32 %v2978, %v2979
    %v2981 = vrot.slane %v2980, 1
    %v2982 = vadd.f32 %v2980, %v2981
    %v2983 = vadd.f32 %v2909, %v2911
    %v2984 = vrot.slane %v2983, 4
    %v2985 = vadd.f32 %v2983, %v2984
    %v2986 = vrot.slane %v2985, 2
    %v2987 = vadd.f32 %v2985, %v2986
    %v2988 = vrot.slane %v2987, 1
    %v2989 = vadd.f32 %v2987, %v2988
    %v2990 = vadd.f32 %v2910, %v2912
    %v2991 = vrot.slane %v2990, 4
    %v2992 = vadd.f32 %v2990, %v2991
    %v2993 = vrot.slane %v2992, 2
    %v2994 = vadd.f32 %v2992, %v2993
    %v2995 = vrot.slane %v2994, 1
    %v2996 = vadd.f32 %v2994, %v2995
    %v2997 = vadd.f32 %v2913, %v2915
    %v2998 = vrot.slane %v2997, 4
    %v2999 = vadd.f32 %v2997, %v2998
    %v3000 = vrot.slane %v2999, 2
    %v3001 = vadd.f32 %v2999, %v3000
    %v3002 = vrot.slane %v3001, 1
    %v3003 = vadd.f32 %v3001, %v3002
    %v3004 = vadd.f32 %v2914, %v2916
    %v3005 = vrot.slane %v3004, 4
    %v3006 = vadd.f32 %v3004, %v3005
    %v3007 = vrot.slane %v3006, 2
    %v3008 = vadd.f32 %v3006, %v3007
    %v3009 = vrot.slane %v3008, 1
    %v3010 = vadd.f32 %v3008, %v3009
    %v3011 = vadd.f32 %v2917, %v2919
    %v3012 = vrot.slane %v3011, 4
    %v3013 = vadd.f32 %v3011, %v3012
    %v3014 = vrot.slane %v3013, 2
    %v3015 = vadd.f32 %v3013, %v3014
    %v3016 = vrot.slane %v3015, 1
    %v3017 = vadd.f32 %v3015, %v3016
    %v3018 = vadd.f32 %v2918, %v2920
    %v3019 = vrot.slane %v3018, 4
    %v3020 = vadd.f32 %v3018, %v3019
    %v3021 = vrot.slane %v3020, 2
    %v3022 = vadd.f32 %v3020, %v3021
    %v3023 = vrot.slane %v3022, 1
    %v3024 = vadd.f32 %v3022, %v3023
    %v3025 = vadd.f32 %v2921, %v2923
    %v3026 = vrot.slane %v3025, 4
    %v3027 = vadd.f32 %v3025, %v3026
    %v3028 = vrot.slane %v3027, 2
    %v3029 = vadd.f32 %v3027, %v3028
    %v3030 = vrot.slane %v3029, 1
    %v3031 = vadd.f32 %v3029, %v3030
    %v3032 = vadd.f32 %v2922, %v2924
    %v3033 = vrot.slane %v3032, 4
    %v3034 = vadd.f32 %v3032, %v3033
    %v3035 = vrot.slane %v3034, 2
    %v3036 = vadd.f32 %v3034, %v3035
    %v3037 = vrot.slane %v3036, 1
    %v3038 = vadd.f32 %v3036, %v3037
    %v3039 = vadd.f32 %v2925, %v2927
    %v3040 = vrot.slane %v3039, 4
    %v3041 = vadd.f32 %v3039, %v3040
    %v3042 = vrot.slane %v3041, 2
    %v3043 = vadd.f32 %v3041, %v3042
    %v3044 = vrot.slane %v3043, 1
    %v3045 = vadd.f32 %v3043, %v3044
    %v3046 = vadd.f32 %v2926, %v2928
    %v3047 = vrot.slane %v3046, 4
    %v3048 = vadd.f32 %v3046, %v3047
    %v3049 = vrot.slane %v3048, 2
    %v3050 = vadd.f32 %v3048, %v3049
    %v3051 = vrot.slane %v3050, 1
    %v3052 = vadd.f32 %v3050, %v3051
    %v3053 = vadd.f32 %v2929, %v2931
    %v3054 = vrot.slane %v3053, 4
    %v3055 = vadd.f32 %v3053, %v3054
    %v3056 = vrot.slane %v3055, 2
    %v3057 = vadd.f32 %v3055, %v3056
    %v3058 = vrot.slane %v3057, 1
    %v3059 = vadd.f32 %v3057, %v3058
    %v3060 = vadd.f32 %v2930, %v2932
    %v3061 = vrot.slane %v3060, 4
    %v3062 = vadd.f32 %v3060, %v3061
    %v3063 = vrot.slane %v3062, 2
    %v3064 = vadd.f32 %v3062, %v3063
    %v3065 = vrot.slane %v3064, 1
    %v3066 = vadd.f32 %v3064, %v3065
    %v3067 = vadd.f32 %v2933, %v2935
    %v3068 = vrot.slane %v3067, 4
    %v3069 = vadd.f32 %v3067, %v3068
    %v3070 = vrot.slane %v3069, 2
    %v3071 = vadd.f32 %v3069, %v3070
    %v3072 = vrot.slane %v3071, 1
    %v3073 = vadd.f32 %v3071, %v3072
    %v3074 = vadd.f32 %v2934, %v2936
    %v3075 = vrot.slane %v3074, 4
    %v3076 = vadd.f32 %v3074, %v3075
    %v3077 = vrot.slane %v3076, 2
    %v3078 = vadd.f32 %v3076, %v3077
    %v3079 = vrot.slane %v3078, 1
    %v3080 = vadd.f32 %v3078, %v3079
    %v3081 = vadd.f32 %v2937, %v2939
    %v3082 = vrot.slane %v3081, 4
    %v3083 = vadd.f32 %v3081, %v3082
    %v3084 = vrot.slane %v3083, 2
    %v3085 = vadd.f32 %v3083, %v3084
    %v3086 = vrot.slane %v3085, 1
    %v3087 = vadd.f32 %v3085, %v3086
    %v3088 = vadd.f32 %v2938, %v2940
    %v3089 = vrot.slane %v3088, 4
    %v3090 = vadd.f32 %v3088, %v3089
    %v3091 = vrot.slane %v3090, 2
    %v3092 = vadd.f32 %v3090, %v3091
    %v3093 = vrot.slane %v3092, 1
    %v3094 = vadd.f32 %v3092, %v3093
    %v3095 = vadd.f32 %v2941, %v2943
    %v3096 = vrot.slane %v3095, 4
    %v3097 = vadd.f32 %v3095, %v3096
    %v3098 = vrot.slane %v3097, 2
    %v3099 = vadd.f32 %v3097, %v3098
    %v3100 = vrot.slane %v3099, 1
    %v3101 = vadd.f32 %v3099, %v3100
    %v3102 = vadd.f32 %v2942, %v2944
    %v3103 = vrot.slane %v3102, 4
    %v3104 = vadd.f32 %v3102, %v3103
    %v3105 = vrot.slane %v3104, 2
    %v3106 = vadd.f32 %v3104, %v3105
    %v3107 = vrot.slane %v3106, 1
    %v3108 = vadd.f32 %v3106, %v3107
    %v3109 = vadd.f32 %v2945, %v2947
    %v3110 = vrot.slane %v3109, 4
    %v3111 = vadd.f32 %v3109, %v3110
    %v3112 = vrot.slane %v3111, 2
    %v3113 = vadd.f32 %v3111, %v3112
    %v3114 = vrot.slane %v3113, 1
    %v3115 = vadd.f32 %v3113, %v3114
    %v3116 = vadd.f32 %v2946, %v2948
    %v3117 = vrot.slane %v3116, 4
    %v3118 = vadd.f32 %v3116, %v3117
    %v3119 = vrot.slane %v3118, 2
    %v3120 = vadd.f32 %v3118, %v3119
    %v3121 = vrot.slane %v3120, 1
    %v3122 = vadd.f32 %v3120, %v3121
    %v3123 = vadd.f32 %v2949, %v2951
    %v3124 = vrot.slane %v3123, 4
    %v3125 = vadd.f32 %v3123, %v3124
    %v3126 = vrot.slane %v3125, 2
    %v3127 = vadd.f32 %v3125, %v3126
    %v3128 = vrot.slane %v3127, 1
    %v3129 = vadd.f32 %v3127, %v3128
    %v3130 = vadd.f32 %v2950, %v2952
    %v3131 = vrot.slane %v3130, 4
    %v3132 = vadd.f32 %v3130, %v3131
    %v3133 = vrot.slane %v3132, 2
    %v3134 = vadd.f32 %v3132, %v3133
    %v3135 = vrot.slane %v3134, 1
    %v3136 = vadd.f32 %v3134, %v3135
    %v3137 = vadd.f32 %v2953, %v2955
    %v3138 = vrot.slane %v3137, 4
    %v3139 = vadd.f32 %v3137, %v3138
    %v3140 = vrot.slane %v3139, 2
    %v3141 = vadd.f32 %v3139, %v3140
    %v3142 = vrot.slane %v3141, 1
    %v3143 = vadd.f32 %v3141, %v3142
    %v3144 = vadd.f32 %v2954, %v2956
    %v3145 = vrot.slane %v3144, 4
    %v3146 = vadd.f32 %v3144, %v3145
    %v3147 = vrot.slane %v3146, 2
    %v3148 = vadd.f32 %v3146, %v3147
    %v3149 = vrot.slane %v3148, 1
    %v3150 = vadd.f32 %v3148, %v3149
    %v3151 = vadd.f32 %v2957, %v2959
    %v3152 = vrot.slane %v3151, 4
    %v3153 = vadd.f32 %v3151, %v3152
    %v3154 = vrot.slane %v3153, 2
    %v3155 = vadd.f32 %v3153, %v3154
    %v3156 = vrot.slane %v3155, 1
    %v3157 = vadd.f32 %v3155, %v3156
    %v3158 = vadd.f32 %v2958, %v2960
    %v3159 = vrot.slane %v3158, 4
    %v3160 = vadd.f32 %v3158, %v3159
    %v3161 = vrot.slane %v3160, 2
    %v3162 = vadd.f32 %v3160, %v3161
    %v3163 = vrot.slane %v3162, 1
    %v3164 = vadd.f32 %v3162, %v3163
    %v3165 = vadd.f32 %v2961, %v2963
    %v3166 = vrot.slane %v3165, 4
    %v3167 = vadd.f32 %v3165, %v3166
    %v3168 = vrot.slane %v3167, 2
    %v3169 = vadd.f32 %v3167, %v3168
    %v3170 = vrot.slane %v3169, 1
    %v3171 = vadd.f32 %v3169, %v3170
    %v3172 = vadd.f32 %v2962, %v2964
    %v3173 = vrot.slane %v3172, 4
    %v3174 = vadd.f32 %v3172, %v3173
    %v3175 = vrot.slane %v3174, 2
    %v3176 = vadd.f32 %v3174, %v3175
    %v3177 = vrot.slane %v3176, 1
    %v3178 = vadd.f32 %v3176, %v3177
    %v3179 = vadd.f32 %v2965, %v2967
    %v3180 = vrot.slane %v3179, 4
    %v3181 = vadd.f32 %v3179, %v3180
    %v3182 = vrot.slane %v3181, 2
    %v3183 = vadd.f32 %v3181, %v3182
    %v3184 = vrot.slane %v3183, 1
    %v3185 = vadd.f32 %v3183, %v3184
    %v3186 = vadd.f32 %v2966, %v2968
    %v3187 = vrot.slane %v3186, 4
    %v3188 = vadd.f32 %v3186, %v3187
    %v3189 = vrot.slane %v3188, 2
    %v3190 = vadd.f32 %v3188, %v3189
    %v3191 = vrot.slane %v3190, 1
    %v3192 = vadd.f32 %v3190, %v3191
    %v3193 = vpack.c.bf16 %v2109, %v2105
    %v3194 = vpack.c.bf16 %v2111, %v2107
    %v3227 = vsel %vm2031, %v2989, %v2975
    %v3228 = vsel %vm2033, %v3003, %v3227
    %v3229 = vsel %vm2035, %v3017, %v3228
    %v3230 = vsel %vm2037, %v3031, %v3229
    %v3231 = vsel %vm2039, %v3045, %v3230
    %v3232 = vsel %vm2041, %v3059, %v3231
    %v3233 = vsel %vm2043, %v3073, %v3232
    %v3234 = vsel %vm2031, %v2996, %v2982
    %v3235 = vsel %vm2033, %v3010, %v3234
    %v3236 = vsel %vm2035, %v3024, %v3235
    %v3237 = vsel %vm2037, %v3038, %v3236
    %v3238 = vsel %vm2039, %v3052, %v3237
    %v3239 = vsel %vm2041, %v3066, %v3238
    %v3240 = vsel %vm2043, %v3080, %v3239
    %v3241 = vsel %vm2031, %v3101, %v3087
    %v3242 = vsel %vm2033, %v3115, %v3241
    %v3243 = vsel %vm2035, %v3129, %v3242
    %v3244 = vsel %vm2037, %v3143, %v3243
    %v3245 = vsel %vm2039, %v3157, %v3244
    %v3246 = vsel %vm2041, %v3171, %v3245
    %v3247 = vsel %vm2043, %v3185, %v3246
    %v3248 = vsel %vm2031, %v3108, %v3094
    %v3249 = vsel %vm2033, %v3122, %v3248
    %v3250 = vsel %vm2035, %v3136, %v3249
    %v3251 = vsel %vm2037, %v3150, %v3250
    %v3252 = vsel %vm2039, %v3164, %v3251
    %v3253 = vsel %vm2041, %v3178, %v3252
    %v3254 = vsel %vm2043, %v3192, %v3253
    %3259 = vmatprep.subr.bf16.mxu0 %v1936
    %3260 = vmatpush1.bf16.msra.mxu0 %v1935
    %3261 = vmatprep.subr.bf16.mxu0 %v1938
    %3262 = vmatpush1.bf16.msra.mxu0 %v1937
    %3263 = vmatprep.subr.bf16.mxu0 %v1940
    %3264 = vmatpush1.bf16.msra.mxu0 %v1939
    %3265 = vmatprep.subr.bf16.mxu0 %v1942
    %3266 = vmatpush1.bf16.msra.mxu0 %v1941
    %3267 = vmatprep.subr.bf16.mxu0 %v1944
    %3268 = vmatpush1.bf16.msra.mxu0 %v1943
    %3269 = vmatprep.subr.bf16.mxu0 %v1946
    %3270 = vmatpush1.bf16.msra.mxu0 %v1945
    %3271 = vmatprep.subr.bf16.mxu0 %v1948
    %3272 = vmatpush1.bf16.msra.mxu0 %v1947
    %3273 = vmatprep.subr.bf16.mxu0 %v1950
    %3274 = vmatpush1.bf16.msra.mxu0 %v1949
    %3275 = vmatprep.subr.bf16.mxu0 %v1952
    %3276 = vmatpush1.bf16.msra.mxu0 %v1951
    %3277 = vmatprep.subr.bf16.mxu0 %v1954
    %3278 = vmatpush1.bf16.msra.mxu0 %v1953
    %3279 = vmatprep.subr.bf16.mxu0 %v1956
    %3280 = vmatpush1.bf16.msra.mxu0 %v1955
    %3281 = vmatprep.subr.bf16.mxu0 %v1958
    %3282 = vmatpush1.bf16.msra.mxu0 %v1957
    %3283 = vmatprep.subr.bf16.mxu0 %v1960
    %3284 = vmatpush1.bf16.msra.mxu0 %v1959
    %3285 = vmatprep.subr.bf16.mxu0 %v1962
    %3286 = vmatpush1.bf16.msra.mxu0 %v1961
    %3287 = vmatprep.subr.bf16.mxu0 %v1964
    %3288 = vmatpush1.bf16.msra.mxu0 %v1963
    %3289 = vmatprep.subr.bf16.mxu0 %v1966
    %3290 = vmatpush1.bf16.msra.mxu0 %v1965
    %3291 = vmatprep.mubr.bf16.mxu0 %v3194
    %3292 = vmatmul.mubr.bf16.gmra.mrb[0].mxu0 %v3193
    %v3293 = vpop.f32.mrb[0].mxu0
    %v3294 = vadd.f32 %v3233, %v3293
    %v3295 = vpop.f32.mrb[0].mxu0
    %v3296 = vadd.f32 %v3240, %v3295
    %v3297 = vpop.f32.mrb[0].mxu0
    %v3298 = vadd.f32 %v3247, %v3297
    %v3299 = vpop.f32.mrb[0].mxu0
    %v3300 = vadd.f32 %v3254, %v3299
    %3301 = vdwg.mxu0
    %v3306 = vcombine.low %v3294, %v3296
    %v3307 = vcombine.high %v3294, %v3296
    %v3309 = vunpack.c.l.s4 1966171168
    %v3310 = vunpack.c.0.s8 %v3309
    %v3311 = vlaneseq
    %v3312 = vshrl.u32 %v3311, 7
    %v3313 = vsub.s32 %v3310, %v3312
    %v3314 = vrot.slane %v3306, %v3313
    %v3316 = vunpack.c.l.s4 1966171168
    %v3317 = vunpack.c.0.s8 %v3316
    %v3318 = vlaneseq
    %v3319 = vshrl.u32 %v3318, 7
    %v3320 = vsub.s32 %v3317, %v3319
    %v3321 = vrot.slane %v3307, %v3320
    %v3322 = vcombine.high %v3314, %v3314
    %v3323 = vcombine.high %v3321, %v3321
    %v3325 = vunpack.c.l.s4 1966171168
    %v3326 = vunpack.c.0.s8 %v3325
    %v3327 = vlaneseq
    %v3328 = vshrl.u32 %v3327, 7
    %v3329 = vsub.s32 %v3326, %v3328
    %v3330 = vrot.slane %v3314, %v3329
    %v3332 = vunpack.c.l.s4 1966171168
    %v3333 = vunpack.c.0.s8 %v3332
    %v3334 = vlaneseq
    %v3335 = vshrl.u32 %v3334, 7
    %v3336 = vsub.s32 %v3333, %v3335
    %v3337 = vrot.slane %v3321, %v3336
    %v3339 = vunpack.c.l.s4 1966171168
    %v3340 = vunpack.c.0.s8 %v3339
    %v3341 = vlaneseq
    %v3342 = vshrl.u32 %v3341, 7
    %v3343 = vsub.s32 %v3340, %v3342
    %v3344 = vrot.slane %v3322, %v3343
    %v3346 = vunpack.c.l.s4 1966171168
    %v3347 = vunpack.c.0.s8 %v3346
    %v3348 = vlaneseq
    %v3349 = vshrl.u32 %v3348, 7
    %v3350 = vsub.s32 %v3347, %v3349
    %v3351 = vrot.slane %v3323, %v3350
    %v3352 = vcombine.high %v3330, %v3330
    %v3353 = vcombine.high %v3337, %v3337
    %v3354 = vcombine.high %v3344, %v3344
    %v3355 = vcombine.high %v3351, %v3351
    %v3356 = vcombine.low %v3298, %v3300
    %v3357 = vcombine.high %v3298, %v3300
    %v3359 = vunpack.c.l.s4 1966171168
    %v3360 = vunpack.c.0.s8 %v3359
    %v3361 = vlaneseq
    %v3362 = vshrl.u32 %v3361, 7
    %v3363 = vsub.s32 %v3360, %v3362
    %v3364 = vrot.slane %v3356, %v3363
    %v3366 = vunpack.c.l.s4 1966171168
    %v3367 = vunpack.c.0.s8 %v3366
    %v3368 = vlaneseq
    %v3369 = vshrl.u32 %v3368, 7
    %v3370 = vsub.s32 %v3367, %v3369
    %v3371 = vrot.slane %v3357, %v3370
    %v3372 = vcombine.high %v3364, %v3364
    %v3373 = vcombine.high %v3371, %v3371
    %v3375 = vunpack.c.l.s4 1966171168
    %v3376 = vunpack.c.0.s8 %v3375
    %v3377 = vlaneseq
    %v3378 = vshrl.u32 %v3377, 7
    %v3379 = vsub.s32 %v3376, %v3378
    %v3380 = vrot.slane %v3364, %v3379
    %v3382 = vunpack.c.l.s4 1966171168
    %v3383 = vunpack.c.0.s8 %v3382
    %v3384 = vlaneseq
    %v3385 = vshrl.u32 %v3384, 7
    %v3386 = vsub.s32 %v3383, %v3385
    %v3387 = vrot.slane %v3371, %v3386
    %v3389 = vunpack.c.l.s4 1966171168
    %v3390 = vunpack.c.0.s8 %v3389
    %v3391 = vlaneseq
    %v3392 = vshrl.u32 %v3391, 7
    %v3393 = vsub.s32 %v3390, %v3392
    %v3394 = vrot.slane %v3372, %v3393
    %v3396 = vunpack.c.l.s4 1966171168
    %v3397 = vunpack.c.0.s8 %v3396
    %v3398 = vlaneseq
    %v3399 = vshrl.u32 %v3398, 7
    %v3400 = vsub.s32 %v3397, %v3399
    %v3401 = vrot.slane %v3373, %v3400
    %v3402 = vcombine.high %v3380, %v3380
    %v3403 = vcombine.high %v3387, %v3387
    %v3404 = vcombine.high %v3394, %v3394
    %v3405 = vcombine.high %v3401, %v3401
    %v3406 = vlaneseq
    %v3407 = vshrl.u32 %v3406, 7
    %v3408 = vsub.s32 0, %v3407
    %v3409 = vrot.slane %v3330, %v3408
    %v3410 = vlaneseq
    %v3411 = vshrl.u32 %v3410, 7
    %v3412 = vsub.s32 1, %v3411
    %v3413 = vrot.slane %v3330, %v3412
    %v3414 = vlaneseq
    %v3415 = vshrl.u32 %v3414, 7
    %v3416 = vsub.s32 0, %v3415
    %v3417 = vrot.slane %v3344, %v3416
    %v3418 = vlaneseq
    %v3419 = vshrl.u32 %v3418, 7
    %v3420 = vsub.s32 1, %v3419
    %v3421 = vrot.slane %v3344, %v3420
    %v3422 = vlaneseq
    %v3423 = vshrl.u32 %v3422, 7
    %v3424 = vsub.s32 0, %v3423
    %v3425 = vrot.slane %v3352, %v3424
    %v3426 = vlaneseq
    %v3427 = vshrl.u32 %v3426, 7
    %v3428 = vsub.s32 1, %v3427
    %v3429 = vrot.slane %v3352, %v3428
    %v3430 = vlaneseq
    %v3431 = vshrl.u32 %v3430, 7
    %v3432 = vsub.s32 0, %v3431
    %v3433 = vrot.slane %v3354, %v3432
    %v3434 = vlaneseq
    %v3435 = vshrl.u32 %v3434, 7
    %v3436 = vsub.s32 1, %v3435
    %v3437 = vrot.slane %v3354, %v3436
    %v3438 = vlaneseq
    %v3439 = vshrl.u32 %v3438, 7
    %v3440 = vsub.s32 0, %v3439
    %v3441 = vrot.slane %v3337, %v3440
    %v3442 = vlaneseq
    %v3443 = vshrl.u32 %v3442, 7
    %v3444 = vsub.s32 1, %v3443
    %v3445 = vrot.slane %v3337, %v3444
    %v3446 = vlaneseq
    %v3447 = vshrl.u32 %v3446, 7
    %v3448 = vsub.s32 0, %v3447
    %v3449 = vrot.slane %v3351, %v3448
    %v3450 = vlaneseq
    %v3451 = vshrl.u32 %v3450, 7
    %v3452 = vsub.s32 1, %v3451
    %v3453 = vrot.slane %v3351, %v3452
    %v3454 = vlaneseq
    %v3455 = vshrl.u32 %v3454, 7
    %v3456 = vsub.s32 0, %v3455
    %v3457 = vrot.slane %v3353, %v3456
    %v3458 = vlaneseq
    %v3459 = vshrl.u32 %v3458, 7
    %v3460 = vsub.s32 1, %v3459
    %v3461 = vrot.slane %v3353, %v3460
    %v3462 = vlaneseq
    %v3463 = vshrl.u32 %v3462, 7
    %v3464 = vsub.s32 0, %v3463
    %v3465 = vrot.slane %v3355, %v3464
    %v3466 = vlaneseq
    %v3467 = vshrl.u32 %v3466, 7
    %v3468 = vsub.s32 1, %v3467
    %v3469 = vrot.slane %v3355, %v3468
    %v3470 = vlaneseq
    %v3471 = vshrl.u32 %v3470, 7
    %v3472 = vsub.s32 0, %v3471
    %v3473 = vrot.slane %v3380, %v3472
    %v3474 = vlaneseq
    %v3475 = vshrl.u32 %v3474, 7
    %v3476 = vsub.s32 1, %v3475
    %v3477 = vrot.slane %v3380, %v3476
    %v3478 = vlaneseq
    %v3479 = vshrl.u32 %v3478, 7
    %v3480 = vsub.s32 0, %v3479
    %v3481 = vrot.slane %v3394, %v3480
    %v3482 = vlaneseq
    %v3483 = vshrl.u32 %v3482, 7
    %v3484 = vsub.s32 1, %v3483
    %v3485 = vrot.slane %v3394, %v3484
    %v3486 = vlaneseq
    %v3487 = vshrl.u32 %v3486, 7
    %v3488 = vsub.s32 0, %v3487
    %v3489 = vrot.slane %v3402, %v3488
    %v3490 = vlaneseq
    %v3491 = vshrl.u32 %v3490, 7
    %v3492 = vsub.s32 1, %v3491
    %v3493 = vrot.slane %v3402, %v3492
    %v3494 = vlaneseq
    %v3495 = vshrl.u32 %v3494, 7
    %v3496 = vsub.s32 0, %v3495
    %v3497 = vrot.slane %v3404, %v3496
    %v3498 = vlaneseq
    %v3499 = vshrl.u32 %v3498, 7
    %v3500 = vsub.s32 1, %v3499
    %v3501 = vrot.slane %v3404, %v3500
    %v3502 = vlaneseq
    %v3503 = vshrl.u32 %v3502, 7
    %v3504 = vsub.s32 0, %v3503
    %v3505 = vrot.slane %v3387, %v3504
    %v3506 = vlaneseq
    %v3507 = vshrl.u32 %v3506, 7
    %v3508 = vsub.s32 1, %v3507
    %v3509 = vrot.slane %v3387, %v3508
    %v3510 = vlaneseq
    %v3511 = vshrl.u32 %v3510, 7
    %v3512 = vsub.s32 0, %v3511
    %v3513 = vrot.slane %v3401, %v3512
    %v3514 = vlaneseq
    %v3515 = vshrl.u32 %v3514, 7
    %v3516 = vsub.s32 1, %v3515
    %v3517 = vrot.slane %v3401, %v3516
    %v3518 = vlaneseq
    %v3519 = vshrl.u32 %v3518, 7
    %v3520 = vsub.s32 0, %v3519
    %v3521 = vrot.slane %v3403, %v3520
    %v3522 = vlaneseq
    %v3523 = vshrl.u32 %v3522, 7
    %v3524 = vsub.s32 1, %v3523
    %v3525 = vrot.slane %v3403, %v3524
    %v3526 = vlaneseq
    %v3527 = vshrl.u32 %v3526, 7
    %v3528 = vsub.s32 0, %v3527
    %v3529 = vrot.slane %v3405, %v3528
    %v3530 = vlaneseq
    %v3531 = vshrl.u32 %v3530, 7
    %v3532 = vsub.s32 1, %v3531
    %v3533 = vrot.slane %v3405, %v3532
    %v3566 = vmul.f32 %v528, %v3409
    %v3567 = vmul.f32 %v530, %v3413
    %v3568 = vmul.f32 %v532, %v3409
    %v3569 = vmul.f32 %v534, %v3413
    %v3570 = vmul.f32 %v538, %v3417
    %v3571 = vmul.f32 %v540, %v3421
    %v3572 = vmul.f32 %v542, %v3417
    %v3573 = vmul.f32 %v544, %v3421
    %v3574 = vmul.f32 %v548, %v3425
    %v3575 = vmul.f32 %v550, %v3429
    %v3576 = vmul.f32 %v552, %v3425
    %v3577 = vmul.f32 %v554, %v3429
    %v3578 = vmul.f32 %v558, %v3433
    %v3579 = vmul.f32 %v560, %v3437
    %v3580 = vmul.f32 %v562, %v3433
    %v3581 = vmul.f32 %v564, %v3437
    %v3582 = vmul.f32 %v568, %v3441
    %v3583 = vmul.f32 %v570, %v3445
    %v3584 = vmul.f32 %v572, %v3441
    %v3585 = vmul.f32 %v574, %v3445
    %v3586 = vmul.f32 %v578, %v3449
    %v3587 = vmul.f32 %v580, %v3453
    %v3588 = vmul.f32 %v582, %v3449
    %v3589 = vmul.f32 %v584, %v3453
    %v3590 = vmul.f32 %v588, %v3457
    %v3591 = vmul.f32 %v590, %v3461
    %v3592 = vmul.f32 %v592, %v3457
    %v3593 = vmul.f32 %v594, %v3461
    %v3594 = vmul.f32 %v598, %v3465
    %v3595 = vmul.f32 %v600, %v3469
    %v3596 = vmul.f32 %v602, %v3465
    %v3597 = vmul.f32 %v604, %v3469
    %v3598 = vmul.f32 %v608, %v3473
    %v3599 = vmul.f32 %v610, %v3477
    %v3600 = vmul.f32 %v612, %v3473
    %v3601 = vmul.f32 %v614, %v3477
    %v3602 = vmul.f32 %v618, %v3481
    %v3603 = vmul.f32 %v620, %v3485
    %v3604 = vmul.f32 %v622, %v3481
    %v3605 = vmul.f32 %v624, %v3485
    %v3606 = vmul.f32 %v628, %v3489
    %v3607 = vmul.f32 %v630, %v3493
    %v3608 = vmul.f32 %v632, %v3489
    %v3609 = vmul.f32 %v634, %v3493
    %v3610 = vmul.f32 %v638, %v3497
    %v3611 = vmul.f32 %v640, %v3501
    %v3612 = vmul.f32 %v642, %v3497
    %v3613 = vmul.f32 %v644, %v3501
    %v3614 = vmul.f32 %v648, %v3505
    %v3615 = vmul.f32 %v650, %v3509
    %v3616 = vmul.f32 %v652, %v3505
    %v3617 = vmul.f32 %v654, %v3509
    %v3618 = vmul.f32 %v658, %v3513
    %v3619 = vmul.f32 %v660, %v3517
    %v3620 = vmul.f32 %v662, %v3513
    %v3621 = vmul.f32 %v664, %v3517
    %v3622 = vmul.f32 %v668, %v3521
    %v3623 = vmul.f32 %v670, %v3525
    %v3624 = vmul.f32 %v672, %v3521
    %v3625 = vmul.f32 %v674, %v3525
    %v3626 = vmul.f32 %v678, %v3529
    %v3627 = vmul.f32 %v680, %v3533
    %v3628 = vmul.f32 %v682, %v3529
    %v3629 = vmul.f32 %v684, %v3533
    %v3630 = vadd.f32 %v3566, %v3567
    %3631 = vadd.xlane.f32.xlu0 %v3630
    %v3632 = vpop.xlane.xlu0 %3631
    %v3633 = vadd.f32 %v3568, %v3569
    %3634 = vadd.xlane.f32.xlu0 %v3633
    %v3635 = vpop.xlane.xlu0 %3634
    %v3636 = vadd.f32 %v3570, %v3571
    %3637 = vadd.xlane.f32.xlu0 %v3636
    %v3638 = vpop.xlane.xlu0 %3637
    %v3639 = vadd.f32 %v3572, %v3573
    %3640 = vadd.xlane.f32.xlu0 %v3639
    %v3641 = vpop.xlane.xlu0 %3640
    %v3642 = vadd.f32 %v3574, %v3575
    %3643 = vadd.xlane.f32.xlu0 %v3642
    %v3644 = vpop.xlane.xlu0 %3643
    %v3645 = vadd.f32 %v3576, %v3577
    %3646 = vadd.xlane.f32.xlu0 %v3645
    %v3647 = vpop.xlane.xlu0 %3646
    %v3648 = vadd.f32 %v3578, %v3579
    %3649 = vadd.xlane.f32.xlu0 %v3648
    %v3650 = vpop.xlane.xlu0 %3649
    %v3651 = vadd.f32 %v3580, %v3581
    %3652 = vadd.xlane.f32.xlu0 %v3651
    %v3653 = vpop.xlane.xlu0 %3652
    %v3654 = vadd.f32 %v3582, %v3583
    %3655 = vadd.xlane.f32.xlu0 %v3654
    %v3656 = vpop.xlane.xlu0 %3655
    %v3657 = vadd.f32 %v3584, %v3585
    %3658 = vadd.xlane.f32.xlu0 %v3657
    %v3659 = vpop.xlane.xlu0 %3658
    %v3660 = vadd.f32 %v3586, %v3587
    %3661 = vadd.xlane.f32.xlu0 %v3660
    %v3662 = vpop.xlane.xlu0 %3661
    %v3663 = vadd.f32 %v3588, %v3589
    %3664 = vadd.xlane.f32.xlu0 %v3663
    %v3665 = vpop.xlane.xlu0 %3664
    %v3666 = vadd.f32 %v3590, %v3591
    %3667 = vadd.xlane.f32.xlu0 %v3666
    %v3668 = vpop.xlane.xlu0 %3667
    %v3669 = vadd.f32 %v3592, %v3593
    %3670 = vadd.xlane.f32.xlu0 %v3669
    %v3671 = vpop.xlane.xlu0 %3670
    %v3672 = vadd.f32 %v3594, %v3595
    %3673 = vadd.xlane.f32.xlu0 %v3672
    %v3674 = vpop.xlane.xlu0 %3673
    %v3675 = vadd.f32 %v3596, %v3597
    %3676 = vadd.xlane.f32.xlu0 %v3675
    %v3677 = vpop.xlane.xlu0 %3676
    %v3678 = vadd.f32 %v3598, %v3599
    %3679 = vadd.xlane.f32.xlu0 %v3678
    %v3680 = vpop.xlane.xlu0 %3679
    %v3681 = vadd.f32 %v3600, %v3601
    %3682 = vadd.xlane.f32.xlu0 %v3681
    %v3683 = vpop.xlane.xlu0 %3682
    %v3684 = vadd.f32 %v3602, %v3603
    %3685 = vadd.xlane.f32.xlu0 %v3684
    %v3686 = vpop.xlane.xlu0 %3685
    %v3687 = vadd.f32 %v3604, %v3605
    %3688 = vadd.xlane.f32.xlu0 %v3687
    %v3689 = vpop.xlane.xlu0 %3688
    %v3690 = vadd.f32 %v3606, %v3607
    %3691 = vadd.xlane.f32.xlu0 %v3690
    %v3692 = vpop.xlane.xlu0 %3691
    %v3693 = vadd.f32 %v3608, %v3609
    %3694 = vadd.xlane.f32.xlu0 %v3693
    %v3695 = vpop.xlane.xlu0 %3694
    %v3696 = vadd.f32 %v3610, %v3611
    %3697 = vadd.xlane.f32.xlu0 %v3696
    %v3698 = vpop.xlane.xlu0 %3697
    %v3699 = vadd.f32 %v3612, %v3613
    %3700 = vadd.xlane.f32.xlu0 %v3699
    %v3701 = vpop.xlane.xlu0 %3700
    %v3702 = vadd.f32 %v3614, %v3615
    %3703 = vadd.xlane.f32.xlu0 %v3702
    %v3704 = vpop.xlane.xlu0 %3703
    %v3705 = vadd.f32 %v3616, %v3617
    %3706 = vadd.xlane.f32.xlu0 %v3705
    %v3707 = vpop.xlane.xlu0 %3706
    %v3708 = vadd.f32 %v3618, %v3619
    %3709 = vadd.xlane.f32.xlu0 %v3708
    %v3710 = vpop.xlane.xlu0 %3709
    %v3711 = vadd.f32 %v3620, %v3621
    %3712 = vadd.xlane.f32.xlu0 %v3711
    %v3713 = vpop.xlane.xlu0 %3712
    %v3714 = vadd.f32 %v3622, %v3623
    %3715 = vadd.xlane.f32.xlu0 %v3714
    %v3716 = vpop.xlane.xlu0 %3715
    %v3717 = vadd.f32 %v3624, %v3625
    %3718 = vadd.xlane.f32.xlu0 %v3717
    %v3719 = vpop.xlane.xlu0 %3718
    %v3720 = vadd.f32 %v3626, %v3627
    %3721 = vadd.xlane.f32.xlu0 %v3720
    %v3722 = vpop.xlane.xlu0 %3721
    %v3723 = vadd.f32 %v3628, %v3629
    %3724 = vadd.xlane.f32.xlu0 %v3723
    %v3725 = vpop.xlane.xlu0 %3724
    %v3726 = vmax.f32 %v3632, %v3635
    %v3727 = vrot.slane %v3726, 4
    %v3728 = vmax.f32 %v3726, %v3727
    %v3729 = vrot.slane %v3728, 2
    %v3730 = vmax.f32 %v3728, %v3729
    %v3731 = vrot.slane %v3730, 1
    %v3732 = vmax.f32 %v3730, %v3731
    %v3733 = vmax.f32 %v3638, %v3641
    %v3734 = vrot.slane %v3733, 4
    %v3735 = vmax.f32 %v3733, %v3734
    %v3736 = vrot.slane %v3735, 2
    %v3737 = vmax.f32 %v3735, %v3736
    %v3738 = vrot.slane %v3737, 1
    %v3739 = vmax.f32 %v3737, %v3738
    %v3740 = vmax.f32 %v3644, %v3647
    %v3741 = vrot.slane %v3740, 4
    %v3742 = vmax.f32 %v3740, %v3741
    %v3743 = vrot.slane %v3742, 2
    %v3744 = vmax.f32 %v3742, %v3743
    %v3745 = vrot.slane %v3744, 1
    %v3746 = vmax.f32 %v3744, %v3745
    %v3747 = vmax.f32 %v3650, %v3653
    %v3748 = vrot.slane %v3747, 4
    %v3749 = vmax.f32 %v3747, %v3748
    %v3750 = vrot.slane %v3749, 2
    %v3751 = vmax.f32 %v3749, %v3750
    %v3752 = vrot.slane %v3751, 1
    %v3753 = vmax.f32 %v3751, %v3752
    %v3754 = vmax.f32 %v3656, %v3659
    %v3755 = vrot.slane %v3754, 4
    %v3756 = vmax.f32 %v3754, %v3755
    %v3757 = vrot.slane %v3756, 2
    %v3758 = vmax.f32 %v3756, %v3757
    %v3759 = vrot.slane %v3758, 1
    %v3760 = vmax.f32 %v3758, %v3759
    %v3761 = vmax.f32 %v3662, %v3665
    %v3762 = vrot.slane %v3761, 4
    %v3763 = vmax.f32 %v3761, %v3762
    %v3764 = vrot.slane %v3763, 2
    %v3765 = vmax.f32 %v3763, %v3764
    %v3766 = vrot.slane %v3765, 1
    %v3767 = vmax.f32 %v3765, %v3766
    %v3768 = vmax.f32 %v3668, %v3671
    %v3769 = vrot.slane %v3768, 4
    %v3770 = vmax.f32 %v3768, %v3769
    %v3771 = vrot.slane %v3770, 2
    %v3772 = vmax.f32 %v3770, %v3771
    %v3773 = vrot.slane %v3772, 1
    %v3774 = vmax.f32 %v3772, %v3773
    %v3775 = vmax.f32 %v3674, %v3677
    %v3776 = vrot.slane %v3775, 4
    %v3777 = vmax.f32 %v3775, %v3776
    %v3778 = vrot.slane %v3777, 2
    %v3779 = vmax.f32 %v3777, %v3778
    %v3780 = vrot.slane %v3779, 1
    %v3781 = vmax.f32 %v3779, %v3780
    %v3782 = vmax.f32 %v3680, %v3683
    %v3783 = vrot.slane %v3782, 4
    %v3784 = vmax.f32 %v3782, %v3783
    %v3785 = vrot.slane %v3784, 2
    %v3786 = vmax.f32 %v3784, %v3785
    %v3787 = vrot.slane %v3786, 1
    %v3788 = vmax.f32 %v3786, %v3787
    %v3789 = vmax.f32 %v3686, %v3689
    %v3790 = vrot.slane %v3789, 4
    %v3791 = vmax.f32 %v3789, %v3790
    %v3792 = vrot.slane %v3791, 2
    %v3793 = vmax.f32 %v3791, %v3792
    %v3794 = vrot.slane %v3793, 1
    %v3795 = vmax.f32 %v3793, %v3794
    %v3796 = vmax.f32 %v3692, %v3695
    %v3797 = vrot.slane %v3796, 4
    %v3798 = vmax.f32 %v3796, %v3797
    %v3799 = vrot.slane %v3798, 2
    %v3800 = vmax.f32 %v3798, %v3799
    %v3801 = vrot.slane %v3800, 1
    %v3802 = vmax.f32 %v3800, %v3801
    %v3803 = vmax.f32 %v3698, %v3701
    %v3804 = vrot.slane %v3803, 4
    %v3805 = vmax.f32 %v3803, %v3804
    %v3806 = vrot.slane %v3805, 2
    %v3807 = vmax.f32 %v3805, %v3806
    %v3808 = vrot.slane %v3807, 1
    %v3809 = vmax.f32 %v3807, %v3808
    %v3810 = vmax.f32 %v3704, %v3707
    %v3811 = vrot.slane %v3810, 4
    %v3812 = vmax.f32 %v3810, %v3811
    %v3813 = vrot.slane %v3812, 2
    %v3814 = vmax.f32 %v3812, %v3813
    %v3815 = vrot.slane %v3814, 1
    %v3816 = vmax.f32 %v3814, %v3815
    %v3817 = vmax.f32 %v3710, %v3713
    %v3818 = vrot.slane %v3817, 4
    %v3819 = vmax.f32 %v3817, %v3818
    %v3820 = vrot.slane %v3819, 2
    %v3821 = vmax.f32 %v3819, %v3820
    %v3822 = vrot.slane %v3821, 1
    %v3823 = vmax.f32 %v3821, %v3822
    %v3824 = vmax.f32 %v3716, %v3719
    %v3825 = vrot.slane %v3824, 4
    %v3826 = vmax.f32 %v3824, %v3825
    %v3827 = vrot.slane %v3826, 2
    %v3828 = vmax.f32 %v3826, %v3827
    %v3829 = vrot.slane %v3828, 1
    %v3830 = vmax.f32 %v3828, %v3829
    %v3831 = vmax.f32 %v3722, %v3725
    %v3832 = vrot.slane %v3831, 4
    %v3833 = vmax.f32 %v3831, %v3832
    %v3834 = vrot.slane %v3833, 2
    %v3835 = vmax.f32 %v3833, %v3834
    %v3836 = vrot.slane %v3835, 1
    %v3837 = vmax.f32 %v3835, %v3836
    %v3838 = vsub.f32 %v3632, %v3732
    %v3839 = vsub.f32 %v3635, %v3732
    %v3840 = vsub.f32 %v3638, %v3739
    %v3841 = vsub.f32 %v3641, %v3739
    %v3842 = vsub.f32 %v3644, %v3746
    %v3843 = vsub.f32 %v3647, %v3746
    %v3844 = vsub.f32 %v3650, %v3753
    %v3845 = vsub.f32 %v3653, %v3753
    %v3846 = vsub.f32 %v3656, %v3760
    %v3847 = vsub.f32 %v3659, %v3760
    %v3848 = vsub.f32 %v3662, %v3767
    %v3849 = vsub.f32 %v3665, %v3767
    %v3850 = vsub.f32 %v3668, %v3774
    %v3851 = vsub.f32 %v3671, %v3774
    %v3852 = vsub.f32 %v3674, %v3781
    %v3853 = vsub.f32 %v3677, %v3781
    %v3854 = vsub.f32 %v3680, %v3788
    %v3855 = vsub.f32 %v3683, %v3788
    %v3856 = vsub.f32 %v3686, %v3795
    %v3857 = vsub.f32 %v3689, %v3795
    %v3858 = vsub.f32 %v3692, %v3802
    %v3859 = vsub.f32 %v3695, %v3802
    %v3860 = vsub.f32 %v3698, %v3809
    %v3861 = vsub.f32 %v3701, %v3809
    %v3862 = vsub.f32 %v3704, %v3816
    %v3863 = vsub.f32 %v3707, %v3816
    %v3864 = vsub.f32 %v3710, %v3823
    %v3865 = vsub.f32 %v3713, %v3823
    %v3866 = vsub.f32 %v3716, %v3830
    %v3867 = vsub.f32 %v3719, %v3830
    %v3868 = vsub.f32 %v3722, %v3837
    %v3869 = vsub.f32 %v3725, %v3837
    %v3870 = vmul.f32 %v3838, 1.442695
    %v3871 = vpow.pop %v3870
    %v3872 = vmul.f32 %v3839, 1.442695
    %v3873 = vpow.pop %v3872
    %v3874 = vmul.f32 %v3840, 1.442695
    %v3875 = vpow.pop %v3874
    %v3876 = vmul.f32 %v3841, 1.442695
    %v3877 = vpow.pop %v3876
    %v3878 = vmul.f32 %v3842, 1.442695
    %v3879 = vpow.pop %v3878
    %v3880 = vmul.f32 %v3843, 1.442695
    %v3881 = vpow.pop %v3880
    %v3882 = vmul.f32 %v3844, 1.442695
    %v3883 = vpow.pop %v3882
    %v3884 = vmul.f32 %v3845, 1.442695
    %v3885 = vpow.pop %v3884
    %v3886 = vmul.f32 %v3846, 1.442695
    %v3887 = vpow.pop %v3886
    %v3888 = vmul.f32 %v3847, 1.442695
    %v3889 = vpow.pop %v3888
    %v3890 = vmul.f32 %v3848, 1.442695
    %v3891 = vpow.pop %v3890
    %v3892 = vmul.f32 %v3849, 1.442695
    %v3893 = vpow.pop %v3892
    %v3894 = vmul.f32 %v3850, 1.442695
    %v3895 = vpow.pop %v3894
    %v3896 = vmul.f32 %v3851, 1.442695
    %v3897 = vpow.pop %v3896
    %v3898 = vmul.f32 %v3852, 1.442695
    %v3899 = vpow.pop %v3898
    %v3900 = vmul.f32 %v3853, 1.442695
    %v3901 = vpow.pop %v3900
    %v3902 = vmul.f32 %v3854, 1.442695
    %v3903 = vpow.pop %v3902
    %v3904 = vmul.f32 %v3855, 1.442695
    %v3905 = vpow.pop %v3904
    %v3906 = vmul.f32 %v3856, 1.442695
    %v3907 = vpow.pop %v3906
    %v3908 = vmul.f32 %v3857, 1.442695
    %v3909 = vpow.pop %v3908
    %v3910 = vmul.f32 %v3858, 1.442695
    %v3911 = vpow.pop %v3910
    %v3912 = vmul.f32 %v3859, 1.442695
    %v3913 = vpow.pop %v3912
    %v3914 = vmul.f32 %v3860, 1.442695
    %v3915 = vpow.pop %v3914
    %v3916 = vmul.f32 %v3861, 1.442695
    %v3917 = vpow.pop %v3916
    %v3918 = vmul.f32 %v3862, 1.442695
    %v3919 = vpow.pop %v3918
    %v3920 = vmul.f32 %v3863, 1.442695
    %v3921 = vpow.pop %v3920
    %v3922 = vmul.f32 %v3864, 1.442695
    %v3923 = vpow.pop %v3922
    %v3924 = vmul.f32 %v3865, 1.442695
    %v3925 = vpow.pop %v3924
    %v3926 = vmul.f32 %v3866, 1.442695
    %v3927 = vpow.pop %v3926
    %v3928 = vmul.f32 %v3867, 1.442695
    %v3929 = vpow.pop %v3928
    %v3930 = vmul.f32 %v3868, 1.442695
    %v3931 = vpow.pop %v3930
    %v3932 = vmul.f32 %v3869, 1.442695
    %v3933 = vpow.pop %v3932
    %v3934 = vadd.f32 %v3871, %v3873
    %v3935 = vrot.slane %v3934, 4
    %v3936 = vadd.f32 %v3934, %v3935
    %v3937 = vrot.slane %v3936, 2
    %v3938 = vadd.f32 %v3936, %v3937
    %v3939 = vrot.slane %v3938, 1
    %v3940 = vadd.f32 %v3938, %v3939
    %v3941 = vadd.f32 %v3875, %v3877
    %v3942 = vrot.slane %v3941, 4
    %v3943 = vadd.f32 %v3941, %v3942
    %v3944 = vrot.slane %v3943, 2
    %v3945 = vadd.f32 %v3943, %v3944
    %v3946 = vrot.slane %v3945, 1
    %v3947 = vadd.f32 %v3945, %v3946
    %v3948 = vadd.f32 %v3879, %v3881
    %v3949 = vrot.slane %v3948, 4
    %v3950 = vadd.f32 %v3948, %v3949
    %v3951 = vrot.slane %v3950, 2
    %v3952 = vadd.f32 %v3950, %v3951
    %v3953 = vrot.slane %v3952, 1
    %v3954 = vadd.f32 %v3952, %v3953
    %v3955 = vadd.f32 %v3883, %v3885
    %v3956 = vrot.slane %v3955, 4
    %v3957 = vadd.f32 %v3955, %v3956
    %v3958 = vrot.slane %v3957, 2
    %v3959 = vadd.f32 %v3957, %v3958
    %v3960 = vrot.slane %v3959, 1
    %v3961 = vadd.f32 %v3959, %v3960
    %v3962 = vadd.f32 %v3887, %v3889
    %v3963 = vrot.slane %v3962, 4
    %v3964 = vadd.f32 %v3962, %v3963
    %v3965 = vrot.slane %v3964, 2
    %v3966 = vadd.f32 %v3964, %v3965
    %v3967 = vrot.slane %v3966, 1
    %v3968 = vadd.f32 %v3966, %v3967
    %v3969 = vadd.f32 %v3891, %v3893
    %v3970 = vrot.slane %v3969, 4
    %v3971 = vadd.f32 %v3969, %v3970
    %v3972 = vrot.slane %v3971, 2
    %v3973 = vadd.f32 %v3971, %v3972
    %v3974 = vrot.slane %v3973, 1
    %v3975 = vadd.f32 %v3973, %v3974
    %v3976 = vadd.f32 %v3895, %v3897
    %v3977 = vrot.slane %v3976, 4
    %v3978 = vadd.f32 %v3976, %v3977
    %v3979 = vrot.slane %v3978, 2
    %v3980 = vadd.f32 %v3978, %v3979
    %v3981 = vrot.slane %v3980, 1
    %v3982 = vadd.f32 %v3980, %v3981
    %v3983 = vadd.f32 %v3899, %v3901
    %v3984 = vrot.slane %v3983, 4
    %v3985 = vadd.f32 %v3983, %v3984
    %v3986 = vrot.slane %v3985, 2
    %v3987 = vadd.f32 %v3985, %v3986
    %v3988 = vrot.slane %v3987, 1
    %v3989 = vadd.f32 %v3987, %v3988
    %v3990 = vadd.f32 %v3903, %v3905
    %v3991 = vrot.slane %v3990, 4
    %v3992 = vadd.f32 %v3990, %v3991
    %v3993 = vrot.slane %v3992, 2
    %v3994 = vadd.f32 %v3992, %v3993
    %v3995 = vrot.slane %v3994, 1
    %v3996 = vadd.f32 %v3994, %v3995
    %v3997 = vadd.f32 %v3907, %v3909
    %v3998 = vrot.slane %v3997, 4
    %v3999 = vadd.f32 %v3997, %v3998
    %v4000 = vrot.slane %v3999, 2
    %v4001 = vadd.f32 %v3999, %v4000
    %v4002 = vrot.slane %v4001, 1
    %v4003 = vadd.f32 %v4001, %v4002
    %v4004 = vadd.f32 %v3911, %v3913
    %v4005 = vrot.slane %v4004, 4
    %v4006 = vadd.f32 %v4004, %v4005
    %v4007 = vrot.slane %v4006, 2
    %v4008 = vadd.f32 %v4006, %v4007
    %v4009 = vrot.slane %v4008, 1
    %v4010 = vadd.f32 %v4008, %v4009
    %v4011 = vadd.f32 %v3915, %v3917
    %v4012 = vrot.slane %v4011, 4
    %v4013 = vadd.f32 %v4011, %v4012
    %v4014 = vrot.slane %v4013, 2
    %v4015 = vadd.f32 %v4013, %v4014
    %v4016 = vrot.slane %v4015, 1
    %v4017 = vadd.f32 %v4015, %v4016
    %v4018 = vadd.f32 %v3919, %v3921
    %v4019 = vrot.slane %v4018, 4
    %v4020 = vadd.f32 %v4018, %v4019
    %v4021 = vrot.slane %v4020, 2
    %v4022 = vadd.f32 %v4020, %v4021
    %v4023 = vrot.slane %v4022, 1
    %v4024 = vadd.f32 %v4022, %v4023
    %v4025 = vadd.f32 %v3923, %v3925
    %v4026 = vrot.slane %v4025, 4
    %v4027 = vadd.f32 %v4025, %v4026
    %v4028 = vrot.slane %v4027, 2
    %v4029 = vadd.f32 %v4027, %v4028
    %v4030 = vrot.slane %v4029, 1
    %v4031 = vadd.f32 %v4029, %v4030
    %v4032 = vadd.f32 %v3927, %v3929
    %v4033 = vrot.slane %v4032, 4
    %v4034 = vadd.f32 %v4032, %v4033
    %v4035 = vrot.slane %v4034, 2
    %v4036 = vadd.f32 %v4034, %v4035
    %v4037 = vrot.slane %v4036, 1
    %v4038 = vadd.f32 %v4036, %v4037
    %v4039 = vadd.f32 %v3931, %v3933
    %v4040 = vrot.slane %v4039, 4
    %v4041 = vadd.f32 %v4039, %v4040
    %v4042 = vrot.slane %v4041, 2
    %v4043 = vadd.f32 %v4041, %v4042
    %v4044 = vrot.slane %v4043, 1
    %v4045 = vadd.f32 %v4043, %v4044
    %v4046 = vrcp.pop %v3940
    %v4047 = vrcp.pop %v3947
    %v4048 = vrcp.pop %v3954
    %v4049 = vrcp.pop %v3961
    %v4050 = vrcp.pop %v3968
    %v4051 = vrcp.pop %v3975
    %v4052 = vrcp.pop %v3982
    %v4053 = vrcp.pop %v3989
    %v4054 = vrcp.pop %v3996
    %v4055 = vrcp.pop %v4003
    %v4056 = vrcp.pop %v4010
    %v4057 = vrcp.pop %v4017
    %v4058 = vrcp.pop %v4024
    %v4059 = vrcp.pop %v4031
    %v4060 = vrcp.pop %v4038
    %v4061 = vrcp.pop %v4045
    %v4062 = vmul.f32 %v3871, %v4046
    %v4063 = vmul.f32 %v3873, %v4046
    %v4064 = vmul.f32 %v3875, %v4047
    %v4065 = vmul.f32 %v3877, %v4047
    %v4066 = vmul.f32 %v3879, %v4048
    %v4067 = vmul.f32 %v3881, %v4048
    %v4068 = vmul.f32 %v3883, %v4049
    %v4069 = vmul.f32 %v3885, %v4049
    %v4070 = vmul.f32 %v3887, %v4050
    %v4071 = vmul.f32 %v3889, %v4050
    %v4072 = vmul.f32 %v3891, %v4051
    %v4073 = vmul.f32 %v3893, %v4051
    %v4074 = vmul.f32 %v3895, %v4052
    %v4075 = vmul.f32 %v3897, %v4052
    %v4076 = vmul.f32 %v3899, %v4053
    %v4077 = vmul.f32 %v3901, %v4053
    %v4078 = vmul.f32 %v3903, %v4054
    %v4079 = vmul.f32 %v3905, %v4054
    %v4080 = vmul.f32 %v3907, %v4055
    %v4081 = vmul.f32 %v3909, %v4055
    %v4082 = vmul.f32 %v3911, %v4056
    %v4083 = vmul.f32 %v3913, %v4056
    %v4084 = vmul.f32 %v3915, %v4057
    %v4085 = vmul.f32 %v3917, %v4057
    %v4086 = vmul.f32 %v3919, %v4058
    %v4087 = vmul.f32 %v3921, %v4058
    %v4088 = vmul.f32 %v3923, %v4059
    %v4089 = vmul.f32 %v3925, %v4059
    %v4090 = vmul.f32 %v3927, %v4060
    %v4091 = vmul.f32 %v3929, %v4060
    %v4092 = vmul.f32 %v3931, %v4061
    %v4093 = vmul.f32 %v3933, %v4061
    %v4094 = vmul.f32 %v721, %v4062
    %v4095 = vmul.f32 %v723, %v4062
    %v4096 = vmul.f32 %v725, %v4063
    %v4097 = vmul.f32 %v727, %v4063
    %v4098 = vmul.f32 %v731, %v4064
    %v4099 = vmul.f32 %v733, %v4064
    %v4100 = vmul.f32 %v735, %v4065
    %v4101 = vmul.f32 %v737, %v4065
    %v4102 = vmul.f32 %v741, %v4066
    %v4103 = vmul.f32 %v743, %v4066
    %v4104 = vmul.f32 %v745, %v4067
    %v4105 = vmul.f32 %v747, %v4067
    %v4106 = vmul.f32 %v751, %v4068
    %v4107 = vmul.f32 %v753, %v4068
    %v4108 = vmul.f32 %v755, %v4069
    %v4109 = vmul.f32 %v757, %v4069
    %v4110 = vmul.f32 %v761, %v4070
    %v4111 = vmul.f32 %v763, %v4070
    %v4112 = vmul.f32 %v765, %v4071
    %v4113 = vmul.f32 %v767, %v4071
    %v4114 = vmul.f32 %v771, %v4072
    %v4115 = vmul.f32 %v773, %v4072
    %v4116 = vmul.f32 %v775, %v4073
    %v4117 = vmul.f32 %v777, %v4073
    %v4118 = vmul.f32 %v781, %v4074
    %v4119 = vmul.f32 %v783, %v4074
    %v4120 = vmul.f32 %v785, %v4075
    %v4121 = vmul.f32 %v787, %v4075
    %v4122 = vmul.f32 %v791, %v4076
    %v4123 = vmul.f32 %v793, %v4076
    %v4124 = vmul.f32 %v795, %v4077
    %v4125 = vmul.f32 %v797, %v4077
    %v4126 = vmul.f32 %v801, %v4078
    %v4127 = vmul.f32 %v803, %v4078
    %v4128 = vmul.f32 %v805, %v4079
    %v4129 = vmul.f32 %v807, %v4079
    %v4130 = vmul.f32 %v811, %v4080
    %v4131 = vmul.f32 %v813, %v4080
    %v4132 = vmul.f32 %v815, %v4081
    %v4133 = vmul.f32 %v817, %v4081
    %v4134 = vmul.f32 %v821, %v4082
    %v4135 = vmul.f32 %v823, %v4082
    %v4136 = vmul.f32 %v825, %v4083
    %v4137 = vmul.f32 %v827, %v4083
    %v4138 = vmul.f32 %v831, %v4084
    %v4139 = vmul.f32 %v833, %v4084
    %v4140 = vmul.f32 %v835, %v4085
    %v4141 = vmul.f32 %v837, %v4085
    %v4142 = vmul.f32 %v841, %v4086
    %v4143 = vmul.f32 %v843, %v4086
    %v4144 = vmul.f32 %v845, %v4087
    %v4145 = vmul.f32 %v847, %v4087
    %v4146 = vmul.f32 %v851, %v4088
    %v4147 = vmul.f32 %v853, %v4088
    %v4148 = vmul.f32 %v855, %v4089
    %v4149 = vmul.f32 %v857, %v4089
    %v4150 = vmul.f32 %v861, %v4090
    %v4151 = vmul.f32 %v863, %v4090
    %v4152 = vmul.f32 %v865, %v4091
    %v4153 = vmul.f32 %v867, %v4091
    %v4154 = vmul.f32 %v871, %v4092
    %v4155 = vmul.f32 %v873, %v4092
    %v4156 = vmul.f32 %v875, %v4093
    %v4157 = vmul.f32 %v877, %v4093
    %v4158 = vadd.f32 %v4094, %v4096
    %v4159 = vrot.slane %v4158, 4
    %v4160 = vadd.f32 %v4158, %v4159
    %v4161 = vrot.slane %v4160, 2
    %v4162 = vadd.f32 %v4160, %v4161
    %v4163 = vrot.slane %v4162, 1
    %v4164 = vadd.f32 %v4162, %v4163
    %v4165 = vadd.f32 %v4095, %v4097
    %v4166 = vrot.slane %v4165, 4
    %v4167 = vadd.f32 %v4165, %v4166
    %v4168 = vrot.slane %v4167, 2
    %v4169 = vadd.f32 %v4167, %v4168
    %v4170 = vrot.slane %v4169, 1
    %v4171 = vadd.f32 %v4169, %v4170
    %v4172 = vadd.f32 %v4098, %v4100
    %v4173 = vrot.slane %v4172, 4
    %v4174 = vadd.f32 %v4172, %v4173
    %v4175 = vrot.slane %v4174, 2
    %v4176 = vadd.f32 %v4174, %v4175
    %v4177 = vrot.slane %v4176, 1
    %v4178 = vadd.f32 %v4176, %v4177
    %v4179 = vadd.f32 %v4099, %v4101
    %v4180 = vrot.slane %v4179, 4
    %v4181 = vadd.f32 %v4179, %v4180
    %v4182 = vrot.slane %v4181, 2
    %v4183 = vadd.f32 %v4181, %v4182
    %v4184 = vrot.slane %v4183, 1
    %v4185 = vadd.f32 %v4183, %v4184
    %v4186 = vadd.f32 %v4102, %v4104
    %v4187 = vrot.slane %v4186, 4
    %v4188 = vadd.f32 %v4186, %v4187
    %v4189 = vrot.slane %v4188, 2
    %v4190 = vadd.f32 %v4188, %v4189
    %v4191 = vrot.slane %v4190, 1
    %v4192 = vadd.f32 %v4190, %v4191
    %v4193 = vadd.f32 %v4103, %v4105
    %v4194 = vrot.slane %v4193, 4
    %v4195 = vadd.f32 %v4193, %v4194
    %v4196 = vrot.slane %v4195, 2
    %v4197 = vadd.f32 %v4195, %v4196
    %v4198 = vrot.slane %v4197, 1
    %v4199 = vadd.f32 %v4197, %v4198
    %v4200 = vadd.f32 %v4106, %v4108
    %v4201 = vrot.slane %v4200, 4
    %v4202 = vadd.f32 %v4200, %v4201
    %v4203 = vrot.slane %v4202, 2
    %v4204 = vadd.f32 %v4202, %v4203
    %v4205 = vrot.slane %v4204, 1
    %v4206 = vadd.f32 %v4204, %v4205
    %v4207 = vadd.f32 %v4107, %v4109
    %v4208 = vrot.slane %v4207, 4
    %v4209 = vadd.f32 %v4207, %v4208
    %v4210 = vrot.slane %v4209, 2
    %v4211 = vadd.f32 %v4209, %v4210
    %v4212 = vrot.slane %v4211, 1
    %v4213 = vadd.f32 %v4211, %v4212
    %v4214 = vadd.f32 %v4110, %v4112
    %v4215 = vrot.slane %v4214, 4
    %v4216 = vadd.f32 %v4214, %v4215
    %v4217 = vrot.slane %v4216, 2
    %v4218 = vadd.f32 %v4216, %v4217
    %v4219 = vrot.slane %v4218, 1
    %v4220 = vadd.f32 %v4218, %v4219
    %v4221 = vadd.f32 %v4111, %v4113
    %v4222 = vrot.slane %v4221, 4
    %v4223 = vadd.f32 %v4221, %v4222
    %v4224 = vrot.slane %v4223, 2
    %v4225 = vadd.f32 %v4223, %v4224
    %v4226 = vrot.slane %v4225, 1
    %v4227 = vadd.f32 %v4225, %v4226
    %v4228 = vadd.f32 %v4114, %v4116
    %v4229 = vrot.slane %v4228, 4
    %v4230 = vadd.f32 %v4228, %v4229
    %v4231 = vrot.slane %v4230, 2
    %v4232 = vadd.f32 %v4230, %v4231
    %v4233 = vrot.slane %v4232, 1
    %v4234 = vadd.f32 %v4232, %v4233
    %v4235 = vadd.f32 %v4115, %v4117
    %v4236 = vrot.slane %v4235, 4
    %v4237 = vadd.f32 %v4235, %v4236
    %v4238 = vrot.slane %v4237, 2
    %v4239 = vadd.f32 %v4237, %v4238
    %v4240 = vrot.slane %v4239, 1
    %v4241 = vadd.f32 %v4239, %v4240
    %v4242 = vadd.f32 %v4118, %v4120
    %v4243 = vrot.slane %v4242, 4
    %v4244 = vadd.f32 %v4242, %v4243
    %v4245 = vrot.slane %v4244, 2
    %v4246 = vadd.f32 %v4244, %v4245
    %v4247 = vrot.slane %v4246, 1
    %v4248 = vadd.f32 %v4246, %v4247
    %v4249 = vadd.f32 %v4119, %v4121
    %v4250 = vrot.slane %v4249, 4
    %v4251 = vadd.f32 %v4249, %v4250
    %v4252 = vrot.slane %v4251, 2
    %v4253 = vadd.f32 %v4251, %v4252
    %v4254 = vrot.slane %v4253, 1
    %v4255 = vadd.f32 %v4253, %v4254
    %v4256 = vadd.f32 %v4122, %v4124
    %v4257 = vrot.slane %v4256, 4
    %v4258 = vadd.f32 %v4256, %v4257
    %v4259 = vrot.slane %v4258, 2
    %v4260 = vadd.f32 %v4258, %v4259
    %v4261 = vrot.slane %v4260, 1
    %v4262 = vadd.f32 %v4260, %v4261
    %v4263 = vadd.f32 %v4123, %v4125
    %v4264 = vrot.slane %v4263, 4
    %v4265 = vadd.f32 %v4263, %v4264
    %v4266 = vrot.slane %v4265, 2
    %v4267 = vadd.f32 %v4265, %v4266
    %v4268 = vrot.slane %v4267, 1
    %v4269 = vadd.f32 %v4267, %v4268
    %v4270 = vadd.f32 %v4126, %v4128
    %v4271 = vrot.slane %v4270, 4
    %v4272 = vadd.f32 %v4270, %v4271
    %v4273 = vrot.slane %v4272, 2
    %v4274 = vadd.f32 %v4272, %v4273
    %v4275 = vrot.slane %v4274, 1
    %v4276 = vadd.f32 %v4274, %v4275
    %v4277 = vadd.f32 %v4127, %v4129
    %v4278 = vrot.slane %v4277, 4
    %v4279 = vadd.f32 %v4277, %v4278
    %v4280 = vrot.slane %v4279, 2
    %v4281 = vadd.f32 %v4279, %v4280
    %v4282 = vrot.slane %v4281, 1
    %v4283 = vadd.f32 %v4281, %v4282
    %v4284 = vadd.f32 %v4130, %v4132
    %v4285 = vrot.slane %v4284, 4
    %v4286 = vadd.f32 %v4284, %v4285
    %v4287 = vrot.slane %v4286, 2
    %v4288 = vadd.f32 %v4286, %v4287
    %v4289 = vrot.slane %v4288, 1
    %v4290 = vadd.f32 %v4288, %v4289
    %v4291 = vadd.f32 %v4131, %v4133
    %v4292 = vrot.slane %v4291, 4
    %v4293 = vadd.f32 %v4291, %v4292
    %v4294 = vrot.slane %v4293, 2
    %v4295 = vadd.f32 %v4293, %v4294
    %v4296 = vrot.slane %v4295, 1
    %v4297 = vadd.f32 %v4295, %v4296
    %v4298 = vadd.f32 %v4134, %v4136
    %v4299 = vrot.slane %v4298, 4
    %v4300 = vadd.f32 %v4298, %v4299
    %v4301 = vrot.slane %v4300, 2
    %v4302 = vadd.f32 %v4300, %v4301
    %v4303 = vrot.slane %v4302, 1
    %v4304 = vadd.f32 %v4302, %v4303
    %v4305 = vadd.f32 %v4135, %v4137
    %v4306 = vrot.slane %v4305, 4
    %v4307 = vadd.f32 %v4305, %v4306
    %v4308 = vrot.slane %v4307, 2
    %v4309 = vadd.f32 %v4307, %v4308
    %v4310 = vrot.slane %v4309, 1
    %v4311 = vadd.f32 %v4309, %v4310
    %v4312 = vadd.f32 %v4138, %v4140
    %v4313 = vrot.slane %v4312, 4
    %v4314 = vadd.f32 %v4312, %v4313
    %v4315 = vrot.slane %v4314, 2
    %v4316 = vadd.f32 %v4314, %v4315
    %v4317 = vrot.slane %v4316, 1
    %v4318 = vadd.f32 %v4316, %v4317
    %v4319 = vadd.f32 %v4139, %v4141
    %v4320 = vrot.slane %v4319, 4
    %v4321 = vadd.f32 %v4319, %v4320
    %v4322 = vrot.slane %v4321, 2
    %v4323 = vadd.f32 %v4321, %v4322
    %v4324 = vrot.slane %v4323, 1
    %v4325 = vadd.f32 %v4323, %v4324
    %v4326 = vadd.f32 %v4142, %v4144
    %v4327 = vrot.slane %v4326, 4
    %v4328 = vadd.f32 %v4326, %v4327
    %v4329 = vrot.slane %v4328, 2
    %v4330 = vadd.f32 %v4328, %v4329
    %v4331 = vrot.slane %v4330, 1
    %v4332 = vadd.f32 %v4330, %v4331
    %v4333 = vadd.f32 %v4143, %v4145
    %v4334 = vrot.slane %v4333, 4
    %v4335 = vadd.f32 %v4333, %v4334
    %v4336 = vrot.slane %v4335, 2
    %v4337 = vadd.f32 %v4335, %v4336
    %v4338 = vrot.slane %v4337, 1
    %v4339 = vadd.f32 %v4337, %v4338
    %v4340 = vadd.f32 %v4146, %v4148
    %v4341 = vrot.slane %v4340, 4
    %v4342 = vadd.f32 %v4340, %v4341
    %v4343 = vrot.slane %v4342, 2
    %v4344 = vadd.f32 %v4342, %v4343
    %v4345 = vrot.slane %v4344, 1
    %v4346 = vadd.f32 %v4344, %v4345
    %v4347 = vadd.f32 %v4147, %v4149
    %v4348 = vrot.slane %v4347, 4
    %v4349 = vadd.f32 %v4347, %v4348
    %v4350 = vrot.slane %v4349, 2
    %v4351 = vadd.f32 %v4349, %v4350
    %v4352 = vrot.slane %v4351, 1
    %v4353 = vadd.f32 %v4351, %v4352
    %v4354 = vadd.f32 %v4150, %v4152
    %v4355 = vrot.slane %v4354, 4
    %v4356 = vadd.f32 %v4354, %v4355
    %v4357 = vrot.slane %v4356, 2
    %v4358 = vadd.f32 %v4356, %v4357
    %v4359 = vrot.slane %v4358, 1
    %v4360 = vadd.f32 %v4358, %v4359
    %v4361 = vadd.f32 %v4151, %v4153
    %v4362 = vrot.slane %v4361, 4
    %v4363 = vadd.f32 %v4361, %v4362
    %v4364 = vrot.slane %v4363, 2
    %v4365 = vadd.f32 %v4363, %v4364
    %v4366 = vrot.slane %v4365, 1
    %v4367 = vadd.f32 %v4365, %v4366
    %v4368 = vadd.f32 %v4154, %v4156
    %v4369 = vrot.slane %v4368, 4
    %v4370 = vadd.f32 %v4368, %v4369
    %v4371 = vrot.slane %v4370, 2
    %v4372 = vadd.f32 %v4370, %v4371
    %v4373 = vrot.slane %v4372, 1
    %v4374 = vadd.f32 %v4372, %v4373
    %v4375 = vadd.f32 %v4155, %v4157
    %v4376 = vrot.slane %v4375, 4
    %v4377 = vadd.f32 %v4375, %v4376
    %v4378 = vrot.slane %v4377, 2
    %v4379 = vadd.f32 %v4377, %v4378
    %v4380 = vrot.slane %v4379, 1
    %v4381 = vadd.f32 %v4379, %v4380
    %v4382 = vpack.c.bf16 %v3298, %v3294
    %v4383 = vpack.c.bf16 %v3300, %v3296
    %v4416 = vsel %vm2031, %v4178, %v4164
    %v4417 = vsel %vm2033, %v4192, %v4416
    %v4418 = vsel %vm2035, %v4206, %v4417
    %v4419 = vsel %vm2037, %v4220, %v4418
    %v4420 = vsel %vm2039, %v4234, %v4419
    %v4421 = vsel %vm2041, %v4248, %v4420
    %v4422 = vsel %vm2043, %v4262, %v4421
    %v4423 = vsel %vm2031, %v4185, %v4171
    %v4424 = vsel %vm2033, %v4199, %v4423
    %v4425 = vsel %vm2035, %v4213, %v4424
    %v4426 = vsel %vm2037, %v4227, %v4425
    %v4427 = vsel %vm2039, %v4241, %v4426
    %v4428 = vsel %vm2041, %v4255, %v4427
    %v4429 = vsel %vm2043, %v4269, %v4428
    %v4430 = vsel %vm2031, %v4290, %v4276
    %v4431 = vsel %vm2033, %v4304, %v4430
    %v4432 = vsel %vm2035, %v4318, %v4431
    %v4433 = vsel %vm2037, %v4332, %v4432
    %v4434 = vsel %vm2039, %v4346, %v4433
    %v4435 = vsel %vm2041, %v4360, %v4434
    %v4436 = vsel %vm2043, %v4374, %v4435
    %v4437 = vsel %vm2031, %v4297, %v4283
    %v4438 = vsel %vm2033, %v4311, %v4437
    %v4439 = vsel %vm2035, %v4325, %v4438
    %v4440 = vsel %vm2037, %v4339, %v4439
    %v4441 = vsel %vm2039, %v4353, %v4440
    %v4442 = vsel %vm2041, %v4367, %v4441
    %v4443 = vsel %vm2043, %v4381, %v4442
    %4448 = vmatprep.subr.bf16.mxu0 %v1936
    %4449 = vmatpush1.bf16.msra.mxu0 %v1935
    %4450 = vmatprep.subr.bf16.mxu0 %v1938
    %4451 = vmatpush1.bf16.msra.mxu0 %v1937
    %4452 = vmatprep.subr.bf16.mxu0 %v1940
    %4453 = vmatpush1.bf16.msra.mxu0 %v1939
    %4454 = vmatprep.subr.bf16.mxu0 %v1942
    %4455 = vmatpush1.bf16.msra.mxu0 %v1941
    %4456 = vmatprep.subr.bf16.mxu0 %v1944
    %4457 = vmatpush1.bf16.msra.mxu0 %v1943
    %4458 = vmatprep.subr.bf16.mxu0 %v1946
    %4459 = vmatpush1.bf16.msra.mxu0 %v1945
    %4460 = vmatprep.subr.bf16.mxu0 %v1948
    %4461 = vmatpush1.bf16.msra.mxu0 %v1947
    %4462 = vmatprep.subr.bf16.mxu0 %v1950
    %4463 = vmatpush1.bf16.msra.mxu0 %v1949
    %4464 = vmatprep.subr.bf16.mxu0 %v1952
    %4465 = vmatpush1.bf16.msra.mxu0 %v1951
    %4466 = vmatprep.subr.bf16.mxu0 %v1954
    %4467 = vmatpush1.bf16.msra.mxu0 %v1953
    %4468 = vmatprep.subr.bf16.mxu0 %v1956
    %4469 = vmatpush1.bf16.msra.mxu0 %v1955
    %4470 = vmatprep.subr.bf16.mxu0 %v1958
    %4471 = vmatpush1.bf16.msra.mxu0 %v1957
    %4472 = vmatprep.subr.bf16.mxu0 %v1960
    %4473 = vmatpush1.bf16.msra.mxu0 %v1959
    %4474 = vmatprep.subr.bf16.mxu0 %v1962
    %4475 = vmatpush1.bf16.msra.mxu0 %v1961
    %4476 = vmatprep.subr.bf16.mxu0 %v1964
    %4477 = vmatpush1.bf16.msra.mxu0 %v1963
    %4478 = vmatprep.subr.bf16.mxu0 %v1966
    %4479 = vmatpush1.bf16.msra.mxu0 %v1965
    %4480 = vmatprep.mubr.bf16.mxu0 %v4383
    %4481 = vmatmul.mubr.bf16.gmra.mrb[0].mxu0 %v4382
    %v4482 = vpop.f32.mrb[0].mxu0
    %v4483 = vadd.f32 %v4422, %v4482
    %v4484 = vpop.f32.mrb[0].mxu0
    %v4485 = vadd.f32 %v4429, %v4484
    %v4486 = vpop.f32.mrb[0].mxu0
    %v4487 = vadd.f32 %v4436, %v4486
    %v4488 = vpop.f32.mrb[0].mxu0
    %v4489 = vadd.f32 %v4443, %v4488
    %4490 = vdwg.mxu0
    %v4491 = vpack.c.bf16 %v4487, %v4483
    %v4492 = vpack.c.bf16 %v4489, %v4485
    %v4557 = vunpack.c.l.b16 %v173
    %v4558 = vunpack.c.h.b16 %v173
    %v4559 = vunpack.c.l.b16 %v174
    %v4560 = vunpack.c.l.b16 %v175
    %v4561 = vunpack.c.h.b16 %v175
    %v4562 = vunpack.c.l.b16 %v176
    %v4563 = vunpack.c.l.b16 %v177
    %v4564 = vunpack.c.h.b16 %v177
    %v4565 = vunpack.c.l.b16 %v178
    %v4566 = vunpack.c.l.b16 %v179
    %v4567 = vunpack.c.h.b16 %v179
    %v4568 = vunpack.c.l.b16 %v180
    %v4569 = vunpack.c.l.b16 %v181
    %v4570 = vunpack.c.h.b16 %v181
    %v4571 = vunpack.c.l.b16 %v182
    %v4572 = vunpack.c.l.b16 %v183
    %v4573 = vunpack.c.h.b16 %v183
    %v4574 = vunpack.c.l.b16 %v184
    %v4575 = vunpack.c.l.b16 %v185
    %v4576 = vunpack.c.h.b16 %v185
    %v4577 = vunpack.c.l.b16 %v186
    %v4578 = vunpack.c.l.b16 %v187
    %v4579 = vunpack.c.h.b16 %v187
    %v4580 = vunpack.c.l.b16 %v188
    %v4581 = vunpack.c.l.b16 %v189
    %v4582 = vunpack.c.h.b16 %v189
    %v4583 = vunpack.c.l.b16 %v190
    %v4584 = vunpack.c.l.b16 %v191
    %v4585 = vunpack.c.h.b16 %v191
    %v4586 = vunpack.c.l.b16 %v192
    %v4587 = vunpack.c.l.b16 %v193
    %v4588 = vunpack.c.h.b16 %v193
    %v4589 = vunpack.c.l.b16 %v194
    %v4590 = vunpack.c.l.b16 %v195
    %v4591 = vunpack.c.h.b16 %v195
    %v4592 = vunpack.c.l.b16 %v196
    %v4593 = vunpack.c.l.b16 %v197
    %v4594 = vunpack.c.h.b16 %v197
    %v4595 = vunpack.c.l.b16 %v198
    %v4596 = vunpack.c.l.b16 %v199
    %v4597 = vunpack.c.h.b16 %v199
    %v4598 = vunpack.c.l.b16 %v200
    %v4599 = vunpack.c.l.b16 %v201
    %v4600 = vunpack.c.h.b16 %v201
    %v4601 = vunpack.c.l.b16 %v202
    %v4602 = vunpack.c.l.b16 %v203
    %v4603 = vunpack.c.h.b16 %v203
    %v4604 = vunpack.c.l.b16 %v204
    %v4605 = vunpack.c.l.b16 %v205
    %v4606 = vunpack.c.h.b16 %v205
    %v4607 = vunpack.c.l.b16 %v206
    %v4608 = vunpack.c.l.b16 %v207
    %v4609 = vunpack.c.h.b16 %v207
    %v4610 = vunpack.c.l.b16 %v208
    %v4611 = vunpack.c.l.b16 %v209
    %v4612 = vunpack.c.h.b16 %v209
    %v4613 = vunpack.c.l.b16 %v210
    %v4614 = vunpack.c.l.b16 %v211
    %v4615 = vunpack.c.h.b16 %v211
    %v4616 = vunpack.c.l.b16 %v212
    %v4617 = vunpack.c.l.b16 %v213
    %v4618 = vunpack.c.h.b16 %v213
    %v4619 = vunpack.c.l.b16 %v214
    %v4620 = vunpack.c.l.b16 %v215
    %v4621 = vunpack.c.h.b16 %v215
    %v4622 = vunpack.c.l.b16 %v216
    %v4623 = vunpack.c.l.b16 %v217
    %v4624 = vunpack.c.h.b16 %v217
    %v4625 = vunpack.c.l.b16 %v218
    %v4626 = vunpack.c.l.b16 %v219
    %v4627 = vunpack.c.h.b16 %v219
    %v4628 = vunpack.c.l.b16 %v220
    %v4629 = vunpack.c.l.b16 %v221
    %v4630 = vunpack.c.h.b16 %v221
    %v4631 = vunpack.c.l.b16 %v222
    %v4632 = vunpack.c.l.b16 %v223
    %v4633 = vunpack.c.h.b16 %v223
    %v4634 = vunpack.c.l.b16 %v224
    %v4635 = vunpack.c.l.b16 %v225
    %v4636 = vunpack.c.h.b16 %v225
    %v4637 = vunpack.c.l.b16 %v226
    %v4638 = vunpack.c.l.b16 %v227
    %v4639 = vunpack.c.h.b16 %v227
    %v4640 = vunpack.c.l.b16 %v228
    %v4641 = vunpack.c.l.b16 %v229
    %v4642 = vunpack.c.h.b16 %v229
    %v4643 = vunpack.c.l.b16 %v230
    %v4644 = vunpack.c.l.b16 %v231
    %v4645 = vunpack.c.h.b16 %v231
    %v4646 = vunpack.c.l.b16 %v232
    %v4647 = vunpack.c.l.b16 %v233
    %v4648 = vunpack.c.h.b16 %v233
    %v4649 = vunpack.c.l.b16 %v234
    %v4650 = vunpack.c.l.b16 %v235
    %v4651 = vunpack.c.h.b16 %v235
    %v4652 = vunpack.c.l.b16 %v236
    %v4653 = vpack.c.b16 %v4560, %v4557
    %v4654 = vpack.c.b16 %v4561, %v4558
    %v4655 = vpack.c.b16 %v4562, %v4559
    %v4656 = vpack.c.b16 %v4566, %v4563
    %v4657 = vpack.c.b16 %v4567, %v4564
    %v4658 = vpack.c.b16 %v4568, %v4565
    %v4659 = vpack.c.b16 %v4572, %v4569
    %v4660 = vpack.c.b16 %v4573, %v4570
    %v4661 = vpack.c.b16 %v4574, %v4571
    %v4662 = vpack.c.b16 %v4578, %v4575
    %v4663 = vpack.c.b16 %v4579, %v4576
    %v4664 = vpack.c.b16 %v4580, %v4577
    %v4665 = vpack.c.b16 %v4584, %v4581
    %v4666 = vpack.c.b16 %v4585, %v4582
    %v4667 = vpack.c.b16 %v4586, %v4583
    %v4668 = vpack.c.b16 %v4590, %v4587
    %v4669 = vpack.c.b16 %v4591, %v4588
    %v4670 = vpack.c.b16 %v4592, %v4589
    %v4671 = vpack.c.b16 %v4596, %v4593
    %v4672 = vpack.c.b16 %v4597, %v4594
    %v4673 = vpack.c.b16 %v4598, %v4595
    %v4674 = vpack.c.b16 %v4602, %v4599
    %v4675 = vpack.c.b16 %v4603, %v4600
    %v4676 = vpack.c.b16 %v4604, %v4601
    %v4677 = vpack.c.b16 %v4608, %v4605
    %v4678 = vpack.c.b16 %v4609, %v4606
    %v4679 = vpack.c.b16 %v4610, %v4607
    %v4680 = vpack.c.b16 %v4614, %v4611
    %v4681 = vpack.c.b16 %v4615, %v4612
    %v4682 = vpack.c.b16 %v4616, %v4613
    %v4683 = vpack.c.b16 %v4620, %v4617
    %v4684 = vpack.c.b16 %v4621, %v4618
    %v4685 = vpack.c.b16 %v4622, %v4619
    %v4686 = vpack.c.b16 %v4626, %v4623
    %v4687 = vpack.c.b16 %v4627, %v4624
    %v4688 = vpack.c.b16 %v4628, %v4625
    %v4689 = vpack.c.b16 %v4632, %v4629
    %v4690 = vpack.c.b16 %v4633, %v4630
    %v4691 = vpack.c.b16 %v4634, %v4631
    %v4692 = vpack.c.b16 %v4638, %v4635
    %v4693 = vpack.c.b16 %v4639, %v4636
    %v4694 = vpack.c.b16 %v4640, %v4637
    %v4695 = vpack.c.b16 %v4644, %v4641
    %v4696 = vpack.c.b16 %v4645, %v4642
    %v4697 = vpack.c.b16 %v4646, %v4643
    %v4698 = vpack.c.b16 %v4650, %v4647
    %v4699 = vpack.c.b16 %v4651, %v4648
    %v4700 = vpack.c.b16 %v4652, %v4649
    %4749 = vmatprep.subr.bf16.mxu0 %v4654
    %4750 = vmatpush1.bf16.msra.mxu0 %v4653
    %4751 = vmatprep.subr.bf16.mxu0 %v4657
    %4752 = vmatpush1.bf16.msra.mxu0 %v4656
    %4753 = vmatprep.subr.bf16.mxu0 %v4660
    %4754 = vmatpush1.bf16.msra.mxu0 %v4659
    %4755 = vmatprep.subr.bf16.mxu0 %v4663
    %4756 = vmatpush1.bf16.msra.mxu0 %v4662
    %4757 = vmatprep.subr.bf16.mxu0 %v4666
    %4758 = vmatpush1.bf16.msra.mxu0 %v4665
    %4759 = vmatprep.subr.bf16.mxu0 %v4669
    %4760 = vmatpush1.bf16.msra.mxu0 %v4668
    %4761 = vmatprep.subr.bf16.mxu0 %v4672
    %4762 = vmatpush1.bf16.msra.mxu0 %v4671
    %4763 = vmatprep.subr.bf16.mxu0 %v4675
    %4764 = vmatpush1.bf16.msra.mxu0 %v4674
    %4765 = vmatprep.subr.bf16.mxu0 %v4678
    %4766 = vmatpush1.bf16.msra.mxu0 %v4677
    %4767 = vmatprep.subr.bf16.mxu0 %v4681
    %4768 = vmatpush1.bf16.msra.mxu0 %v4680
    %4769 = vmatprep.subr.bf16.mxu0 %v4684
    %4770 = vmatpush1.bf16.msra.mxu0 %v4683
    %4771 = vmatprep.subr.bf16.mxu0 %v4687
    %4772 = vmatpush1.bf16.msra.mxu0 %v4686
    %4773 = vmatprep.subr.bf16.mxu0 %v4690
    %4774 = vmatpush1.bf16.msra.mxu0 %v4689
    %4775 = vmatprep.subr.bf16.mxu0 %v4693
    %4776 = vmatpush1.bf16.msra.mxu0 %v4692
    %4777 = vmatprep.subr.bf16.mxu0 %v4696
    %4778 = vmatpush1.bf16.msra.mxu0 %v4695
    %4779 = vmatprep.subr.bf16.mxu0 %v4699
    %4780 = vmatpush1.bf16.msra.mxu0 %v4698
    %4781 = vmatprep.mubr.bf16.mxu0 %v4492
    %4782 = vmatmul.mubr.bf16.gmra.mrb[0].mxu0 %v4491
    %v4783 = vpop.f32.mrb[0].mxu0
    %v4784 = vadd.f32 0.0, %v4783
    %v4785 = vpop.f32.mrb[0].mxu0
    %v4786 = vadd.f32 0.0, %v4785
    %v4787 = vpop.f32.mrb[0].mxu0
    %v4788 = vadd.f32 0.0, %v4787
    %v4789 = vpop.f32.mrb[0].mxu0
    %v4790 = vadd.f32 0.0, %v4789
    %4791 = vdwg.mxu0
    %4792 = vmatprep.subr.bf16.mxu0 0
    %4793 = vmatpush1.bf16.msra.mxu0 %v4655
    %4794 = vmatprep.subr.bf16.mxu0 0
    %4795 = vmatpush1.bf16.msra.mxu0 %v4658
    %4796 = vmatprep.subr.bf16.mxu0 0
    %4797 = vmatpush1.bf16.msra.mxu0 %v4661
    %4798 = vmatprep.subr.bf16.mxu0 0
    %4799 = vmatpush1.bf16.msra.mxu0 %v4664
    %4800 = vmatprep.subr.bf16.mxu0 0
    %4801 = vmatpush1.bf16.msra.mxu0 %v4667
    %4802 = vmatprep.subr.bf16.mxu0 0
    %4803 = vmatpush1.bf16.msra.mxu0 %v4670
    %4804 = vmatprep.subr.bf16.mxu0 0
    %4805 = vmatpush1.bf16.msra.mxu0 %v4673
    %4806 = vmatprep.subr.bf16.mxu0 0
    %4807 = vmatpush1.bf16.msra.mxu0 %v4676
    %4808 = vmatprep.subr.bf16.mxu0 0
    %4809 = vmatpush1.bf16.msra.mxu0 %v4679
    %4810 = vmatprep.subr.bf16.mxu0 0
    %4811 = vmatpush1.bf16.msra.mxu0 %v4682
    %4812 = vmatprep.subr.bf16.mxu0 0
    %4813 = vmatpush1.bf16.msra.mxu0 %v4685
    %4814 = vmatprep.subr.bf16.mxu0 0
    %4815 = vmatpush1.bf16.msra.mxu0 %v4688
    %4816 = vmatprep.subr.bf16.mxu0 0
    %4817 = vmatpush1.bf16.msra.mxu0 %v4691
    %4818 = vmatprep.subr.bf16.mxu0 0
    %4819 = vmatpush1.bf16.msra.mxu0 %v4694
    %4820 = vmatprep.subr.bf16.mxu0 0
    %4821 = vmatpush1.bf16.msra.mxu0 %v4697
    %4822 = vmatprep.subr.bf16.mxu0 0
    %4823 = vmatpush1.bf16.msra.mxu0 %v4700
    %4824 = vmatprep.mubr.bf16.mxu0 %v4492
    %4825 = vmatmul.mubr.bf16.gmra.mrb[0].mxu0 %v4491
    %v4826 = vpop.f32.mrb[0].mxu0
    %v4827 = vadd.f32 0.0, %v4826
    %v4828 = vpop.f32.mrb[0].mxu0
    %v4829 = vpop.f32.mrb[0].mxu0
    %v4830 = vadd.f32 0.0, %v4829
    %v4831 = vpop.f32.mrb[0].mxu0
    %4832 = vdwg.mxu0
    %v4833 = vpack.c.bf16 %v4788, %v4784
    %v4834 = vpack.c.bf16 %v4790, %v4786
    %v4835 = vpack.c.bf16 %v4830, %v4827
    %v4839 = vunpack.c.l.b16 %v4833
    %v4840 = vunpack.c.l.b16 %v4834
    %v4841 = vunpack.c.l.b16 %v4835
    %v4842 = vunpack.c.h.b16 %v4833
    %v4843 = vunpack.c.h.b16 %v4834
    %v4844 = vunpack.c.h.b16 %v4835
    %v4845 = vpack.c.b16 %v4840, %v4839
    %v4846 = vpack.c.b16 %v4841, %v4841
    %v4847 = vpack.c.b16 %v4843, %v4842
    %v4848 = vpack.c.b16 %v4844, %v4844
    %4853 = vst [vmem:[#allocation10] sm:$0xff] %v4845
    %4854 = vst [vmem:[#allocation10 + $0x8] sm:$0xf] %v4846
    %4855 = vst [vmem:[#allocation10 + $0xc] sm:$0xff] %v4847
    %4856 = vst [vmem:[#allocation10 + $0x14] sm:$0xf] %v4848
    // Predicated region
    $region38: #{tpu_custom_call.1} parent=1 // pred_check
      _
    $region39: #{tpu_custom_call.1} parent=1 // pred_check_branch
      %4858 = sbr.rel (0) target = $region41
    $region40: #{tpu_custom_call.1} parent=1 // pred_region
      %s4860 = ssub.s32 384, 384
      %4861 = vsyncadd [#allocation4], %s4860
      %s4862 = sshll.u32 [#allocation10], 4
      %s4863 = int_to_ptr.vmem [resolvable:$true] %s4862
      %4868 = dma.vmem_to_hbm [thread:$0]  %s4863, 384, %s5, [#allocation4], 192, 192, 12
    $region41: #{tpu_custom_call.1} parent=1 // pred_fallthru
      _
    // Predicated region
    $region42: #{tpu_custom_call.1} parent=1 // pred_check
      _
    $region43: #{tpu_custom_call.1} parent=1 // pred_check_branch
      %4870 = sbr.rel (0) target = $region45
    $region44: #{tpu_custom_call.1} parent=1 // pred_region
      %4871 = dma.done [#allocation4], 384
    $region45: #{tpu_custom_call.1} parent=1 // pred_fallthru
      _
    %4872 = vsyncpa [#allocation3], 1
    %4873 = vsyncpa [#allocation6], 1
    %4874 = vsyncpa [#allocation9], 1
    %4875 = vsyncpa [#allocation4], 1

</llo_original>
